<compile_context>
chip_gen: v7x
topology: tpu7x:2x2x1
jax: 0.10.0
libtpu: 0.0.40
codegen_flags: <defaults>
</compile_context>

<pallas_src>
import functools

import jax
import jax.numpy as jnp
from jax import lax
from jax.experimental import pallas as pl
from jax.experimental.pallas import tpu as pltpu

# ----- "nhi_config" (synthetic, small) -----
N_MFCC = 32
LSTM_HIDDEN_SIZE = 32
LSTM_NUM_LAYERS = 2
BI_LSTM = True
FRAME_AGGREGATION_MEAN = True


# ----------------------------------------------------------------------------
# Fused kernel: entire 2-layer bidirectional LSTM + frame aggregation.
# Everything resident in VMEM; T is small and static so the time loops are
# fully unrolled at trace time (short fixed trip count -> best LLO schedule).
# Gate order inside the kernel (after wrapper-side permutation): [i, f, o, g].
# ----------------------------------------------------------------------------
def _fused_bilstm_kernel(x_ref, wih0_ref, whh0_ref, b0_ref,
                         wih1a_ref, wih1b_ref, whh1_ref, b1_ref,
                         out_ref, act_f, act_b, *, T, B, H, aggregate_mean):
    f32 = jnp.float32

    def lstm_scan(gx, whh, reverse, write_ref):
        """One direction of one layer.

        gx:   (T*B, 4H) pre-computed input gates (x @ W_ih^T + bias).
        whh:  (H, 4H)   transposed recurrent weights (same gate order).
        Writes h_t at the *original* time index into write_ref (if given);
        returns (sum_t h_t, h_{t=T-1}).
        """
        h = jnp.zeros((B, H), f32)
        c = jnp.zeros((B, H), f32)
        acc = jnp.zeros((B, H), f32)
        h_last = h
        for step in range(T):
            t = (T - 1 - step) if reverse else step
            g = gx[t * B:(t + 1) * B, :] + jnp.dot(
                h, whh, preferred_element_type=f32)           # (B, 4H)
            sig = jax.nn.sigmoid(g[:, :3 * H])                # one pass: i,f,o
            i_g = sig[:, 0 * H:1 * H]
            f_g = sig[:, 1 * H:2 * H]
            o_g = sig[:, 2 * H:3 * H]
            g_g = jnp.tanh(g[:, 3 * H:4 * H])
            c = f_g * c + i_g * g_g
            h = o_g * jnp.tanh(c)
            if write_ref is not None:
                write_ref[t * B:(t + 1) * B, :] = h
            acc = acc + h
            if t == T - 1:
                h_last = h
        return acc, h_last

    x = x_ref[...]                                            # (T*B, F)

    # ---- layer 0: hoisted input projection (one MXU matmul per direction) ---
    gx0_f = jnp.dot(x, wih0_ref[0], preferred_element_type=f32) + b0_ref[0]
    gx0_b = jnp.dot(x, wih0_ref[1], preferred_element_type=f32) + b0_ref[1]
    lstm_scan(gx0_f, whh0_ref[0], reverse=False, write_ref=act_f)
    lstm_scan(gx0_b, whh0_ref[1], reverse=True, write_ref=act_b)

    # ---- layer 1: input is concat(fwd, bwd) of layer-0 output.  W_ih is
    #      pre-split into the fwd/bwd halves, so no in-kernel concatenation.
    a_f = act_f[...]                                          # (T*B, H)
    a_b = act_b[...]                                          # (T*B, H)
    gx1_f = (jnp.dot(a_f, wih1a_ref[0], preferred_element_type=f32)
             + jnp.dot(a_b, wih1b_ref[0], preferred_element_type=f32)
             + b1_ref[0])
    gx1_b = (jnp.dot(a_f, wih1a_ref[1], preferred_element_type=f32)
             + jnp.dot(a_b, wih1b_ref[1], preferred_element_type=f32)
             + b1_ref[1])
    sum_f, last_f = lstm_scan(gx1_f, whh1_ref[0], reverse=False, write_ref=None)
    sum_b, last_b = lstm_scan(gx1_b, whh1_ref[1], reverse=True, write_ref=None)

    # ---- fused frame aggregation: single (B, 2H) store ----------------------
    if aggregate_mean:
        res_f = sum_f * (1.0 / T)
        res_b = sum_b * (1.0 / T)
    else:
        res_f, res_b = last_f, last_b
    out_ref[:, :H] = res_f.astype(out_ref.dtype)
    out_ref[:, H:] = res_b.astype(out_ref.dtype)


# ----------------------------------------------------------------------------
# Wrapper: weight prep (transpose + gate reorder) and the single pallas_call.
# ----------------------------------------------------------------------------
def _prep_weights(w_ih, w_hh, b_ih, b_hh, H):
    """Transpose to (in, 4H) and permute gate order [i,f,g,o] -> [i,f,o,g]."""
    perm = jnp.concatenate([jnp.arange(0, 2 * H),
                            jnp.arange(3 * H, 4 * H),
                            jnp.arange(2 * H, 3 * H)])
    wih_t = jnp.transpose(w_ih[perm]).astype(jnp.float32)     # (in, 4H)
    whh_t = jnp.transpose(w_hh[perm]).astype(jnp.float32)     # (H, 4H)
    bias = (b_ih + b_hh)[perm].reshape(1, 4 * H).astype(jnp.float32)
    return wih_t, whh_t, bias


def jennie_jisoo_forward(x_btf, params):
    """x_btf: (B, T, N_MFCC) batch_first, as in the PyTorch module."""
    assert BI_LSTM and LSTM_NUM_LAYERS == 2, "fused kernel specialized to config"
    B, T, F = x_btf.shape
    H = LSTM_HIDDEN_SIZE

    # layer 0 (input size F)
    w0 = [_prep_weights(*params[(0, d)], H) for d in range(2)]
    wih0 = jnp.stack([w[0] for w in w0])                      # (2, F, 4H)
    whh0 = jnp.stack([w[1] for w in w0])                      # (2, H, 4H)
    b0 = jnp.stack([w[2] for w in w0])                        # (2, 1, 4H)

    # layer 1 (input size 2H -> split into fwd / bwd halves)
    w1 = [_prep_weights(*params[(1, d)], H) for d in range(2)]
    wih1a = jnp.stack([w[0][:H] for w in w1])                 # (2, H, 4H)
    wih1b = jnp.stack([w[0][H:] for w in w1])                 # (2, H, 4H)
    whh1 = jnp.stack([w[1] for w in w1])                      # (2, H, 4H)
    b1 = jnp.stack([w[2] for w in w1])                        # (2, 1, 4H)

    # time-major, flattened over (T, B) so the input projection is one matmul
    x_flat = jnp.transpose(x_btf, (1, 0, 2)).reshape(T * B, F).astype(jnp.float32)

    vmem_specs = [pl.BlockSpec(memory_space=pltpu.MemorySpace.VMEM)
                  for _ in range(8)]
    return pl.pallas_call(
        functools.partial(_fused_bilstm_kernel, T=T, B=B, H=H,
                          aggregate_mean=FRAME_AGGREGATION_MEAN),
        out_shape=jax.ShapeDtypeStruct((B, 2 * H), jnp.float32),
        in_specs=vmem_specs,
        out_specs=pl.BlockSpec(memory_space=pltpu.MemorySpace.VMEM),
        scratch_shapes=[
            pltpu.VMEM((T * B, H), jnp.float32),              # layer-0 fwd h_t
            pltpu.VMEM((T * B, H), jnp.float32),              # layer-0 bwd h_t
        ],
    )(x_flat, wih0, whh0, b0, wih1a, wih1b, whh1, b1)


# ----------------------------------------------------------------------------
# Parameter init (deterministic, PyTorch-style U(-1/sqrt(H), 1/sqrt(H)))
# ----------------------------------------------------------------------------
def init_lstm_params(key, input_size, hidden_size, num_layers, bidirectional):
    D = 2 if bidirectional else 1
    k = 1.0 / jnp.sqrt(hidden_size)
    params = {}
    for layer in range(num_layers):
        in_sz = input_size if layer == 0 else D * hidden_size
        for direction in range(D):
            key, k1, k2, k3, k4 = jax.random.split(key, 5)
            params[(layer, direction)] = (
                jax.random.uniform(k1, (4 * hidden_size, in_sz), jnp.float32, -k, k),
                jax.random.uniform(k2, (4 * hidden_size, hidden_size), jnp.float32, -k, k),
                jax.random.uniform(k3, (4 * hidden_size,), jnp.float32, -k, k),
                jax.random.uniform(k4, (4 * hidden_size,), jnp.float32, -k, k),
            )
    return params


# ----------------------------------------------------------------------------
# Pure-JAX reference (lax.scan LSTM, PyTorch [i,f,g,o] gate order)
# ----------------------------------------------------------------------------
def _ref_lstm_layer(x_tbi, w_ih, w_hh, b_ih, b_hh):
    H = w_hh.shape[1]

    def step(carry, x_t):
        h, c = carry
        gates = x_t @ w_ih.T + h @ w_hh.T + b_ih + b_hh
        i = jax.nn.sigmoid(gates[:, 0 * H:1 * H])
        f = jax.nn.sigmoid(gates[:, 1 * H:2 * H])
        g = jnp.tanh(gates[:, 2 * H:3 * H])
        o = jax.nn.sigmoid(gates[:, 3 * H:4 * H])
        c_new = f * c + i * g
        h_new = o * jnp.tanh(c_new)
        return (h_new, c_new), h_new

    B = x_tbi.shape[1]
    init = (jnp.zeros((B, H), jnp.float32), jnp.zeros((B, H), jnp.float32))
    _, ys = lax.scan(step, init, x_tbi)
    return ys


def ref_forward(x_btf, params):
    x = jnp.transpose(x_btf, (1, 0, 2)).astype(jnp.float32)
    D = 2 if BI_LSTM else 1
    for layer in range(LSTM_NUM_LAYERS):
        outs = []
        for direction in range(D):
            w_ih, w_hh, b_ih, b_hh = params[(layer, direction)]
            xin = x[::-1] if direction == 1 else x
            y = _ref_lstm_layer(xin, w_ih, w_hh, b_ih, b_hh)
            if direction == 1:
                y = y[::-1]
            outs.append(y)
        x = jnp.concatenate(outs, axis=-1)
    y_btd = jnp.transpose(x, (1, 0, 2))
    return jnp.mean(y_btd, axis=1) if FRAME_AGGREGATION_MEAN else y_btd[:, -1, :]


if __name__ == "__main__":
    key = jax.random.PRNGKey(0)
    pkey, xkey = jax.random.split(key)

    params = init_lstm_params(pkey, N_MFCC, LSTM_HIDDEN_SIZE,
                              LSTM_NUM_LAYERS, BI_LSTM)

    B, T = 2, 8   # NOTE: batch >= 8 would fill vreg sublanes; kept small per spec
    x = jax.random.normal(xkey, (B, T, N_MFCC), dtype=jnp.float32)

    fwd = jax.jit(jennie_jisoo_forward)
    out = jax.block_until_ready(fwd(x, params))
    assert out.shape == (B, (2 if BI_LSTM else 1) * LSTM_HIDDEN_SIZE), out.shape

    ref = jax.block_until_ready(jax.jit(ref_forward)(x, params))
    max_err = float(jnp.max(jnp.abs(out - ref)))
    assert jnp.allclose(out, ref, atol=1e-4, rtol=1e-4), max_err

    print("KERNEL_OK")
</pallas_src>

<mosaic_0001>
module attributes {stable_mosaic.version = 11 : i64} {
  func.func @_fused_bilstm_kernel(%arg0: memref<16x32xf32, #tpu.memory_space<vmem>>, %arg1: memref<2x32x128xf32, #tpu.memory_space<vmem>>, %arg2: memref<2x32x128xf32, #tpu.memory_space<vmem>>, %arg3: memref<2x1x128xf32, #tpu.memory_space<vmem>>, %arg4: memref<2x32x128xf32, #tpu.memory_space<vmem>>, %arg5: memref<2x32x128xf32, #tpu.memory_space<vmem>>, %arg6: memref<2x32x128xf32, #tpu.memory_space<vmem>>, %arg7: memref<2x1x128xf32, #tpu.memory_space<vmem>>, %arg8: memref<2x64xf32, #tpu.memory_space<vmem>>, %arg9: memref<16x32xf32, #tpu.memory_space<vmem>>, %arg10: memref<16x32xf32, #tpu.memory_space<vmem>>) attributes {dimension_semantics = [], scalar_prefetch = 0 : i64, scratch_operands = 2 : i64, tpu.core_type = #tpu.core_type<tc>} {
    %c0 = arith.constant 0 : index
    %c0_0 = arith.constant 0 : index
    %0 = vector.load %arg0[%c0, %c0_0] : memref<16x32xf32, #tpu.memory_space<vmem>>, vector<16x32xf32>
    %c0_1 = arith.constant 0 : index
    %c0_2 = arith.constant 0 : index
    %c0_3 = arith.constant 0 : index
    %1 = vector.load %arg1[%c0_1, %c0_2, %c0_3] : memref<2x32x128xf32, #tpu.memory_space<vmem>>, vector<1x32x128xf32>
    %2 = vector.shape_cast %1 : vector<1x32x128xf32> to vector<32x128xf32>
    %cst = arith.constant dense<0.000000e+00> : vector<16x128xf32>
    %3 = tpu.matmul %0, %2, %cst {dimension_numbers = #tpu.dot_dimension_numbers<[1], [0], [0], [1], [0, 0, 1, 1], [], []>} : vector<16x32xf32>, vector<32x128xf32>, vector<16x128xf32> -> vector<16x128xf32>
    %c0_4 = arith.constant 0 : index
    %c0_5 = arith.constant 0 : index
    %c0_6 = arith.constant 0 : index
    %4 = vector.load %arg3[%c0_4, %c0_5, %c0_6] : memref<2x1x128xf32, #tpu.memory_space<vmem>>, vector<1x1x128xf32>
    %5 = vector.shape_cast %4 : vector<1x1x128xf32> to vector<1x128xf32>
    %6 = vector.broadcast %5 : vector<1x128xf32> to vector<16x128xf32>
    %7 = arith.addf %3, %6 : vector<16x128xf32>
    %c1 = arith.constant 1 : index
    %c0_7 = arith.constant 0 : index
    %c0_8 = arith.constant 0 : index
    %8 = vector.load %arg1[%c1, %c0_7, %c0_8] : memref<2x32x128xf32, #tpu.memory_space<vmem>>, vector<1x32x128xf32>
    %9 = vector.shape_cast %8 : vector<1x32x128xf32> to vector<32x128xf32>
    %cst_9 = arith.constant dense<0.000000e+00> : vector<16x128xf32>
    %10 = tpu.matmul %0, %9, %cst_9 {dimension_numbers = #tpu.dot_dimension_numbers<[1], [0], [0], [1], [0, 0, 1, 1], [], []>} : vector<16x32xf32>, vector<32x128xf32>, vector<16x128xf32> -> vector<16x128xf32>
    %c1_10 = arith.constant 1 : index
    %c0_11 = arith.constant 0 : index
    %c0_12 = arith.constant 0 : index
    %11 = vector.load %arg3[%c1_10, %c0_11, %c0_12] : memref<2x1x128xf32, #tpu.memory_space<vmem>>, vector<1x1x128xf32>
    %12 = vector.shape_cast %11 : vector<1x1x128xf32> to vector<1x128xf32>
    %13 = vector.broadcast %12 : vector<1x128xf32> to vector<16x128xf32>
    %14 = arith.addf %10, %13 : vector<16x128xf32>
    %c0_13 = arith.constant 0 : index
    %c0_14 = arith.constant 0 : index
    %c0_15 = arith.constant 0 : index
    %15 = vector.load %arg2[%c0_13, %c0_14, %c0_15] : memref<2x32x128xf32, #tpu.memory_space<vmem>>, vector<1x32x128xf32>
    %16 = vector.shape_cast %15 : vector<1x32x128xf32> to vector<32x128xf32>
    %cst_16 = arith.constant 0.000000e+00 : f32
    %17 = vector.broadcast %cst_16 : f32 to vector<2x32xf32>
    %cst_17 = arith.constant 0.000000e+00 : f32
    %18 = vector.broadcast %cst_17 : f32 to vector<2x32xf32>
    %19 = vector.extract_strided_slice %7 {offsets = [0, 0], sizes = [2, 128], strides = [1, 1]} : vector<16x128xf32> to vector<2x128xf32>
    %cst_18 = arith.constant dense<0.000000e+00> : vector<2x128xf32>
    %20 = tpu.matmul %17, %16, %cst_18 {dimension_numbers = #tpu.dot_dimension_numbers<[1], [0], [0], [1], [0, 0, 1, 1], [], []>} : vector<2x32xf32>, vector<32x128xf32>, vector<2x128xf32> -> vector<2x128xf32>
    %21 = arith.addf %19, %20 : vector<2x128xf32>
    %22 = vector.extract_strided_slice %21 {offsets = [0, 0], sizes = [2, 96], strides = [1, 1]} : vector<2x128xf32> to vector<2x96xf32>
    %23 = arith.negf %22 : vector<2x96xf32>
    %24 = math.exp %23 : vector<2x96xf32>
    %cst_19 = arith.constant 1.000000e+00 : f32
    %25 = vector.broadcast %cst_19 : f32 to vector<2x96xf32>
    %26 = arith.addf %25, %24 : vector<2x96xf32>
    %27 = arith.divf %25, %26 : vector<2x96xf32>
    %28 = vector.extract_strided_slice %27 {offsets = [0, 0], sizes = [2, 32], strides = [1, 1]} : vector<2x96xf32> to vector<2x32xf32>
    %29 = vector.extract_strided_slice %27 {offsets = [0, 32], sizes = [2, 32], strides = [1, 1]} : vector<2x96xf32> to vector<2x32xf32>
    %30 = vector.extract_strided_slice %27 {offsets = [0, 64], sizes = [2, 32], strides = [1, 1]} : vector<2x96xf32> to vector<2x32xf32>
    %31 = vector.extract_strided_slice %21 {offsets = [0, 96], sizes = [2, 32], strides = [1, 1]} : vector<2x128xf32> to vector<2x32xf32>
    %32 = math.tanh %31 : vector<2x32xf32>
    %33 = arith.mulf %29, %18 : vector<2x32xf32>
    %34 = arith.mulf %28, %32 : vector<2x32xf32>
    %35 = arith.addf %33, %34 : vector<2x32xf32>
    %36 = math.tanh %35 : vector<2x32xf32>
    %37 = arith.mulf %30, %36 : vector<2x32xf32>
    %c0_20 = arith.constant 0 : index
    %c0_21 = arith.constant 0 : index
    %38 = vector.load %arg9[%c0_20, %c0_21] : memref<16x32xf32, #tpu.memory_space<vmem>>, vector<2x32xf32>
    tpu.vector_store %arg9[%c0_20, %c0_21], %37 {strides = array<i32>} : memref<16x32xf32, #tpu.memory_space<vmem>>, vector<2x32xf32>,
    %39 = vector.extract_strided_slice %7 {offsets = [2, 0], sizes = [2, 128], strides = [1, 1]} : vector<16x128xf32> to vector<2x128xf32>
    %cst_22 = arith.constant dense<0.000000e+00> : vector<2x128xf32>
    %40 = tpu.matmul %37, %16, %cst_22 {dimension_numbers = #tpu.dot_dimension_numbers<[1], [0], [0], [1], [0, 0, 1, 1], [], []>} : vector<2x32xf32>, vector<32x128xf32>, vector<2x128xf32> -> vector<2x128xf32>
    %41 = arith.addf %39, %40 : vector<2x128xf32>
    %42 = vector.extract_strided_slice %41 {offsets = [0, 0], sizes = [2, 96], strides = [1, 1]} : vector<2x128xf32> to vector<2x96xf32>
    %43 = arith.negf %42 : vector<2x96xf32>
    %44 = math.exp %43 : vector<2x96xf32>
    %cst_23 = arith.constant 1.000000e+00 : f32
    %45 = vector.broadcast %cst_23 : f32 to vector<2x96xf32>
    %46 = arith.addf %45, %44 : vector<2x96xf32>
    %47 = arith.divf %45, %46 : vector<2x96xf32>
    %48 = vector.extract_strided_slice %47 {offsets = [0, 0], sizes = [2, 32], strides = [1, 1]} : vector<2x96xf32> to vector<2x32xf32>
    %49 = vector.extract_strided_slice %47 {offsets = [0, 32], sizes = [2, 32], strides = [1, 1]} : vector<2x96xf32> to vector<2x32xf32>
    %50 = vector.extract_strided_slice %47 {offsets = [0, 64], sizes = [2, 32], strides = [1, 1]} : vector<2x96xf32> to vector<2x32xf32>
    %51 = vector.extract_strided_slice %41 {offsets = [0, 96], sizes = [2, 32], strides = [1, 1]} : vector<2x128xf32> to vector<2x32xf32>
    %52 = math.tanh %51 : vector<2x32xf32>
    %53 = arith.mulf %49, %35 : vector<2x32xf32>
    %54 = arith.mulf %48, %52 : vector<2x32xf32>
    %55 = arith.addf %53, %54 : vector<2x32xf32>
    %56 = math.tanh %55 : vector<2x32xf32>
    %57 = arith.mulf %50, %56 : vector<2x32xf32>
    %c2 = arith.constant 2 : index
    %c0_24 = arith.constant 0 : index
    %58 = vector.load %arg9[%c2, %c0_24] : memref<16x32xf32, #tpu.memory_space<vmem>>, vector<2x32xf32>
    tpu.vector_store %arg9[%c2, %c0_24], %57 {strides = array<i32>} : memref<16x32xf32, #tpu.memory_space<vmem>>, vector<2x32xf32>,
    %59 = vector.extract_strided_slice %7 {offsets = [4, 0], sizes = [2, 128], strides = [1, 1]} : vector<16x128xf32> to vector<2x128xf32>
    %cst_25 = arith.constant dense<0.000000e+00> : vector<2x128xf32>
    %60 = tpu.matmul %57, %16, %cst_25 {dimension_numbers = #tpu.dot_dimension_numbers<[1], [0], [0], [1], [0, 0, 1, 1], [], []>} : vector<2x32xf32>, vector<32x128xf32>, vector<2x128xf32> -> vector<2x128xf32>
    %61 = arith.addf %59, %60 : vector<2x128xf32>
    %62 = vector.extract_strided_slice %61 {offsets = [0, 0], sizes = [2, 96], strides = [1, 1]} : vector<2x128xf32> to vector<2x96xf32>
    %63 = arith.negf %62 : vector<2x96xf32>
    %64 = math.exp %63 : vector<2x96xf32>
    %cst_26 = arith.constant 1.000000e+00 : f32
    %65 = vector.broadcast %cst_26 : f32 to vector<2x96xf32>
    %66 = arith.addf %65, %64 : vector<2x96xf32>
    %67 = arith.divf %65, %66 : vector<2x96xf32>
    %68 = vector.extract_strided_slice %67 {offsets = [0, 0], sizes = [2, 32], strides = [1, 1]} : vector<2x96xf32> to vector<2x32xf32>
    %69 = vector.extract_strided_slice %67 {offsets = [0, 32], sizes = [2, 32], strides = [1, 1]} : vector<2x96xf32> to vector<2x32xf32>
    %70 = vector.extract_strided_slice %67 {offsets = [0, 64], sizes = [2, 32], strides = [1, 1]} : vector<2x96xf32> to vector<2x32xf32>
    %71 = vector.extract_strided_slice %61 {offsets = [0, 96], sizes = [2, 32], strides = [1, 1]} : vector<2x128xf32> to vector<2x32xf32>
    %72 = math.tanh %71 : vector<2x32xf32>
    %73 = arith.mulf %69, %55 : vector<2x32xf32>
    %74 = arith.mulf %68, %72 : vector<2x32xf32>
    %75 = arith.addf %73, %74 : vector<2x32xf32>
    %76 = math.tanh %75 : vector<2x32xf32>
    %77 = arith.mulf %70, %76 : vector<2x32xf32>
    %c4 = arith.constant 4 : index
    %c0_27 = arith.constant 0 : index
    %78 = vector.load %arg9[%c4, %c0_27] : memref<16x32xf32, #tpu.memory_space<vmem>>, vector<2x32xf32>
    tpu.vector_store %arg9[%c4, %c0_27], %77 {strides = array<i32>} : memref<16x32xf32, #tpu.memory_space<vmem>>, vector<2x32xf32>,
    %79 = vector.extract_strided_slice %7 {offsets = [6, 0], sizes = [2, 128], strides = [1, 1]} : vector<16x128xf32> to vector<2x128xf32>
    %cst_28 = arith.constant dense<0.000000e+00> : vector<2x128xf32>
    %80 = tpu.matmul %77, %16, %cst_28 {dimension_numbers = #tpu.dot_dimension_numbers<[1], [0], [0], [1], [0, 0, 1, 1], [], []>} : vector<2x32xf32>, vector<32x128xf32>, vector<2x128xf32> -> vector<2x128xf32>
    %81 = arith.addf %79, %80 : vector<2x128xf32>
    %82 = vector.extract_strided_slice %81 {offsets = [0, 0], sizes = [2, 96], strides = [1, 1]} : vector<2x128xf32> to vector<2x96xf32>
    %83 = arith.negf %82 : vector<2x96xf32>
    %84 = math.exp %83 : vector<2x96xf32>
    %cst_29 = arith.constant 1.000000e+00 : f32
    %85 = vector.broadcast %cst_29 : f32 to vector<2x96xf32>
    %86 = arith.addf %85, %84 : vector<2x96xf32>
    %87 = arith.divf %85, %86 : vector<2x96xf32>
    %88 = vector.extract_strided_slice %87 {offsets = [0, 0], sizes = [2, 32], strides = [1, 1]} : vector<2x96xf32> to vector<2x32xf32>
    %89 = vector.extract_strided_slice %87 {offsets = [0, 32], sizes = [2, 32], strides = [1, 1]} : vector<2x96xf32> to vector<2x32xf32>
    %90 = vector.extract_strided_slice %87 {offsets = [0, 64], sizes = [2, 32], strides = [1, 1]} : vector<2x96xf32> to vector<2x32xf32>
    %91 = vector.extract_strided_slice %81 {offsets = [0, 96], sizes = [2, 32], strides = [1, 1]} : vector<2x128xf32> to vector<2x32xf32>
    %92 = math.tanh %91 : vector<2x32xf32>
    %93 = arith.mulf %89, %75 : vector<2x32xf32>
    %94 = arith.mulf %88, %92 : vector<2x32xf32>
    %95 = arith.addf %93, %94 : vector<2x32xf32>
    %96 = math.tanh %95 : vector<2x32xf32>
    %97 = arith.mulf %90, %96 : vector<2x32xf32>
    %c6 = arith.constant 6 : index
    %c0_30 = arith.constant 0 : index
    %98 = vector.load %arg9[%c6, %c0_30] : memref<16x32xf32, #tpu.memory_space<vmem>>, vector<2x32xf32>
    tpu.vector_store %arg9[%c6, %c0_30], %97 {strides = array<i32>} : memref<16x32xf32, #tpu.memory_space<vmem>>, vector<2x32xf32>,
    %99 = vector.extract_strided_slice %7 {offsets = [8, 0], sizes = [2, 128], strides = [1, 1]} : vector<16x128xf32> to vector<2x128xf32>
    %cst_31 = arith.constant dense<0.000000e+00> : vector<2x128xf32>
    %100 = tpu.matmul %97, %16, %cst_31 {dimension_numbers = #tpu.dot_dimension_numbers<[1], [0], [0], [1], [0, 0, 1, 1], [], []>} : vector<2x32xf32>, vector<32x128xf32>, vector<2x128xf32> -> vector<2x128xf32>
    %101 = arith.addf %99, %100 : vector<2x128xf32>
    %102 = vector.extract_strided_slice %101 {offsets = [0, 0], sizes = [2, 96], strides = [1, 1]} : vector<2x128xf32> to vector<2x96xf32>
    %103 = arith.negf %102 : vector<2x96xf32>
    %104 = math.exp %103 : vector<2x96xf32>
    %cst_32 = arith.constant 1.000000e+00 : f32
    %105 = vector.broadcast %cst_32 : f32 to vector<2x96xf32>
    %106 = arith.addf %105, %104 : vector<2x96xf32>
    %107 = arith.divf %105, %106 : vector<2x96xf32>
    %108 = vector.extract_strided_slice %107 {offsets = [0, 0], sizes = [2, 32], strides = [1, 1]} : vector<2x96xf32> to vector<2x32xf32>
    %109 = vector.extract_strided_slice %107 {offsets = [0, 32], sizes = [2, 32], strides = [1, 1]} : vector<2x96xf32> to vector<2x32xf32>
    %110 = vector.extract_strided_slice %107 {offsets = [0, 64], sizes = [2, 32], strides = [1, 1]} : vector<2x96xf32> to vector<2x32xf32>
    %111 = vector.extract_strided_slice %101 {offsets = [0, 96], sizes = [2, 32], strides = [1, 1]} : vector<2x128xf32> to vector<2x32xf32>
    %112 = math.tanh %111 : vector<2x32xf32>
    %113 = arith.mulf %109, %95 : vector<2x32xf32>
    %114 = arith.mulf %108, %112 : vector<2x32xf32>
    %115 = arith.addf %113, %114 : vector<2x32xf32>
    %116 = math.tanh %115 : vector<2x32xf32>
    %117 = arith.mulf %110, %116 : vector<2x32xf32>
    %c8 = arith.constant 8 : index
    %c0_33 = arith.constant 0 : index
    %118 = vector.load %arg9[%c8, %c0_33] : memref<16x32xf32, #tpu.memory_space<vmem>>, vector<2x32xf32>
    tpu.vector_store %arg9[%c8, %c0_33], %117 {strides = array<i32>} : memref<16x32xf32, #tpu.memory_space<vmem>>, vector<2x32xf32>,
    %119 = vector.extract_strided_slice %7 {offsets = [10, 0], sizes = [2, 128], strides = [1, 1]} : vector<16x128xf32> to vector<2x128xf32>
    %cst_34 = arith.constant dense<0.000000e+00> : vector<2x128xf32>
    %120 = tpu.matmul %117, %16, %cst_34 {dimension_numbers = #tpu.dot_dimension_numbers<[1], [0], [0], [1], [0, 0, 1, 1], [], []>} : vector<2x32xf32>, vector<32x128xf32>, vector<2x128xf32> -> vector<2x128xf32>
    %121 = arith.addf %119, %120 : vector<2x128xf32>
    %122 = vector.extract_strided_slice %121 {offsets = [0, 0], sizes = [2, 96], strides = [1, 1]} : vector<2x128xf32> to vector<2x96xf32>
    %123 = arith.negf %122 : vector<2x96xf32>
    %124 = math.exp %123 : vector<2x96xf32>
    %cst_35 = arith.constant 1.000000e+00 : f32
    %125 = vector.broadcast %cst_35 : f32 to vector<2x96xf32>
    %126 = arith.addf %125, %124 : vector<2x96xf32>
    %127 = arith.divf %125, %126 : vector<2x96xf32>
    %128 = vector.extract_strided_slice %127 {offsets = [0, 0], sizes = [2, 32], strides = [1, 1]} : vector<2x96xf32> to vector<2x32xf32>
    %129 = vector.extract_strided_slice %127 {offsets = [0, 32], sizes = [2, 32], strides = [1, 1]} : vector<2x96xf32> to vector<2x32xf32>
    %130 = vector.extract_strided_slice %127 {offsets = [0, 64], sizes = [2, 32], strides = [1, 1]} : vector<2x96xf32> to vector<2x32xf32>
    %131 = vector.extract_strided_slice %121 {offsets = [0, 96], sizes = [2, 32], strides = [1, 1]} : vector<2x128xf32> to vector<2x32xf32>
    %132 = math.tanh %131 : vector<2x32xf32>
    %133 = arith.mulf %129, %115 : vector<2x32xf32>
    %134 = arith.mulf %128, %132 : vector<2x32xf32>
    %135 = arith.addf %133, %134 : vector<2x32xf32>
    %136 = math.tanh %135 : vector<2x32xf32>
    %137 = arith.mulf %130, %136 : vector<2x32xf32>
    %c10 = arith.constant 10 : index
    %c0_36 = arith.constant 0 : index
    %138 = vector.load %arg9[%c10, %c0_36] : memref<16x32xf32, #tpu.memory_space<vmem>>, vector<2x32xf32>
    tpu.vector_store %arg9[%c10, %c0_36], %137 {strides = array<i32>} : memref<16x32xf32, #tpu.memory_space<vmem>>, vector<2x32xf32>,
    %139 = vector.extract_strided_slice %7 {offsets = [12, 0], sizes = [2, 128], strides = [1, 1]} : vector<16x128xf32> to vector<2x128xf32>
    %cst_37 = arith.constant dense<0.000000e+00> : vector<2x128xf32>
    %140 = tpu.matmul %137, %16, %cst_37 {dimension_numbers = #tpu.dot_dimension_numbers<[1], [0], [0], [1], [0, 0, 1, 1], [], []>} : vector<2x32xf32>, vector<32x128xf32>, vector<2x128xf32> -> vector<2x128xf32>
    %141 = arith.addf %139, %140 : vector<2x128xf32>
    %142 = vector.extract_strided_slice %141 {offsets = [0, 0], sizes = [2, 96], strides = [1, 1]} : vector<2x128xf32> to vector<2x96xf32>
    %143 = arith.negf %142 : vector<2x96xf32>
    %144 = math.exp %143 : vector<2x96xf32>
    %cst_38 = arith.constant 1.000000e+00 : f32
    %145 = vector.broadcast %cst_38 : f32 to vector<2x96xf32>
    %146 = arith.addf %145, %144 : vector<2x96xf32>
    %147 = arith.divf %145, %146 : vector<2x96xf32>
    %148 = vector.extract_strided_slice %147 {offsets = [0, 0], sizes = [2, 32], strides = [1, 1]} : vector<2x96xf32> to vector<2x32xf32>
    %149 = vector.extract_strided_slice %147 {offsets = [0, 32], sizes = [2, 32], strides = [1, 1]} : vector<2x96xf32> to vector<2x32xf32>
    %150 = vector.extract_strided_slice %147 {offsets = [0, 64], sizes = [2, 32], strides = [1, 1]} : vector<2x96xf32> to vector<2x32xf32>
    %151 = vector.extract_strided_slice %141 {offsets = [0, 96], sizes = [2, 32], strides = [1, 1]} : vector<2x128xf32> to vector<2x32xf32>
    %152 = math.tanh %151 : vector<2x32xf32>
    %153 = arith.mulf %149, %135 : vector<2x32xf32>
    %154 = arith.mulf %148, %152 : vector<2x32xf32>
    %155 = arith.addf %153, %154 : vector<2x32xf32>
    %156 = math.tanh %155 : vector<2x32xf32>
    %157 = arith.mulf %150, %156 : vector<2x32xf32>
    %c12 = arith.constant 12 : index
    %c0_39 = arith.constant 0 : index
    %158 = vector.load %arg9[%c12, %c0_39] : memref<16x32xf32, #tpu.memory_space<vmem>>, vector<2x32xf32>
    tpu.vector_store %arg9[%c12, %c0_39], %157 {strides = array<i32>} : memref<16x32xf32, #tpu.memory_space<vmem>>, vector<2x32xf32>,
    %159 = vector.extract_strided_slice %7 {offsets = [14, 0], sizes = [2, 128], strides = [1, 1]} : vector<16x128xf32> to vector<2x128xf32>
    %cst_40 = arith.constant dense<0.000000e+00> : vector<2x128xf32>
    %160 = tpu.matmul %157, %16, %cst_40 {dimension_numbers = #tpu.dot_dimension_numbers<[1], [0], [0], [1], [0, 0, 1, 1], [], []>} : vector<2x32xf32>, vector<32x128xf32>, vector<2x128xf32> -> vector<2x128xf32>
    %161 = arith.addf %159, %160 : vector<2x128xf32>
    %162 = vector.extract_strided_slice %161 {offsets = [0, 0], sizes = [2, 96], strides = [1, 1]} : vector<2x128xf32> to vector<2x96xf32>
    %163 = arith.negf %162 : vector<2x96xf32>
    %164 = math.exp %163 : vector<2x96xf32>
    %cst_41 = arith.constant 1.000000e+00 : f32
    %165 = vector.broadcast %cst_41 : f32 to vector<2x96xf32>
    %166 = arith.addf %165, %164 : vector<2x96xf32>
    %167 = arith.divf %165, %166 : vector<2x96xf32>
    %168 = vector.extract_strided_slice %167 {offsets = [0, 0], sizes = [2, 32], strides = [1, 1]} : vector<2x96xf32> to vector<2x32xf32>
    %169 = vector.extract_strided_slice %167 {offsets = [0, 32], sizes = [2, 32], strides = [1, 1]} : vector<2x96xf32> to vector<2x32xf32>
    %170 = vector.extract_strided_slice %167 {offsets = [0, 64], sizes = [2, 32], strides = [1, 1]} : vector<2x96xf32> to vector<2x32xf32>
    %171 = vector.extract_strided_slice %161 {offsets = [0, 96], sizes = [2, 32], strides = [1, 1]} : vector<2x128xf32> to vector<2x32xf32>
    %172 = math.tanh %171 : vector<2x32xf32>
    %173 = arith.mulf %169, %155 : vector<2x32xf32>
    %174 = arith.mulf %168, %172 : vector<2x32xf32>
    %175 = arith.addf %173, %174 : vector<2x32xf32>
    %176 = math.tanh %175 : vector<2x32xf32>
    %177 = arith.mulf %170, %176 : vector<2x32xf32>
    %c14 = arith.constant 14 : index
    %c0_42 = arith.constant 0 : index
    %178 = vector.load %arg9[%c14, %c0_42] : memref<16x32xf32, #tpu.memory_space<vmem>>, vector<2x32xf32>
    tpu.vector_store %arg9[%c14, %c0_42], %177 {strides = array<i32>} : memref<16x32xf32, #tpu.memory_space<vmem>>, vector<2x32xf32>,
    %c1_43 = arith.constant 1 : index
    %c0_44 = arith.constant 0 : index
    %c0_45 = arith.constant 0 : index
    %179 = vector.load %arg2[%c1_43, %c0_44, %c0_45] : memref<2x32x128xf32, #tpu.memory_space<vmem>>, vector<1x32x128xf32>
    %180 = vector.shape_cast %179 : vector<1x32x128xf32> to vector<32x128xf32>
    %cst_46 = arith.constant 0.000000e+00 : f32
    %181 = vector.broadcast %cst_46 : f32 to vector<2x32xf32>
    %cst_47 = arith.constant 0.000000e+00 : f32
    %182 = vector.broadcast %cst_47 : f32 to vector<2x32xf32>
    %183 = vector.extract_strided_slice %14 {offsets = [14, 0], sizes = [2, 128], strides = [1, 1]} : vector<16x128xf32> to vector<2x128xf32>
    %cst_48 = arith.constant dense<0.000000e+00> : vector<2x128xf32>
    %184 = tpu.matmul %181, %180, %cst_48 {dimension_numbers = #tpu.dot_dimension_numbers<[1], [0], [0], [1], [0, 0, 1, 1], [], []>} : vector<2x32xf32>, vector<32x128xf32>, vector<2x128xf32> -> vector<2x128xf32>
    %185 = arith.addf %183, %184 : vector<2x128xf32>
    %186 = vector.extract_strided_slice %185 {offsets = [0, 0], sizes = [2, 96], strides = [1, 1]} : vector<2x128xf32> to vector<2x96xf32>
    %187 = arith.negf %186 : vector<2x96xf32>
    %188 = math.exp %187 : vector<2x96xf32>
    %cst_49 = arith.constant 1.000000e+00 : f32
    %189 = vector.broadcast %cst_49 : f32 to vector<2x96xf32>
    %190 = arith.addf %189, %188 : vector<2x96xf32>
    %191 = arith.divf %189, %190 : vector<2x96xf32>
    %192 = vector.extract_strided_slice %191 {offsets = [0, 0], sizes = [2, 32], strides = [1, 1]} : vector<2x96xf32> to vector<2x32xf32>
    %193 = vector.extract_strided_slice %191 {offsets = [0, 32], sizes = [2, 32], strides = [1, 1]} : vector<2x96xf32> to vector<2x32xf32>
    %194 = vector.extract_strided_slice %191 {offsets = [0, 64], sizes = [2, 32], strides = [1, 1]} : vector<2x96xf32> to vector<2x32xf32>
    %195 = vector.extract_strided_slice %185 {offsets = [0, 96], sizes = [2, 32], strides = [1, 1]} : vector<2x128xf32> to vector<2x32xf32>
    %196 = math.tanh %195 : vector<2x32xf32>
    %197 = arith.mulf %193, %182 : vector<2x32xf32>
    %198 = arith.mulf %192, %196 : vector<2x32xf32>
    %199 = arith.addf %197, %198 : vector<2x32xf32>
    %200 = math.tanh %199 : vector<2x32xf32>
    %201 = arith.mulf %194, %200 : vector<2x32xf32>
    %c14_50 = arith.constant 14 : index
    %c0_51 = arith.constant 0 : index
    %202 = vector.load %arg10[%c14_50, %c0_51] : memref<16x32xf32, #tpu.memory_space<vmem>>, vector<2x32xf32>
    tpu.vector_store %arg10[%c14_50, %c0_51], %201 {strides = array<i32>} : memref<16x32xf32, #tpu.memory_space<vmem>>, vector<2x32xf32>,
    %203 = vector.extract_strided_slice %14 {offsets = [12, 0], sizes = [2, 128], strides = [1, 1]} : vector<16x128xf32> to vector<2x128xf32>
    %cst_52 = arith.constant dense<0.000000e+00> : vector<2x128xf32>
    %204 = tpu.matmul %201, %180, %cst_52 {dimension_numbers = #tpu.dot_dimension_numbers<[1], [0], [0], [1], [0, 0, 1, 1], [], []>} : vector<2x32xf32>, vector<32x128xf32>, vector<2x128xf32> -> vector<2x128xf32>
    %205 = arith.addf %203, %204 : vector<2x128xf32>
    %206 = vector.extract_strided_slice %205 {offsets = [0, 0], sizes = [2, 96], strides = [1, 1]} : vector<2x128xf32> to vector<2x96xf32>
    %207 = arith.negf %206 : vector<2x96xf32>
    %208 = math.exp %207 : vector<2x96xf32>
    %cst_53 = arith.constant 1.000000e+00 : f32
    %209 = vector.broadcast %cst_53 : f32 to vector<2x96xf32>
    %210 = arith.addf %209, %208 : vector<2x96xf32>
    %211 = arith.divf %209, %210 : vector<2x96xf32>
    %212 = vector.extract_strided_slice %211 {offsets = [0, 0], sizes = [2, 32], strides = [1, 1]} : vector<2x96xf32> to vector<2x32xf32>
    %213 = vector.extract_strided_slice %211 {offsets = [0, 32], sizes = [2, 32], strides = [1, 1]} : vector<2x96xf32> to vector<2x32xf32>
    %214 = vector.extract_strided_slice %211 {offsets = [0, 64], sizes = [2, 32], strides = [1, 1]} : vector<2x96xf32> to vector<2x32xf32>
    %215 = vector.extract_strided_slice %205 {offsets = [0, 96], sizes = [2, 32], strides = [1, 1]} : vector<2x128xf32> to vector<2x32xf32>
    %216 = math.tanh %215 : vector<2x32xf32>
    %217 = arith.mulf %213, %199 : vector<2x32xf32>
    %218 = arith.mulf %212, %216 : vector<2x32xf32>
    %219 = arith.addf %217, %218 : vector<2x32xf32>
    %220 = math.tanh %219 : vector<2x32xf32>
    %221 = arith.mulf %214, %220 : vector<2x32xf32>
    %c12_54 = arith.constant 12 : index
    %c0_55 = arith.constant 0 : index
    %222 = vector.load %arg10[%c12_54, %c0_55] : memref<16x32xf32, #tpu.memory_space<vmem>>, vector<2x32xf32>
    tpu.vector_store %arg10[%c12_54, %c0_55], %221 {strides = array<i32>} : memref<16x32xf32, #tpu.memory_space<vmem>>, vector<2x32xf32>,
    %223 = vector.extract_strided_slice %14 {offsets = [10, 0], sizes = [2, 128], strides = [1, 1]} : vector<16x128xf32> to vector<2x128xf32>
    %cst_56 = arith.constant dense<0.000000e+00> : vector<2x128xf32>
    %224 = tpu.matmul %221, %180, %cst_56 {dimension_numbers = #tpu.dot_dimension_numbers<[1], [0], [0], [1], [0, 0, 1, 1], [], []>} : vector<2x32xf32>, vector<32x128xf32>, vector<2x128xf32> -> vector<2x128xf32>
    %225 = arith.addf %223, %224 : vector<2x128xf32>
    %226 = vector.extract_strided_slice %225 {offsets = [0, 0], sizes = [2, 96], strides = [1, 1]} : vector<2x128xf32> to vector<2x96xf32>
    %227 = arith.negf %226 : vector<2x96xf32>
    %228 = math.exp %227 : vector<2x96xf32>
    %cst_57 = arith.constant 1.000000e+00 : f32
    %229 = vector.broadcast %cst_57 : f32 to vector<2x96xf32>
    %230 = arith.addf %229, %228 : vector<2x96xf32>
    %231 = arith.divf %229, %230 : vector<2x96xf32>
    %232 = vector.extract_strided_slice %231 {offsets = [0, 0], sizes = [2, 32], strides = [1, 1]} : vector<2x96xf32> to vector<2x32xf32>
    %233 = vector.extract_strided_slice %231 {offsets = [0, 32], sizes = [2, 32], strides = [1, 1]} : vector<2x96xf32> to vector<2x32xf32>
    %234 = vector.extract_strided_slice %231 {offsets = [0, 64], sizes = [2, 32], strides = [1, 1]} : vector<2x96xf32> to vector<2x32xf32>
    %235 = vector.extract_strided_slice %225 {offsets = [0, 96], sizes = [2, 32], strides = [1, 1]} : vector<2x128xf32> to vector<2x32xf32>
    %236 = math.tanh %235 : vector<2x32xf32>
    %237 = arith.mulf %233, %219 : vector<2x32xf32>
    %238 = arith.mulf %232, %236 : vector<2x32xf32>
    %239 = arith.addf %237, %238 : vector<2x32xf32>
    %240 = math.tanh %239 : vector<2x32xf32>
    %241 = arith.mulf %234, %240 : vector<2x32xf32>
    %c10_58 = arith.constant 10 : index
    %c0_59 = arith.constant 0 : index
    %242 = vector.load %arg10[%c10_58, %c0_59] : memref<16x32xf32, #tpu.memory_space<vmem>>, vector<2x32xf32>
    tpu.vector_store %arg10[%c10_58, %c0_59], %241 {strides = array<i32>} : memref<16x32xf32, #tpu.memory_space<vmem>>, vector<2x32xf32>,
    %243 = vector.extract_strided_slice %14 {offsets = [8, 0], sizes = [2, 128], strides = [1, 1]} : vector<16x128xf32> to vector<2x128xf32>
    %cst_60 = arith.constant dense<0.000000e+00> : vector<2x128xf32>
    %244 = tpu.matmul %241, %180, %cst_60 {dimension_numbers = #tpu.dot_dimension_numbers<[1], [0], [0], [1], [0, 0, 1, 1], [], []>} : vector<2x32xf32>, vector<32x128xf32>, vector<2x128xf32> -> vector<2x128xf32>
    %245 = arith.addf %243, %244 : vector<2x128xf32>
    %246 = vector.extract_strided_slice %245 {offsets = [0, 0], sizes = [2, 96], strides = [1, 1]} : vector<2x128xf32> to vector<2x96xf32>
    %247 = arith.negf %246 : vector<2x96xf32>
    %248 = math.exp %247 : vector<2x96xf32>
    %cst_61 = arith.constant 1.000000e+00 : f32
    %249 = vector.broadcast %cst_61 : f32 to vector<2x96xf32>
    %250 = arith.addf %249, %248 : vector<2x96xf32>
    %251 = arith.divf %249, %250 : vector<2x96xf32>
    %252 = vector.extract_strided_slice %251 {offsets = [0, 0], sizes = [2, 32], strides = [1, 1]} : vector<2x96xf32> to vector<2x32xf32>
    %253 = vector.extract_strided_slice %251 {offsets = [0, 32], sizes = [2, 32], strides = [1, 1]} : vector<2x96xf32> to vector<2x32xf32>
    %254 = vector.extract_strided_slice %251 {offsets = [0, 64], sizes = [2, 32], strides = [1, 1]} : vector<2x96xf32> to vector<2x32xf32>
    %255 = vector.extract_strided_slice %245 {offsets = [0, 96], sizes = [2, 32], strides = [1, 1]} : vector<2x128xf32> to vector<2x32xf32>
    %256 = math.tanh %255 : vector<2x32xf32>
    %257 = arith.mulf %253, %239 : vector<2x32xf32>
    %258 = arith.mulf %252, %256 : vector<2x32xf32>
    %259 = arith.addf %257, %258 : vector<2x32xf32>
    %260 = math.tanh %259 : vector<2x32xf32>
    %261 = arith.mulf %254, %260 : vector<2x32xf32>
    %c8_62 = arith.constant 8 : index
    %c0_63 = arith.constant 0 : index
    %262 = vector.load %arg10[%c8_62, %c0_63] : memref<16x32xf32, #tpu.memory_space<vmem>>, vector<2x32xf32>
    tpu.vector_store %arg10[%c8_62, %c0_63], %261 {strides = array<i32>} : memref<16x32xf32, #tpu.memory_space<vmem>>, vector<2x32xf32>,
    %263 = vector.extract_strided_slice %14 {offsets = [6, 0], sizes = [2, 128], strides = [1, 1]} : vector<16x128xf32> to vector<2x128xf32>
    %cst_64 = arith.constant dense<0.000000e+00> : vector<2x128xf32>
    %264 = tpu.matmul %261, %180, %cst_64 {dimension_numbers = #tpu.dot_dimension_numbers<[1], [0], [0], [1], [0, 0, 1, 1], [], []>} : vector<2x32xf32>, vector<32x128xf32>, vector<2x128xf32> -> vector<2x128xf32>
    %265 = arith.addf %263, %264 : vector<2x128xf32>
    %266 = vector.extract_strided_slice %265 {offsets = [0, 0], sizes = [2, 96], strides = [1, 1]} : vector<2x128xf32> to vector<2x96xf32>
    %267 = arith.negf %266 : vector<2x96xf32>
    %268 = math.exp %267 : vector<2x96xf32>
    %cst_65 = arith.constant 1.000000e+00 : f32
    %269 = vector.broadcast %cst_65 : f32 to vector<2x96xf32>
    %270 = arith.addf %269, %268 : vector<2x96xf32>
    %271 = arith.divf %269, %270 : vector<2x96xf32>
    %272 = vector.extract_strided_slice %271 {offsets = [0, 0], sizes = [2, 32], strides = [1, 1]} : vector<2x96xf32> to vector<2x32xf32>
    %273 = vector.extract_strided_slice %271 {offsets = [0, 32], sizes = [2, 32], strides = [1, 1]} : vector<2x96xf32> to vector<2x32xf32>
    %274 = vector.extract_strided_slice %271 {offsets = [0, 64], sizes = [2, 32], strides = [1, 1]} : vector<2x96xf32> to vector<2x32xf32>
    %275 = vector.extract_strided_slice %265 {offsets = [0, 96], sizes = [2, 32], strides = [1, 1]} : vector<2x128xf32> to vector<2x32xf32>
    %276 = math.tanh %275 : vector<2x32xf32>
    %277 = arith.mulf %273, %259 : vector<2x32xf32>
    %278 = arith.mulf %272, %276 : vector<2x32xf32>
    %279 = arith.addf %277, %278 : vector<2x32xf32>
    %280 = math.tanh %279 : vector<2x32xf32>
    %281 = arith.mulf %274, %280 : vector<2x32xf32>
    %c6_66 = arith.constant 6 : index
    %c0_67 = arith.constant 0 : index
    %282 = vector.load %arg10[%c6_66, %c0_67] : memref<16x32xf32, #tpu.memory_space<vmem>>, vector<2x32xf32>
    tpu.vector_store %arg10[%c6_66, %c0_67], %281 {strides = array<i32>} : memref<16x32xf32, #tpu.memory_space<vmem>>, vector<2x32xf32>,
    %283 = vector.extract_strided_slice %14 {offsets = [4, 0], sizes = [2, 128], strides = [1, 1]} : vector<16x128xf32> to vector<2x128xf32>
    %cst_68 = arith.constant dense<0.000000e+00> : vector<2x128xf32>
    %284 = tpu.matmul %281, %180, %cst_68 {dimension_numbers = #tpu.dot_dimension_numbers<[1], [0], [0], [1], [0, 0, 1, 1], [], []>} : vector<2x32xf32>, vector<32x128xf32>, vector<2x128xf32> -> vector<2x128xf32>
    %285 = arith.addf %283, %284 : vector<2x128xf32>
    %286 = vector.extract_strided_slice %285 {offsets = [0, 0], sizes = [2, 96], strides = [1, 1]} : vector<2x128xf32> to vector<2x96xf32>
    %287 = arith.negf %286 : vector<2x96xf32>
    %288 = math.exp %287 : vector<2x96xf32>
    %cst_69 = arith.constant 1.000000e+00 : f32
    %289 = vector.broadcast %cst_69 : f32 to vector<2x96xf32>
    %290 = arith.addf %289, %288 : vector<2x96xf32>
    %291 = arith.divf %289, %290 : vector<2x96xf32>
    %292 = vector.extract_strided_slice %291 {offsets = [0, 0], sizes = [2, 32], strides = [1, 1]} : vector<2x96xf32> to vector<2x32xf32>
    %293 = vector.extract_strided_slice %291 {offsets = [0, 32], sizes = [2, 32], strides = [1, 1]} : vector<2x96xf32> to vector<2x32xf32>
    %294 = vector.extract_strided_slice %291 {offsets = [0, 64], sizes = [2, 32], strides = [1, 1]} : vector<2x96xf32> to vector<2x32xf32>
    %295 = vector.extract_strided_slice %285 {offsets = [0, 96], sizes = [2, 32], strides = [1, 1]} : vector<2x128xf32> to vector<2x32xf32>
    %296 = math.tanh %295 : vector<2x32xf32>
    %297 = arith.mulf %293, %279 : vector<2x32xf32>
    %298 = arith.mulf %292, %296 : vector<2x32xf32>
    %299 = arith.addf %297, %298 : vector<2x32xf32>
    %300 = math.tanh %299 : vector<2x32xf32>
    %301 = arith.mulf %294, %300 : vector<2x32xf32>
    %c4_70 = arith.constant 4 : index
    %c0_71 = arith.constant 0 : index
    %302 = vector.load %arg10[%c4_70, %c0_71] : memref<16x32xf32, #tpu.memory_space<vmem>>, vector<2x32xf32>
    tpu.vector_store %arg10[%c4_70, %c0_71], %301 {strides = array<i32>} : memref<16x32xf32, #tpu.memory_space<vmem>>, vector<2x32xf32>,
    %303 = vector.extract_strided_slice %14 {offsets = [2, 0], sizes = [2, 128], strides = [1, 1]} : vector<16x128xf32> to vector<2x128xf32>
    %cst_72 = arith.constant dense<0.000000e+00> : vector<2x128xf32>
    %304 = tpu.matmul %301, %180, %cst_72 {dimension_numbers = #tpu.dot_dimension_numbers<[1], [0], [0], [1], [0, 0, 1, 1], [], []>} : vector<2x32xf32>, vector<32x128xf32>, vector<2x128xf32> -> vector<2x128xf32>
    %305 = arith.addf %303, %304 : vector<2x128xf32>
    %306 = vector.extract_strided_slice %305 {offsets = [0, 0], sizes = [2, 96], strides = [1, 1]} : vector<2x128xf32> to vector<2x96xf32>
    %307 = arith.negf %306 : vector<2x96xf32>
    %308 = math.exp %307 : vector<2x96xf32>
    %cst_73 = arith.constant 1.000000e+00 : f32
    %309 = vector.broadcast %cst_73 : f32 to vector<2x96xf32>
    %310 = arith.addf %309, %308 : vector<2x96xf32>
    %311 = arith.divf %309, %310 : vector<2x96xf32>
    %312 = vector.extract_strided_slice %311 {offsets = [0, 0], sizes = [2, 32], strides = [1, 1]} : vector<2x96xf32> to vector<2x32xf32>
    %313 = vector.extract_strided_slice %311 {offsets = [0, 32], sizes = [2, 32], strides = [1, 1]} : vector<2x96xf32> to vector<2x32xf32>
    %314 = vector.extract_strided_slice %311 {offsets = [0, 64], sizes = [2, 32], strides = [1, 1]} : vector<2x96xf32> to vector<2x32xf32>
    %315 = vector.extract_strided_slice %305 {offsets = [0, 96], sizes = [2, 32], strides = [1, 1]} : vector<2x128xf32> to vector<2x32xf32>
    %316 = math.tanh %315 : vector<2x32xf32>
    %317 = arith.mulf %313, %299 : vector<2x32xf32>
    %318 = arith.mulf %312, %316 : vector<2x32xf32>
    %319 = arith.addf %317, %318 : vector<2x32xf32>
    %320 = math.tanh %319 : vector<2x32xf32>
    %321 = arith.mulf %314, %320 : vector<2x32xf32>
    %c2_74 = arith.constant 2 : index
    %c0_75 = arith.constant 0 : index
    %322 = vector.load %arg10[%c2_74, %c0_75] : memref<16x32xf32, #tpu.memory_space<vmem>>, vector<2x32xf32>
    tpu.vector_store %arg10[%c2_74, %c0_75], %321 {strides = array<i32>} : memref<16x32xf32, #tpu.memory_space<vmem>>, vector<2x32xf32>,
    %323 = vector.extract_strided_slice %14 {offsets = [0, 0], sizes = [2, 128], strides = [1, 1]} : vector<16x128xf32> to vector<2x128xf32>
    %cst_76 = arith.constant dense<0.000000e+00> : vector<2x128xf32>
    %324 = tpu.matmul %321, %180, %cst_76 {dimension_numbers = #tpu.dot_dimension_numbers<[1], [0], [0], [1], [0, 0, 1, 1], [], []>} : vector<2x32xf32>, vector<32x128xf32>, vector<2x128xf32> -> vector<2x128xf32>
    %325 = arith.addf %323, %324 : vector<2x128xf32>
    %326 = vector.extract_strided_slice %325 {offsets = [0, 0], sizes = [2, 96], strides = [1, 1]} : vector<2x128xf32> to vector<2x96xf32>
    %327 = arith.negf %326 : vector<2x96xf32>
    %328 = math.exp %327 : vector<2x96xf32>
    %cst_77 = arith.constant 1.000000e+00 : f32
    %329 = vector.broadcast %cst_77 : f32 to vector<2x96xf32>
    %330 = arith.addf %329, %328 : vector<2x96xf32>
    %331 = arith.divf %329, %330 : vector<2x96xf32>
    %332 = vector.extract_strided_slice %331 {offsets = [0, 0], sizes = [2, 32], strides = [1, 1]} : vector<2x96xf32> to vector<2x32xf32>
    %333 = vector.extract_strided_slice %331 {offsets = [0, 32], sizes = [2, 32], strides = [1, 1]} : vector<2x96xf32> to vector<2x32xf32>
    %334 = vector.extract_strided_slice %331 {offsets = [0, 64], sizes = [2, 32], strides = [1, 1]} : vector<2x96xf32> to vector<2x32xf32>
    %335 = vector.extract_strided_slice %325 {offsets = [0, 96], sizes = [2, 32], strides = [1, 1]} : vector<2x128xf32> to vector<2x32xf32>
    %336 = math.tanh %335 : vector<2x32xf32>
    %337 = arith.mulf %333, %319 : vector<2x32xf32>
    %338 = arith.mulf %332, %336 : vector<2x32xf32>
    %339 = arith.addf %337, %338 : vector<2x32xf32>
    %340 = math.tanh %339 : vector<2x32xf32>
    %341 = arith.mulf %334, %340 : vector<2x32xf32>
    %c0_78 = arith.constant 0 : index
    %c0_79 = arith.constant 0 : index
    %342 = vector.load %arg10[%c0_78, %c0_79] : memref<16x32xf32, #tpu.memory_space<vmem>>, vector<2x32xf32>
    tpu.vector_store %arg10[%c0_78, %c0_79], %341 {strides = array<i32>} : memref<16x32xf32, #tpu.memory_space<vmem>>, vector<2x32xf32>,
    %c0_80 = arith.constant 0 : index
    %c0_81 = arith.constant 0 : index
    %343 = vector.load %arg9[%c0_80, %c0_81] : memref<16x32xf32, #tpu.memory_space<vmem>>, vector<16x32xf32>
    %c0_82 = arith.constant 0 : index
    %c0_83 = arith.constant 0 : index
    %344 = vector.load %arg10[%c0_82, %c0_83] : memref<16x32xf32, #tpu.memory_space<vmem>>, vector<16x32xf32>
    %c0_84 = arith.constant 0 : index
    %c0_85 = arith.constant 0 : index
    %c0_86 = arith.constant 0 : index
    %345 = vector.load %arg4[%c0_84, %c0_85, %c0_86] : memref<2x32x128xf32, #tpu.memory_space<vmem>>, vector<1x32x128xf32>
    %346 = vector.shape_cast %345 : vector<1x32x128xf32> to vector<32x128xf32>
    %cst_87 = arith.constant dense<0.000000e+00> : vector<16x128xf32>
    %347 = tpu.matmul %343, %346, %cst_87 {dimension_numbers = #tpu.dot_dimension_numbers<[1], [0], [0], [1], [0, 0, 1, 1], [], []>} : vector<16x32xf32>, vector<32x128xf32>, vector<16x128xf32> -> vector<16x128xf32>
    %c0_88 = arith.constant 0 : index
    %c0_89 = arith.constant 0 : index
    %c0_90 = arith.constant 0 : index
    %348 = vector.load %arg5[%c0_88, %c0_89, %c0_90] : memref<2x32x128xf32, #tpu.memory_space<vmem>>, vector<1x32x128xf32>
    %349 = vector.shape_cast %348 : vector<1x32x128xf32> to vector<32x128xf32>
    %cst_91 = arith.constant dense<0.000000e+00> : vector<16x128xf32>
    %350 = tpu.matmul %344, %349, %cst_91 {dimension_numbers = #tpu.dot_dimension_numbers<[1], [0], [0], [1], [0, 0, 1, 1], [], []>} : vector<16x32xf32>, vector<32x128xf32>, vector<16x128xf32> -> vector<16x128xf32>
    %351 = arith.addf %347, %350 : vector<16x128xf32>
    %c0_92 = arith.constant 0 : index
    %c0_93 = arith.constant 0 : index
    %c0_94 = arith.constant 0 : index
    %352 = vector.load %arg7[%c0_92, %c0_93, %c0_94] : memref<2x1x128xf32, #tpu.memory_space<vmem>>, vector<1x1x128xf32>
    %353 = vector.shape_cast %352 : vector<1x1x128xf32> to vector<1x128xf32>
    %354 = vector.broadcast %353 : vector<1x128xf32> to vector<16x128xf32>
    %355 = arith.addf %351, %354 : vector<16x128xf32>
    %c1_95 = arith.constant 1 : index
    %c0_96 = arith.constant 0 : index
    %c0_97 = arith.constant 0 : index
    %356 = vector.load %arg4[%c1_95, %c0_96, %c0_97] : memref<2x32x128xf32, #tpu.memory_space<vmem>>, vector<1x32x128xf32>
    %357 = vector.shape_cast %356 : vector<1x32x128xf32> to vector<32x128xf32>
    %cst_98 = arith.constant dense<0.000000e+00> : vector<16x128xf32>
    %358 = tpu.matmul %343, %357, %cst_98 {dimension_numbers = #tpu.dot_dimension_numbers<[1], [0], [0], [1], [0, 0, 1, 1], [], []>} : vector<16x32xf32>, vector<32x128xf32>, vector<16x128xf32> -> vector<16x128xf32>
    %c1_99 = arith.constant 1 : index
    %c0_100 = arith.constant 0 : index
    %c0_101 = arith.constant 0 : index
    %359 = vector.load %arg5[%c1_99, %c0_100, %c0_101] : memref<2x32x128xf32, #tpu.memory_space<vmem>>, vector<1x32x128xf32>
    %360 = vector.shape_cast %359 : vector<1x32x128xf32> to vector<32x128xf32>
    %cst_102 = arith.constant dense<0.000000e+00> : vector<16x128xf32>
    %361 = tpu.matmul %344, %360, %cst_102 {dimension_numbers = #tpu.dot_dimension_numbers<[1], [0], [0], [1], [0, 0, 1, 1], [], []>} : vector<16x32xf32>, vector<32x128xf32>, vector<16x128xf32> -> vector<16x128xf32>
    %362 = arith.addf %358, %361 : vector<16x128xf32>
    %c1_103 = arith.constant 1 : index
    %c0_104 = arith.constant 0 : index
    %c0_105 = arith.constant 0 : index
    %363 = vector.load %arg7[%c1_103, %c0_104, %c0_105] : memref<2x1x128xf32, #tpu.memory_space<vmem>>, vector<1x1x128xf32>
    %364 = vector.shape_cast %363 : vector<1x1x128xf32> to vector<1x128xf32>
    %365 = vector.broadcast %364 : vector<1x128xf32> to vector<16x128xf32>
    %366 = arith.addf %362, %365 : vector<16x128xf32>
    %c0_106 = arith.constant 0 : index
    %c0_107 = arith.constant 0 : index
    %c0_108 = arith.constant 0 : index
    %367 = vector.load %arg6[%c0_106, %c0_107, %c0_108] : memref<2x32x128xf32, #tpu.memory_space<vmem>>, vector<1x32x128xf32>
    %368 = vector.shape_cast %367 : vector<1x32x128xf32> to vector<32x128xf32>
    %cst_109 = arith.constant 0.000000e+00 : f32
    %369 = vector.broadcast %cst_109 : f32 to vector<2x32xf32>
    %cst_110 = arith.constant 0.000000e+00 : f32
    %370 = vector.broadcast %cst_110 : f32 to vector<2x32xf32>
    %cst_111 = arith.constant 0.000000e+00 : f32
    %371 = vector.broadcast %cst_111 : f32 to vector<2x32xf32>
    %372 = vector.extract_strided_slice %355 {offsets = [0, 0], sizes = [2, 128], strides = [1, 1]} : vector<16x128xf32> to vector<2x128xf32>
    %cst_112 = arith.constant dense<0.000000e+00> : vector<2x128xf32>
    %373 = tpu.matmul %369, %368, %cst_112 {dimension_numbers = #tpu.dot_dimension_numbers<[1], [0], [0], [1], [0, 0, 1, 1], [], []>} : vector<2x32xf32>, vector<32x128xf32>, vector<2x128xf32> -> vector<2x128xf32>
    %374 = arith.addf %372, %373 : vector<2x128xf32>
    %375 = vector.extract_strided_slice %374 {offsets = [0, 0], sizes = [2, 96], strides = [1, 1]} : vector<2x128xf32> to vector<2x96xf32>
    %376 = arith.negf %375 : vector<2x96xf32>
    %377 = math.exp %376 : vector<2x96xf32>
    %cst_113 = arith.constant 1.000000e+00 : f32
    %378 = vector.broadcast %cst_113 : f32 to vector<2x96xf32>
    %379 = arith.addf %378, %377 : vector<2x96xf32>
    %380 = arith.divf %378, %379 : vector<2x96xf32>
    %381 = vector.extract_strided_slice %380 {offsets = [0, 0], sizes = [2, 32], strides = [1, 1]} : vector<2x96xf32> to vector<2x32xf32>
    %382 = vector.extract_strided_slice %380 {offsets = [0, 32], sizes = [2, 32], strides = [1, 1]} : vector<2x96xf32> to vector<2x32xf32>
    %383 = vector.extract_strided_slice %380 {offsets = [0, 64], sizes = [2, 32], strides = [1, 1]} : vector<2x96xf32> to vector<2x32xf32>
    %384 = vector.extract_strided_slice %374 {offsets = [0, 96], sizes = [2, 32], strides = [1, 1]} : vector<2x128xf32> to vector<2x32xf32>
    %385 = math.tanh %384 : vector<2x32xf32>
    %386 = arith.mulf %382, %370 : vector<2x32xf32>
    %387 = arith.mulf %381, %385 : vector<2x32xf32>
    %388 = arith.addf %386, %387 : vector<2x32xf32>
    %389 = math.tanh %388 : vector<2x32xf32>
    %390 = arith.mulf %383, %389 : vector<2x32xf32>
    %391 = arith.addf %371, %390 : vector<2x32xf32>
    %392 = vector.extract_strided_slice %355 {offsets = [2, 0], sizes = [2, 128], strides = [1, 1]} : vector<16x128xf32> to vector<2x128xf32>
    %cst_114 = arith.constant dense<0.000000e+00> : vector<2x128xf32>
    %393 = tpu.matmul %390, %368, %cst_114 {dimension_numbers = #tpu.dot_dimension_numbers<[1], [0], [0], [1], [0, 0, 1, 1], [], []>} : vector<2x32xf32>, vector<32x128xf32>, vector<2x128xf32> -> vector<2x128xf32>
    %394 = arith.addf %392, %393 : vector<2x128xf32>
    %395 = vector.extract_strided_slice %394 {offsets = [0, 0], sizes = [2, 96], strides = [1, 1]} : vector<2x128xf32> to vector<2x96xf32>
    %396 = arith.negf %395 : vector<2x96xf32>
    %397 = math.exp %396 : vector<2x96xf32>
    %cst_115 = arith.constant 1.000000e+00 : f32
    %398 = vector.broadcast %cst_115 : f32 to vector<2x96xf32>
    %399 = arith.addf %398, %397 : vector<2x96xf32>
    %400 = arith.divf %398, %399 : vector<2x96xf32>
    %401 = vector.extract_strided_slice %400 {offsets = [0, 0], sizes = [2, 32], strides = [1, 1]} : vector<2x96xf32> to vector<2x32xf32>
    %402 = vector.extract_strided_slice %400 {offsets = [0, 32], sizes = [2, 32], strides = [1, 1]} : vector<2x96xf32> to vector<2x32xf32>
    %403 = vector.extract_strided_slice %400 {offsets = [0, 64], sizes = [2, 32], strides = [1, 1]} : vector<2x96xf32> to vector<2x32xf32>
    %404 = vector.extract_strided_slice %394 {offsets = [0, 96], sizes = [2, 32], strides = [1, 1]} : vector<2x128xf32> to vector<2x32xf32>
    %405 = math.tanh %404 : vector<2x32xf32>
    %406 = arith.mulf %402, %388 : vector<2x32xf32>
    %407 = arith.mulf %401, %405 : vector<2x32xf32>
    %408 = arith.addf %406, %407 : vector<2x32xf32>
    %409 = math.tanh %408 : vector<2x32xf32>
    %410 = arith.mulf %403, %409 : vector<2x32xf32>
    %411 = arith.addf %391, %410 : vector<2x32xf32>
    %412 = vector.extract_strided_slice %355 {offsets = [4, 0], sizes = [2, 128], strides = [1, 1]} : vector<16x128xf32> to vector<2x128xf32>
    %cst_116 = arith.constant dense<0.000000e+00> : vector<2x128xf32>
    %413 = tpu.matmul %410, %368, %cst_116 {dimension_numbers = #tpu.dot_dimension_numbers<[1], [0], [0], [1], [0, 0, 1, 1], [], []>} : vector<2x32xf32>, vector<32x128xf32>, vector<2x128xf32> -> vector<2x128xf32>
    %414 = arith.addf %412, %413 : vector<2x128xf32>
    %415 = vector.extract_strided_slice %414 {offsets = [0, 0], sizes = [2, 96], strides = [1, 1]} : vector<2x128xf32> to vector<2x96xf32>
    %416 = arith.negf %415 : vector<2x96xf32>
    %417 = math.exp %416 : vector<2x96xf32>
    %cst_117 = arith.constant 1.000000e+00 : f32
    %418 = vector.broadcast %cst_117 : f32 to vector<2x96xf32>
    %419 = arith.addf %418, %417 : vector<2x96xf32>
    %420 = arith.divf %418, %419 : vector<2x96xf32>
    %421 = vector.extract_strided_slice %420 {offsets = [0, 0], sizes = [2, 32], strides = [1, 1]} : vector<2x96xf32> to vector<2x32xf32>
    %422 = vector.extract_strided_slice %420 {offsets = [0, 32], sizes = [2, 32], strides = [1, 1]} : vector<2x96xf32> to vector<2x32xf32>
    %423 = vector.extract_strided_slice %420 {offsets = [0, 64], sizes = [2, 32], strides = [1, 1]} : vector<2x96xf32> to vector<2x32xf32>
    %424 = vector.extract_strided_slice %414 {offsets = [0, 96], sizes = [2, 32], strides = [1, 1]} : vector<2x128xf32> to vector<2x32xf32>
    %425 = math.tanh %424 : vector<2x32xf32>
    %426 = arith.mulf %422, %408 : vector<2x32xf32>
    %427 = arith.mulf %421, %425 : vector<2x32xf32>
    %428 = arith.addf %426, %427 : vector<2x32xf32>
    %429 = math.tanh %428 : vector<2x32xf32>
    %430 = arith.mulf %423, %429 : vector<2x32xf32>
    %431 = arith.addf %411, %430 : vector<2x32xf32>
    %432 = vector.extract_strided_slice %355 {offsets = [6, 0], sizes = [2, 128], strides = [1, 1]} : vector<16x128xf32> to vector<2x128xf32>
    %cst_118 = arith.constant dense<0.000000e+00> : vector<2x128xf32>
    %433 = tpu.matmul %430, %368, %cst_118 {dimension_numbers = #tpu.dot_dimension_numbers<[1], [0], [0], [1], [0, 0, 1, 1], [], []>} : vector<2x32xf32>, vector<32x128xf32>, vector<2x128xf32> -> vector<2x128xf32>
    %434 = arith.addf %432, %433 : vector<2x128xf32>
    %435 = vector.extract_strided_slice %434 {offsets = [0, 0], sizes = [2, 96], strides = [1, 1]} : vector<2x128xf32> to vector<2x96xf32>
    %436 = arith.negf %435 : vector<2x96xf32>
    %437 = math.exp %436 : vector<2x96xf32>
    %cst_119 = arith.constant 1.000000e+00 : f32
    %438 = vector.broadcast %cst_119 : f32 to vector<2x96xf32>
    %439 = arith.addf %438, %437 : vector<2x96xf32>
    %440 = arith.divf %438, %439 : vector<2x96xf32>
    %441 = vector.extract_strided_slice %440 {offsets = [0, 0], sizes = [2, 32], strides = [1, 1]} : vector<2x96xf32> to vector<2x32xf32>
    %442 = vector.extract_strided_slice %440 {offsets = [0, 32], sizes = [2, 32], strides = [1, 1]} : vector<2x96xf32> to vector<2x32xf32>
    %443 = vector.extract_strided_slice %440 {offsets = [0, 64], sizes = [2, 32], strides = [1, 1]} : vector<2x96xf32> to vector<2x32xf32>
    %444 = vector.extract_strided_slice %434 {offsets = [0, 96], sizes = [2, 32], strides = [1, 1]} : vector<2x128xf32> to vector<2x32xf32>
    %445 = math.tanh %444 : vector<2x32xf32>
    %446 = arith.mulf %442, %428 : vector<2x32xf32>
    %447 = arith.mulf %441, %445 : vector<2x32xf32>
    %448 = arith.addf %446, %447 : vector<2x32xf32>
    %449 = math.tanh %448 : vector<2x32xf32>
    %450 = arith.mulf %443, %449 : vector<2x32xf32>
    %451 = arith.addf %431, %450 : vector<2x32xf32>
    %452 = vector.extract_strided_slice %355 {offsets = [8, 0], sizes = [2, 128], strides = [1, 1]} : vector<16x128xf32> to vector<2x128xf32>
    %cst_120 = arith.constant dense<0.000000e+00> : vector<2x128xf32>
    %453 = tpu.matmul %450, %368, %cst_120 {dimension_numbers = #tpu.dot_dimension_numbers<[1], [0], [0], [1], [0, 0, 1, 1], [], []>} : vector<2x32xf32>, vector<32x128xf32>, vector<2x128xf32> -> vector<2x128xf32>
    %454 = arith.addf %452, %453 : vector<2x128xf32>
    %455 = vector.extract_strided_slice %454 {offsets = [0, 0], sizes = [2, 96], strides = [1, 1]} : vector<2x128xf32> to vector<2x96xf32>
    %456 = arith.negf %455 : vector<2x96xf32>
    %457 = math.exp %456 : vector<2x96xf32>
    %cst_121 = arith.constant 1.000000e+00 : f32
    %458 = vector.broadcast %cst_121 : f32 to vector<2x96xf32>
    %459 = arith.addf %458, %457 : vector<2x96xf32>
    %460 = arith.divf %458, %459 : vector<2x96xf32>
    %461 = vector.extract_strided_slice %460 {offsets = [0, 0], sizes = [2, 32], strides = [1, 1]} : vector<2x96xf32> to vector<2x32xf32>
    %462 = vector.extract_strided_slice %460 {offsets = [0, 32], sizes = [2, 32], strides = [1, 1]} : vector<2x96xf32> to vector<2x32xf32>
    %463 = vector.extract_strided_slice %460 {offsets = [0, 64], sizes = [2, 32], strides = [1, 1]} : vector<2x96xf32> to vector<2x32xf32>
    %464 = vector.extract_strided_slice %454 {offsets = [0, 96], sizes = [2, 32], strides = [1, 1]} : vector<2x128xf32> to vector<2x32xf32>
    %465 = math.tanh %464 : vector<2x32xf32>
    %466 = arith.mulf %462, %448 : vector<2x32xf32>
    %467 = arith.mulf %461, %465 : vector<2x32xf32>
    %468 = arith.addf %466, %467 : vector<2x32xf32>
    %469 = math.tanh %468 : vector<2x32xf32>
    %470 = arith.mulf %463, %469 : vector<2x32xf32>
    %471 = arith.addf %451, %470 : vector<2x32xf32>
    %472 = vector.extract_strided_slice %355 {offsets = [10, 0], sizes = [2, 128], strides = [1, 1]} : vector<16x128xf32> to vector<2x128xf32>
    %cst_122 = arith.constant dense<0.000000e+00> : vector<2x128xf32>
    %473 = tpu.matmul %470, %368, %cst_122 {dimension_numbers = #tpu.dot_dimension_numbers<[1], [0], [0], [1], [0, 0, 1, 1], [], []>} : vector<2x32xf32>, vector<32x128xf32>, vector<2x128xf32> -> vector<2x128xf32>
    %474 = arith.addf %472, %473 : vector<2x128xf32>
    %475 = vector.extract_strided_slice %474 {offsets = [0, 0], sizes = [2, 96], strides = [1, 1]} : vector<2x128xf32> to vector<2x96xf32>
    %476 = arith.negf %475 : vector<2x96xf32>
    %477 = math.exp %476 : vector<2x96xf32>
    %cst_123 = arith.constant 1.000000e+00 : f32
    %478 = vector.broadcast %cst_123 : f32 to vector<2x96xf32>
    %479 = arith.addf %478, %477 : vector<2x96xf32>
    %480 = arith.divf %478, %479 : vector<2x96xf32>
    %481 = vector.extract_strided_slice %480 {offsets = [0, 0], sizes = [2, 32], strides = [1, 1]} : vector<2x96xf32> to vector<2x32xf32>
    %482 = vector.extract_strided_slice %480 {offsets = [0, 32], sizes = [2, 32], strides = [1, 1]} : vector<2x96xf32> to vector<2x32xf32>
    %483 = vector.extract_strided_slice %480 {offsets = [0, 64], sizes = [2, 32], strides = [1, 1]} : vector<2x96xf32> to vector<2x32xf32>
    %484 = vector.extract_strided_slice %474 {offsets = [0, 96], sizes = [2, 32], strides = [1, 1]} : vector<2x128xf32> to vector<2x32xf32>
    %485 = math.tanh %484 : vector<2x32xf32>
    %486 = arith.mulf %482, %468 : vector<2x32xf32>
    %487 = arith.mulf %481, %485 : vector<2x32xf32>
    %488 = arith.addf %486, %487 : vector<2x32xf32>
    %489 = math.tanh %488 : vector<2x32xf32>
    %490 = arith.mulf %483, %489 : vector<2x32xf32>
    %491 = arith.addf %471, %490 : vector<2x32xf32>
    %492 = vector.extract_strided_slice %355 {offsets = [12, 0], sizes = [2, 128], strides = [1, 1]} : vector<16x128xf32> to vector<2x128xf32>
    %cst_124 = arith.constant dense<0.000000e+00> : vector<2x128xf32>
    %493 = tpu.matmul %490, %368, %cst_124 {dimension_numbers = #tpu.dot_dimension_numbers<[1], [0], [0], [1], [0, 0, 1, 1], [], []>} : vector<2x32xf32>, vector<32x128xf32>, vector<2x128xf32> -> vector<2x128xf32>
    %494 = arith.addf %492, %493 : vector<2x128xf32>
    %495 = vector.extract_strided_slice %494 {offsets = [0, 0], sizes = [2, 96], strides = [1, 1]} : vector<2x128xf32> to vector<2x96xf32>
    %496 = arith.negf %495 : vector<2x96xf32>
    %497 = math.exp %496 : vector<2x96xf32>
    %cst_125 = arith.constant 1.000000e+00 : f32
    %498 = vector.broadcast %cst_125 : f32 to vector<2x96xf32>
    %499 = arith.addf %498, %497 : vector<2x96xf32>
    %500 = arith.divf %498, %499 : vector<2x96xf32>
    %501 = vector.extract_strided_slice %500 {offsets = [0, 0], sizes = [2, 32], strides = [1, 1]} : vector<2x96xf32> to vector<2x32xf32>
    %502 = vector.extract_strided_slice %500 {offsets = [0, 32], sizes = [2, 32], strides = [1, 1]} : vector<2x96xf32> to vector<2x32xf32>
    %503 = vector.extract_strided_slice %500 {offsets = [0, 64], sizes = [2, 32], strides = [1, 1]} : vector<2x96xf32> to vector<2x32xf32>
    %504 = vector.extract_strided_slice %494 {offsets = [0, 96], sizes = [2, 32], strides = [1, 1]} : vector<2x128xf32> to vector<2x32xf32>
    %505 = math.tanh %504 : vector<2x32xf32>
    %506 = arith.mulf %502, %488 : vector<2x32xf32>
    %507 = arith.mulf %501, %505 : vector<2x32xf32>
    %508 = arith.addf %506, %507 : vector<2x32xf32>
    %509 = math.tanh %508 : vector<2x32xf32>
    %510 = arith.mulf %503, %509 : vector<2x32xf32>
    %511 = arith.addf %491, %510 : vector<2x32xf32>
    %512 = vector.extract_strided_slice %355 {offsets = [14, 0], sizes = [2, 128], strides = [1, 1]} : vector<16x128xf32> to vector<2x128xf32>
    %cst_126 = arith.constant dense<0.000000e+00> : vector<2x128xf32>
    %513 = tpu.matmul %510, %368, %cst_126 {dimension_numbers = #tpu.dot_dimension_numbers<[1], [0], [0], [1], [0, 0, 1, 1], [], []>} : vector<2x32xf32>, vector<32x128xf32>, vector<2x128xf32> -> vector<2x128xf32>
    %514 = arith.addf %512, %513 : vector<2x128xf32>
    %515 = vector.extract_strided_slice %514 {offsets = [0, 0], sizes = [2, 96], strides = [1, 1]} : vector<2x128xf32> to vector<2x96xf32>
    %516 = arith.negf %515 : vector<2x96xf32>
    %517 = math.exp %516 : vector<2x96xf32>
    %cst_127 = arith.constant 1.000000e+00 : f32
    %518 = vector.broadcast %cst_127 : f32 to vector<2x96xf32>
    %519 = arith.addf %518, %517 : vector<2x96xf32>
    %520 = arith.divf %518, %519 : vector<2x96xf32>
    %521 = vector.extract_strided_slice %520 {offsets = [0, 0], sizes = [2, 32], strides = [1, 1]} : vector<2x96xf32> to vector<2x32xf32>
    %522 = vector.extract_strided_slice %520 {offsets = [0, 32], sizes = [2, 32], strides = [1, 1]} : vector<2x96xf32> to vector<2x32xf32>
    %523 = vector.extract_strided_slice %520 {offsets = [0, 64], sizes = [2, 32], strides = [1, 1]} : vector<2x96xf32> to vector<2x32xf32>
    %524 = vector.extract_strided_slice %514 {offsets = [0, 96], sizes = [2, 32], strides = [1, 1]} : vector<2x128xf32> to vector<2x32xf32>
    %525 = math.tanh %524 : vector<2x32xf32>
    %526 = arith.mulf %522, %508 : vector<2x32xf32>
    %527 = arith.mulf %521, %525 : vector<2x32xf32>
    %528 = arith.addf %526, %527 : vector<2x32xf32>
    %529 = math.tanh %528 : vector<2x32xf32>
    %530 = arith.mulf %523, %529 : vector<2x32xf32>
    %531 = arith.addf %511, %530 : vector<2x32xf32>
    %c1_128 = arith.constant 1 : index
    %c0_129 = arith.constant 0 : index
    %c0_130 = arith.constant 0 : index
    %532 = vector.load %arg6[%c1_128, %c0_129, %c0_130] : memref<2x32x128xf32, #tpu.memory_space<vmem>>, vector<1x32x128xf32>
    %533 = vector.shape_cast %532 : vector<1x32x128xf32> to vector<32x128xf32>
    %cst_131 = arith.constant 0.000000e+00 : f32
    %534 = vector.broadcast %cst_131 : f32 to vector<2x32xf32>
    %cst_132 = arith.constant 0.000000e+00 : f32
    %535 = vector.broadcast %cst_132 : f32 to vector<2x32xf32>
    %cst_133 = arith.constant 0.000000e+00 : f32
    %536 = vector.broadcast %cst_133 : f32 to vector<2x32xf32>
    %537 = vector.extract_strided_slice %366 {offsets = [14, 0], sizes = [2, 128], strides = [1, 1]} : vector<16x128xf32> to vector<2x128xf32>
    %cst_134 = arith.constant dense<0.000000e+00> : vector<2x128xf32>
    %538 = tpu.matmul %534, %533, %cst_134 {dimension_numbers = #tpu.dot_dimension_numbers<[1], [0], [0], [1], [0, 0, 1, 1], [], []>} : vector<2x32xf32>, vector<32x128xf32>, vector<2x128xf32> -> vector<2x128xf32>
    %539 = arith.addf %537, %538 : vector<2x128xf32>
    %540 = vector.extract_strided_slice %539 {offsets = [0, 0], sizes = [2, 96], strides = [1, 1]} : vector<2x128xf32> to vector<2x96xf32>
    %541 = arith.negf %540 : vector<2x96xf32>
    %542 = math.exp %541 : vector<2x96xf32>
    %cst_135 = arith.constant 1.000000e+00 : f32
    %543 = vector.broadcast %cst_135 : f32 to vector<2x96xf32>
    %544 = arith.addf %543, %542 : vector<2x96xf32>
    %545 = arith.divf %543, %544 : vector<2x96xf32>
    %546 = vector.extract_strided_slice %545 {offsets = [0, 0], sizes = [2, 32], strides = [1, 1]} : vector<2x96xf32> to vector<2x32xf32>
    %547 = vector.extract_strided_slice %545 {offsets = [0, 32], sizes = [2, 32], strides = [1, 1]} : vector<2x96xf32> to vector<2x32xf32>
    %548 = vector.extract_strided_slice %545 {offsets = [0, 64], sizes = [2, 32], strides = [1, 1]} : vector<2x96xf32> to vector<2x32xf32>
    %549 = vector.extract_strided_slice %539 {offsets = [0, 96], sizes = [2, 32], strides = [1, 1]} : vector<2x128xf32> to vector<2x32xf32>
    %550 = math.tanh %549 : vector<2x32xf32>
    %551 = arith.mulf %547, %535 : vector<2x32xf32>
    %552 = arith.mulf %546, %550 : vector<2x32xf32>
    %553 = arith.addf %551, %552 : vector<2x32xf32>
    %554 = math.tanh %553 : vector<2x32xf32>
    %555 = arith.mulf %548, %554 : vector<2x32xf32>
    %556 = arith.addf %536, %555 : vector<2x32xf32>
    %557 = vector.extract_strided_slice %366 {offsets = [12, 0], sizes = [2, 128], strides = [1, 1]} : vector<16x128xf32> to vector<2x128xf32>
    %cst_136 = arith.constant dense<0.000000e+00> : vector<2x128xf32>
    %558 = tpu.matmul %555, %533, %cst_136 {dimension_numbers = #tpu.dot_dimension_numbers<[1], [0], [0], [1], [0, 0, 1, 1], [], []>} : vector<2x32xf32>, vector<32x128xf32>, vector<2x128xf32> -> vector<2x128xf32>
    %559 = arith.addf %557, %558 : vector<2x128xf32>
    %560 = vector.extract_strided_slice %559 {offsets = [0, 0], sizes = [2, 96], strides = [1, 1]} : vector<2x128xf32> to vector<2x96xf32>
    %561 = arith.negf %560 : vector<2x96xf32>
    %562 = math.exp %561 : vector<2x96xf32>
    %cst_137 = arith.constant 1.000000e+00 : f32
    %563 = vector.broadcast %cst_137 : f32 to vector<2x96xf32>
    %564 = arith.addf %563, %562 : vector<2x96xf32>
    %565 = arith.divf %563, %564 : vector<2x96xf32>
    %566 = vector.extract_strided_slice %565 {offsets = [0, 0], sizes = [2, 32], strides = [1, 1]} : vector<2x96xf32> to vector<2x32xf32>
    %567 = vector.extract_strided_slice %565 {offsets = [0, 32], sizes = [2, 32], strides = [1, 1]} : vector<2x96xf32> to vector<2x32xf32>
    %568 = vector.extract_strided_slice %565 {offsets = [0, 64], sizes = [2, 32], strides = [1, 1]} : vector<2x96xf32> to vector<2x32xf32>
    %569 = vector.extract_strided_slice %559 {offsets = [0, 96], sizes = [2, 32], strides = [1, 1]} : vector<2x128xf32> to vector<2x32xf32>
    %570 = math.tanh %569 : vector<2x32xf32>
    %571 = arith.mulf %567, %553 : vector<2x32xf32>
    %572 = arith.mulf %566, %570 : vector<2x32xf32>
    %573 = arith.addf %571, %572 : vector<2x32xf32>
    %574 = math.tanh %573 : vector<2x32xf32>
    %575 = arith.mulf %568, %574 : vector<2x32xf32>
    %576 = arith.addf %556, %575 : vector<2x32xf32>
    %577 = vector.extract_strided_slice %366 {offsets = [10, 0], sizes = [2, 128], strides = [1, 1]} : vector<16x128xf32> to vector<2x128xf32>
    %cst_138 = arith.constant dense<0.000000e+00> : vector<2x128xf32>
    %578 = tpu.matmul %575, %533, %cst_138 {dimension_numbers = #tpu.dot_dimension_numbers<[1], [0], [0], [1], [0, 0, 1, 1], [], []>} : vector<2x32xf32>, vector<32x128xf32>, vector<2x128xf32> -> vector<2x128xf32>
    %579 = arith.addf %577, %578 : vector<2x128xf32>
    %580 = vector.extract_strided_slice %579 {offsets = [0, 0], sizes = [2, 96], strides = [1, 1]} : vector<2x128xf32> to vector<2x96xf32>
    %581 = arith.negf %580 : vector<2x96xf32>
    %582 = math.exp %581 : vector<2x96xf32>
    %cst_139 = arith.constant 1.000000e+00 : f32
    %583 = vector.broadcast %cst_139 : f32 to vector<2x96xf32>
    %584 = arith.addf %583, %582 : vector<2x96xf32>
    %585 = arith.divf %583, %584 : vector<2x96xf32>
    %586 = vector.extract_strided_slice %585 {offsets = [0, 0], sizes = [2, 32], strides = [1, 1]} : vector<2x96xf32> to vector<2x32xf32>
    %587 = vector.extract_strided_slice %585 {offsets = [0, 32], sizes = [2, 32], strides = [1, 1]} : vector<2x96xf32> to vector<2x32xf32>
    %588 = vector.extract_strided_slice %585 {offsets = [0, 64], sizes = [2, 32], strides = [1, 1]} : vector<2x96xf32> to vector<2x32xf32>
    %589 = vector.extract_strided_slice %579 {offsets = [0, 96], sizes = [2, 32], strides = [1, 1]} : vector<2x128xf32> to vector<2x32xf32>
    %590 = math.tanh %589 : vector<2x32xf32>
    %591 = arith.mulf %587, %573 : vector<2x32xf32>
    %592 = arith.mulf %586, %590 : vector<2x32xf32>
    %593 = arith.addf %591, %592 : vector<2x32xf32>
    %594 = math.tanh %593 : vector<2x32xf32>
    %595 = arith.mulf %588, %594 : vector<2x32xf32>
    %596 = arith.addf %576, %595 : vector<2x32xf32>
    %597 = vector.extract_strided_slice %366 {offsets = [8, 0], sizes = [2, 128], strides = [1, 1]} : vector<16x128xf32> to vector<2x128xf32>
    %cst_140 = arith.constant dense<0.000000e+00> : vector<2x128xf32>
    %598 = tpu.matmul %595, %533, %cst_140 {dimension_numbers = #tpu.dot_dimension_numbers<[1], [0], [0], [1], [0, 0, 1, 1], [], []>} : vector<2x32xf32>, vector<32x128xf32>, vector<2x128xf32> -> vector<2x128xf32>
    %599 = arith.addf %597, %598 : vector<2x128xf32>
    %600 = vector.extract_strided_slice %599 {offsets = [0, 0], sizes = [2, 96], strides = [1, 1]} : vector<2x128xf32> to vector<2x96xf32>
    %601 = arith.negf %600 : vector<2x96xf32>
    %602 = math.exp %601 : vector<2x96xf32>
    %cst_141 = arith.constant 1.000000e+00 : f32
    %603 = vector.broadcast %cst_141 : f32 to vector<2x96xf32>
    %604 = arith.addf %603, %602 : vector<2x96xf32>
    %605 = arith.divf %603, %604 : vector<2x96xf32>
    %606 = vector.extract_strided_slice %605 {offsets = [0, 0], sizes = [2, 32], strides = [1, 1]} : vector<2x96xf32> to vector<2x32xf32>
    %607 = vector.extract_strided_slice %605 {offsets = [0, 32], sizes = [2, 32], strides = [1, 1]} : vector<2x96xf32> to vector<2x32xf32>
    %608 = vector.extract_strided_slice %605 {offsets = [0, 64], sizes = [2, 32], strides = [1, 1]} : vector<2x96xf32> to vector<2x32xf32>
    %609 = vector.extract_strided_slice %599 {offsets = [0, 96], sizes = [2, 32], strides = [1, 1]} : vector<2x128xf32> to vector<2x32xf32>
    %610 = math.tanh %609 : vector<2x32xf32>
    %611 = arith.mulf %607, %593 : vector<2x32xf32>
    %612 = arith.mulf %606, %610 : vector<2x32xf32>
    %613 = arith.addf %611, %612 : vector<2x32xf32>
    %614 = math.tanh %613 : vector<2x32xf32>
    %615 = arith.mulf %608, %614 : vector<2x32xf32>
    %616 = arith.addf %596, %615 : vector<2x32xf32>
    %617 = vector.extract_strided_slice %366 {offsets = [6, 0], sizes = [2, 128], strides = [1, 1]} : vector<16x128xf32> to vector<2x128xf32>
    %cst_142 = arith.constant dense<0.000000e+00> : vector<2x128xf32>
    %618 = tpu.matmul %615, %533, %cst_142 {dimension_numbers = #tpu.dot_dimension_numbers<[1], [0], [0], [1], [0, 0, 1, 1], [], []>} : vector<2x32xf32>, vector<32x128xf32>, vector<2x128xf32> -> vector<2x128xf32>
    %619 = arith.addf %617, %618 : vector<2x128xf32>
    %620 = vector.extract_strided_slice %619 {offsets = [0, 0], sizes = [2, 96], strides = [1, 1]} : vector<2x128xf32> to vector<2x96xf32>
    %621 = arith.negf %620 : vector<2x96xf32>
    %622 = math.exp %621 : vector<2x96xf32>
    %cst_143 = arith.constant 1.000000e+00 : f32
    %623 = vector.broadcast %cst_143 : f32 to vector<2x96xf32>
    %624 = arith.addf %623, %622 : vector<2x96xf32>
    %625 = arith.divf %623, %624 : vector<2x96xf32>
    %626 = vector.extract_strided_slice %625 {offsets = [0, 0], sizes = [2, 32], strides = [1, 1]} : vector<2x96xf32> to vector<2x32xf32>
    %627 = vector.extract_strided_slice %625 {offsets = [0, 32], sizes = [2, 32], strides = [1, 1]} : vector<2x96xf32> to vector<2x32xf32>
    %628 = vector.extract_strided_slice %625 {offsets = [0, 64], sizes = [2, 32], strides = [1, 1]} : vector<2x96xf32> to vector<2x32xf32>
    %629 = vector.extract_strided_slice %619 {offsets = [0, 96], sizes = [2, 32], strides = [1, 1]} : vector<2x128xf32> to vector<2x32xf32>
    %630 = math.tanh %629 : vector<2x32xf32>
    %631 = arith.mulf %627, %613 : vector<2x32xf32>
    %632 = arith.mulf %626, %630 : vector<2x32xf32>
    %633 = arith.addf %631, %632 : vector<2x32xf32>
    %634 = math.tanh %633 : vector<2x32xf32>
    %635 = arith.mulf %628, %634 : vector<2x32xf32>
    %636 = arith.addf %616, %635 : vector<2x32xf32>
    %637 = vector.extract_strided_slice %366 {offsets = [4, 0], sizes = [2, 128], strides = [1, 1]} : vector<16x128xf32> to vector<2x128xf32>
    %cst_144 = arith.constant dense<0.000000e+00> : vector<2x128xf32>
    %638 = tpu.matmul %635, %533, %cst_144 {dimension_numbers = #tpu.dot_dimension_numbers<[1], [0], [0], [1], [0, 0, 1, 1], [], []>} : vector<2x32xf32>, vector<32x128xf32>, vector<2x128xf32> -> vector<2x128xf32>
    %639 = arith.addf %637, %638 : vector<2x128xf32>
    %640 = vector.extract_strided_slice %639 {offsets = [0, 0], sizes = [2, 96], strides = [1, 1]} : vector<2x128xf32> to vector<2x96xf32>
    %641 = arith.negf %640 : vector<2x96xf32>
    %642 = math.exp %641 : vector<2x96xf32>
    %cst_145 = arith.constant 1.000000e+00 : f32
    %643 = vector.broadcast %cst_145 : f32 to vector<2x96xf32>
    %644 = arith.addf %643, %642 : vector<2x96xf32>
    %645 = arith.divf %643, %644 : vector<2x96xf32>
    %646 = vector.extract_strided_slice %645 {offsets = [0, 0], sizes = [2, 32], strides = [1, 1]} : vector<2x96xf32> to vector<2x32xf32>
    %647 = vector.extract_strided_slice %645 {offsets = [0, 32], sizes = [2, 32], strides = [1, 1]} : vector<2x96xf32> to vector<2x32xf32>
    %648 = vector.extract_strided_slice %645 {offsets = [0, 64], sizes = [2, 32], strides = [1, 1]} : vector<2x96xf32> to vector<2x32xf32>
    %649 = vector.extract_strided_slice %639 {offsets = [0, 96], sizes = [2, 32], strides = [1, 1]} : vector<2x128xf32> to vector<2x32xf32>
    %650 = math.tanh %649 : vector<2x32xf32>
    %651 = arith.mulf %647, %633 : vector<2x32xf32>
    %652 = arith.mulf %646, %650 : vector<2x32xf32>
    %653 = arith.addf %651, %652 : vector<2x32xf32>
    %654 = math.tanh %653 : vector<2x32xf32>
    %655 = arith.mulf %648, %654 : vector<2x32xf32>
    %656 = arith.addf %636, %655 : vector<2x32xf32>
    %657 = vector.extract_strided_slice %366 {offsets = [2, 0], sizes = [2, 128], strides = [1, 1]} : vector<16x128xf32> to vector<2x128xf32>
    %cst_146 = arith.constant dense<0.000000e+00> : vector<2x128xf32>
    %658 = tpu.matmul %655, %533, %cst_146 {dimension_numbers = #tpu.dot_dimension_numbers<[1], [0], [0], [1], [0, 0, 1, 1], [], []>} : vector<2x32xf32>, vector<32x128xf32>, vector<2x128xf32> -> vector<2x128xf32>
    %659 = arith.addf %657, %658 : vector<2x128xf32>
    %660 = vector.extract_strided_slice %659 {offsets = [0, 0], sizes = [2, 96], strides = [1, 1]} : vector<2x128xf32> to vector<2x96xf32>
    %661 = arith.negf %660 : vector<2x96xf32>
    %662 = math.exp %661 : vector<2x96xf32>
    %cst_147 = arith.constant 1.000000e+00 : f32
    %663 = vector.broadcast %cst_147 : f32 to vector<2x96xf32>
    %664 = arith.addf %663, %662 : vector<2x96xf32>
    %665 = arith.divf %663, %664 : vector<2x96xf32>
    %666 = vector.extract_strided_slice %665 {offsets = [0, 0], sizes = [2, 32], strides = [1, 1]} : vector<2x96xf32> to vector<2x32xf32>
    %667 = vector.extract_strided_slice %665 {offsets = [0, 32], sizes = [2, 32], strides = [1, 1]} : vector<2x96xf32> to vector<2x32xf32>
    %668 = vector.extract_strided_slice %665 {offsets = [0, 64], sizes = [2, 32], strides = [1, 1]} : vector<2x96xf32> to vector<2x32xf32>
    %669 = vector.extract_strided_slice %659 {offsets = [0, 96], sizes = [2, 32], strides = [1, 1]} : vector<2x128xf32> to vector<2x32xf32>
    %670 = math.tanh %669 : vector<2x32xf32>
    %671 = arith.mulf %667, %653 : vector<2x32xf32>
    %672 = arith.mulf %666, %670 : vector<2x32xf32>
    %673 = arith.addf %671, %672 : vector<2x32xf32>
    %674 = math.tanh %673 : vector<2x32xf32>
    %675 = arith.mulf %668, %674 : vector<2x32xf32>
    %676 = arith.addf %656, %675 : vector<2x32xf32>
    %677 = vector.extract_strided_slice %366 {offsets = [0, 0], sizes = [2, 128], strides = [1, 1]} : vector<16x128xf32> to vector<2x128xf32>
    %cst_148 = arith.constant dense<0.000000e+00> : vector<2x128xf32>
    %678 = tpu.matmul %675, %533, %cst_148 {dimension_numbers = #tpu.dot_dimension_numbers<[1], [0], [0], [1], [0, 0, 1, 1], [], []>} : vector<2x32xf32>, vector<32x128xf32>, vector<2x128xf32> -> vector<2x128xf32>
    %679 = arith.addf %677, %678 : vector<2x128xf32>
    %680 = vector.extract_strided_slice %679 {offsets = [0, 0], sizes = [2, 96], strides = [1, 1]} : vector<2x128xf32> to vector<2x96xf32>
    %681 = arith.negf %680 : vector<2x96xf32>
    %682 = math.exp %681 : vector<2x96xf32>
    %cst_149 = arith.constant 1.000000e+00 : f32
    %683 = vector.broadcast %cst_149 : f32 to vector<2x96xf32>
    %684 = arith.addf %683, %682 : vector<2x96xf32>
    %685 = arith.divf %683, %684 : vector<2x96xf32>
    %686 = vector.extract_strided_slice %685 {offsets = [0, 0], sizes = [2, 32], strides = [1, 1]} : vector<2x96xf32> to vector<2x32xf32>
    %687 = vector.extract_strided_slice %685 {offsets = [0, 32], sizes = [2, 32], strides = [1, 1]} : vector<2x96xf32> to vector<2x32xf32>
    %688 = vector.extract_strided_slice %685 {offsets = [0, 64], sizes = [2, 32], strides = [1, 1]} : vector<2x96xf32> to vector<2x32xf32>
    %689 = vector.extract_strided_slice %679 {offsets = [0, 96], sizes = [2, 32], strides = [1, 1]} : vector<2x128xf32> to vector<2x32xf32>
    %690 = math.tanh %689 : vector<2x32xf32>
    %691 = arith.mulf %687, %673 : vector<2x32xf32>
    %692 = arith.mulf %686, %690 : vector<2x32xf32>
    %693 = arith.addf %691, %692 : vector<2x32xf32>
    %694 = math.tanh %693 : vector<2x32xf32>
    %695 = arith.mulf %688, %694 : vector<2x32xf32>
    %696 = arith.addf %676, %695 : vector<2x32xf32>
    %cst_150 = arith.constant 1.250000e-01 : f32
    %697 = vector.broadcast %cst_150 : f32 to vector<2x32xf32>
    %698 = arith.mulf %531, %697 : vector<2x32xf32>
    %cst_151 = arith.constant 1.250000e-01 : f32
    %699 = vector.broadcast %cst_151 : f32 to vector<2x32xf32>
    %700 = arith.mulf %696, %699 : vector<2x32xf32>
    %c0_152 = arith.constant 0 : index
    %c0_153 = arith.constant 0 : index
    %701 = vector.load %arg8[%c0_152, %c0_153] : memref<2x64xf32, #tpu.memory_space<vmem>>, vector<2x32xf32>
    tpu.vector_store %arg8[%c0_152, %c0_153], %698 {strides = array<i32>} : memref<2x64xf32, #tpu.memory_space<vmem>>, vector<2x32xf32>,
    %c0_154 = arith.constant 0 : index
    %c32 = arith.constant 32 : index
    %702 = vector.load %arg8[%c0_154, %c32] : memref<2x64xf32, #tpu.memory_space<vmem>>, vector<2x32xf32>
    tpu.vector_store %arg8[%c0_154, %c32], %700 {strides = array<i32>} : memref<2x64xf32, #tpu.memory_space<vmem>>, vector<2x32xf32>,
    return
  }
}

</mosaic_0001>

<llo_original>
// kernel: jennie_jisoo_forward.1
$region0: #{jennie_jisoo_forward.1}
  #allocation0 [shape = 'u32[]', space=smem, size = 0x4, offset = 0x4, fixed_abs, tag = 'smem constant byte address 0x4 - core index']
  #allocation1 [shape = 'u32[144,128]{1,0:T(1,128)}', space=vmem, size = 0x12000, scoped, tag = 'internal scratch']
  #allocation2 [shape = 'f32[16,32]{1,0:T(8,128)}', space=vmem, size = 0x2000, scoped, tag = 'scratch operand']
  #allocation3 [shape = 'f32[16,32]{1,0:T(8,128)}', space=vmem, size = 0x2000, scoped, tag = 'scratch operand']
  %s0 = inlined_call_operand.vmem [shape: f32[16,32], index: 0, kind: input, shape index: {}]
  %s1 = inlined_call_operand.vmem [shape: f32[2,32,128], index: 1, kind: input, shape index: {}]
  %s2 = inlined_call_operand.vmem [shape: f32[2,32,128], index: 2, kind: input, shape index: {}]
  %s3 = inlined_call_operand.vmem [shape: f32[2,1,128], index: 3, kind: input, shape index: {}]
  %s4 = inlined_call_operand.vmem [shape: f32[2,32,128], index: 4, kind: input, shape index: {}]
  %s5 = inlined_call_operand.vmem [shape: f32[2,32,128], index: 5, kind: input, shape index: {}]
  %s6 = inlined_call_operand.vmem [shape: f32[2,32,128], index: 6, kind: input, shape index: {}]
  %s7 = inlined_call_operand.vmem [shape: f32[2,1,128], index: 7, kind: input, shape index: {}]
  %s8 = inlined_call_operand.hbm [shape: f32[2,64], index: 8, kind: output, shape index: {}]
  %s9 = sld [smem:[#allocation0]]
  $region42: #{jennie_jisoo_forward.1} parent=0
    _
  %s11 = ssub.s32 1, %s9
  %s12 = scalar_select 0, %s11, %s9
  $region1: #{jennie_jisoo_forward.1} parent=0
    #allocation4 [shape = 'u8[1024]{0}', space=vmem, size = 0x400, scoped, tag = 'output window, operand 0, single buffered']
    #allocation5 [shape = 's32[1]{0}', space=sflag, size = 0x4, scoped, tag = 'scoped memory for jennie_jisoo_forward.1']
    %13 = vsyncpa [#allocation5], 0
    // Predicated region
    $region2: #{jennie_jisoo_forward.1} parent=1 // pred_check
      _
    $region3: #{jennie_jisoo_forward.1} parent=1 // pred_check_branch
      %15 = sbr.rel (0) target = $region5
    $region4: #{jennie_jisoo_forward.1} parent=1 // pred_region
      _
    $region5: #{jennie_jisoo_forward.1} parent=1 // pred_fallthru
      _
    // Predicated region
    $region6: #{jennie_jisoo_forward.1} parent=1 // pred_check
      _
    $region7: #{jennie_jisoo_forward.1} parent=1 // pred_check_branch
      %17 = sbr.rel (0) target = $region9
    $region8: #{jennie_jisoo_forward.1} parent=1 // pred_region
      _
    $region9: #{jennie_jisoo_forward.1} parent=1 // pred_fallthru
      _
    // Predicated region
    $region10: #{jennie_jisoo_forward.1} parent=1 // pred_check
      _
    $region11: #{jennie_jisoo_forward.1} parent=1 // pred_check_branch
      %19 = sbr.rel (0) target = $region13
    $region12: #{jennie_jisoo_forward.1} parent=1 // pred_region
      _
    $region13: #{jennie_jisoo_forward.1} parent=1 // pred_fallthru
      _
    // Predicated region
    $region14: #{jennie_jisoo_forward.1} parent=1 // pred_check
      _
    $region15: #{jennie_jisoo_forward.1} parent=1 // pred_check_branch
      %21 = sbr.rel (0) target = $region17
    $region16: #{jennie_jisoo_forward.1} parent=1 // pred_region
      _
    $region17: #{jennie_jisoo_forward.1} parent=1 // pred_fallthru
      _
    // Predicated region
    $region18: #{jennie_jisoo_forward.1} parent=1 // pred_check
      _
    $region19: #{jennie_jisoo_forward.1} parent=1 // pred_check_branch
      %23 = sbr.rel (0) target = $region21
    $region20: #{jennie_jisoo_forward.1} parent=1 // pred_region
      _
    $region21: #{jennie_jisoo_forward.1} parent=1 // pred_fallthru
      _
    // Predicated region
    $region22: #{jennie_jisoo_forward.1} parent=1 // pred_check
      _
    $region23: #{jennie_jisoo_forward.1} parent=1 // pred_check_branch
      %25 = sbr.rel (0) target = $region25
    $region24: #{jennie_jisoo_forward.1} parent=1 // pred_region
      _
    $region25: #{jennie_jisoo_forward.1} parent=1 // pred_fallthru
      _
    // Predicated region
    $region26: #{jennie_jisoo_forward.1} parent=1 // pred_check
      _
    $region27: #{jennie_jisoo_forward.1} parent=1 // pred_check_branch
      %27 = sbr.rel (0) target = $region29
    $region28: #{jennie_jisoo_forward.1} parent=1 // pred_region
      _
    $region29: #{jennie_jisoo_forward.1} parent=1 // pred_fallthru
      _
    // Predicated region
    $region30: #{jennie_jisoo_forward.1} parent=1 // pred_check
      _
    $region31: #{jennie_jisoo_forward.1} parent=1 // pred_check_branch
      %29 = sbr.rel (0) target = $region33
    $region32: #{jennie_jisoo_forward.1} parent=1 // pred_region
      _
    $region33: #{jennie_jisoo_forward.1} parent=1 // pred_fallthru
      _
    %v30 = vld [vmem:[%s0] sm:$0xff]
    %v31 = vld [vmem:[%s0 + $0x8] sm:$0xff]
    %v32 = vld [vmem:[%s1] sm:$0xff]
    %v33 = vld [vmem:[%s1 + $0x8] sm:$0xff]
    %v34 = vld [vmem:[%s1 + $0x10] sm:$0xff]
    %v35 = vld [vmem:[%s1 + $0x18] sm:$0xff]
    %v36 = vld [vmem:[%s3] sm:$0x1]
    %v38 = vlaneseq
    %v39 = vshrl.u32 %v38, 7
    %v40 = vsub.s32 0, %v39
    %v41 = vrot.slane %v36, %v40
    %vm43 = vcmask 261120
    %v45 = vsel %vm43, %v30, 0
    %v48 = vsel %vm43, %v31, 0
    %50 = vmatprep.subr.mxu0 0.0
    %51 = vmatpush1.msra.mxu0 %v32
    %52 = vmatprep.subr.mxu0 0.0
    %53 = vmatpush1.msra.mxu0 %v33
    %54 = vmatprep.subr.mxu0 0.0
    %55 = vmatpush1.msra.mxu0 %v34
    %56 = vmatprep.subr.mxu0 0.0
    %57 = vmatpush1.msra.mxu0 %v35
    %58 = vmatprep.subr.mxu0 0.0
    %59 = vmatpush1.msra.mxu0 0.0
    %60 = vmatprep.subr.mxu0 0.0
    %61 = vmatpush1.msra.mxu0 0.0
    %62 = vmatprep.subr.mxu0 0.0
    %63 = vmatpush1.msra.mxu0 0.0
    %64 = vmatprep.subr.mxu0 0.0
    %65 = vmatpush1.msra.mxu0 0.0
    %66 = vmatprep.subr.mxu0 0.0
    %67 = vmatpush1.msra.mxu0 0.0
    %68 = vmatprep.subr.mxu0 0.0
    %69 = vmatpush1.msra.mxu0 0.0
    %70 = vmatprep.subr.mxu0 0.0
    %71 = vmatpush1.msra.mxu0 0.0
    %72 = vmatprep.subr.mxu0 0.0
    %73 = vmatpush1.msra.mxu0 0.0
    %74 = vmatprep.subr.mxu0 0.0
    %75 = vmatpush1.msra.mxu0 0.0
    %76 = vmatprep.subr.mxu0 0.0
    %77 = vmatpush1.msra.mxu0 0.0
    %78 = vmatprep.subr.mxu0 0.0
    %79 = vmatpush1.msra.mxu0 0.0
    %80 = vmatprep.subr.mxu0 0.0
    %81 = vmatpush1.msra.mxu0 0.0
    %82 = vmatprep.subr.mxu0 0.0
    %83 = vmatpush1.msra.mxu0 0.0
    %84 = vmatprep.subr.mxu0 0.0
    %85 = vmatpush1.msra.mxu0 0.0
    %86 = vmatprep.subr.mxu0 0.0
    %87 = vmatpush1.msra.mxu0 0.0
    %88 = vmatprep.subr.mxu0 0.0
    %89 = vmatpush1.msra.mxu0 0.0
    %90 = vmatprep.subr.mxu0 0.0
    %91 = vmatpush1.msra.mxu0 0.0
    %92 = vmatprep.subr.mxu0 0.0
    %93 = vmatpush1.msra.mxu0 0.0
    %94 = vmatprep.subr.mxu0 0.0
    %95 = vmatpush1.msra.mxu0 0.0
    %96 = vmatprep.subr.mxu0 0.0
    %97 = vmatpush1.msra.mxu0 0.0
    %98 = vmatprep.subr.mxu0 0.0
    %99 = vmatpush1.msra.mxu0 0.0
    %100 = vmatprep.subr.mxu0 0.0
    %101 = vmatpush1.msra.mxu0 0.0
    %102 = vmatprep.subr.mxu0 0.0
    %103 = vmatpush1.msra.mxu0 0.0
    %104 = vmatprep.subr.mxu0 0.0
    %105 = vmatpush1.msra.mxu0 0.0
    %106 = vmatprep.subr.mxu0 0.0
    %107 = vmatpush1.msra.mxu0 0.0
    %108 = vmatprep.subr.mxu0 0.0
    %109 = vmatpush1.msra.mxu0 0.0
    %110 = vmatprep.subr.mxu0 0.0
    %111 = vmatpush1.msra.mxu0 0.0
    %112 = vmatprep.subr.mxu0 0.0
    %113 = vmatpush1.msra.mxu0 0.0
    %114 = vmatprep.mubr.f32.mxu0 0.0
    %115 = vmatmul.mubr.f32.gmra.mrb[0].mxu0 %v45
    %v116 = vpop.f32.mrb[0].mxu0
    %v117 = vadd.f32 %v41, %v116
    %v118 = vpop.f32.mrb[0].mxu0
    %119 = vmatprep.mubr.f32.mxu0 0.0
    %120 = vmatmul.mubr.f32.gmra.mrb[0].mxu0 %v48
    %v121 = vpop.f32.mrb[0].mxu0
    %v122 = vadd.f32 %v41, %v121
    %v123 = vpop.f32.mrb[0].mxu0
    %124 = vdwg.mxu0
    %s125 = scalar_lea.vmem %s1, 32
    %v126 = vld [vmem:[%s125] sm:$0xff]
    %v127 = vld [vmem:[%s125 + $0x8] sm:$0xff]
    %v128 = vld [vmem:[%s125 + $0x10] sm:$0xff]
    %v129 = vld [vmem:[%s125 + $0x18] sm:$0xff]
    %s130 = scalar_lea.vmem %s3, 1
    %v131 = vld [vmem:[%s130] sm:$0x1]
    %v133 = vlaneseq
    %v134 = vshrl.u32 %v133, 7
    %v135 = vsub.s32 0, %v134
    %v136 = vrot.slane %v131, %v135
    %138 = vmatprep.subr.mxu0 0.0
    %139 = vmatpush1.msra.mxu0 %v126
    %140 = vmatprep.subr.mxu0 0.0
    %141 = vmatpush1.msra.mxu0 %v127
    %142 = vmatprep.subr.mxu0 0.0
    %143 = vmatpush1.msra.mxu0 %v128
    %144 = vmatprep.subr.mxu0 0.0
    %145 = vmatpush1.msra.mxu0 %v129
    %146 = vmatprep.subr.mxu0 0.0
    %147 = vmatpush1.msra.mxu0 0.0
    %148 = vmatprep.subr.mxu0 0.0
    %149 = vmatpush1.msra.mxu0 0.0
    %150 = vmatprep.subr.mxu0 0.0
    %151 = vmatpush1.msra.mxu0 0.0
    %152 = vmatprep.subr.mxu0 0.0
    %153 = vmatpush1.msra.mxu0 0.0
    %154 = vmatprep.subr.mxu0 0.0
    %155 = vmatpush1.msra.mxu0 0.0
    %156 = vmatprep.subr.mxu0 0.0
    %157 = vmatpush1.msra.mxu0 0.0
    %158 = vmatprep.subr.mxu0 0.0
    %159 = vmatpush1.msra.mxu0 0.0
    %160 = vmatprep.subr.mxu0 0.0
    %161 = vmatpush1.msra.mxu0 0.0
    %162 = vmatprep.subr.mxu0 0.0
    %163 = vmatpush1.msra.mxu0 0.0
    %164 = vmatprep.subr.mxu0 0.0
    %165 = vmatpush1.msra.mxu0 0.0
    %166 = vmatprep.subr.mxu0 0.0
    %167 = vmatpush1.msra.mxu0 0.0
    %168 = vmatprep.subr.mxu0 0.0
    %169 = vmatpush1.msra.mxu0 0.0
    %170 = vmatprep.subr.mxu0 0.0
    %171 = vmatpush1.msra.mxu0 0.0
    %172 = vmatprep.subr.mxu0 0.0
    %173 = vmatpush1.msra.mxu0 0.0
    %174 = vmatprep.subr.mxu0 0.0
    %175 = vmatpush1.msra.mxu0 0.0
    %176 = vmatprep.subr.mxu0 0.0
    %177 = vmatpush1.msra.mxu0 0.0
    %178 = vmatprep.subr.mxu0 0.0
    %179 = vmatpush1.msra.mxu0 0.0
    %180 = vmatprep.subr.mxu0 0.0
    %181 = vmatpush1.msra.mxu0 0.0
    %182 = vmatprep.subr.mxu0 0.0
    %183 = vmatpush1.msra.mxu0 0.0
    %184 = vmatprep.subr.mxu0 0.0
    %185 = vmatpush1.msra.mxu0 0.0
    %186 = vmatprep.subr.mxu0 0.0
    %187 = vmatpush1.msra.mxu0 0.0
    %188 = vmatprep.subr.mxu0 0.0
    %189 = vmatpush1.msra.mxu0 0.0
    %190 = vmatprep.subr.mxu0 0.0
    %191 = vmatpush1.msra.mxu0 0.0
    %192 = vmatprep.subr.mxu0 0.0
    %193 = vmatpush1.msra.mxu0 0.0
    %194 = vmatprep.subr.mxu0 0.0
    %195 = vmatpush1.msra.mxu0 0.0
    %196 = vmatprep.subr.mxu0 0.0
    %197 = vmatpush1.msra.mxu0 0.0
    %198 = vmatprep.subr.mxu0 0.0
    %199 = vmatpush1.msra.mxu0 0.0
    %200 = vmatprep.subr.mxu0 0.0
    %201 = vmatpush1.msra.mxu0 0.0
    %202 = vmatprep.mubr.f32.mxu0 0.0
    %203 = vmatmul.mubr.f32.gmra.mrb[0].mxu0 %v45
    %v204 = vpop.f32.mrb[0].mxu0
    %v205 = vadd.f32 %v136, %v204
    %v206 = vpop.f32.mrb[0].mxu0
    %207 = vmatprep.mubr.f32.mxu0 0.0
    %208 = vmatmul.mubr.f32.gmra.mrb[0].mxu0 %v48
    %v209 = vpop.f32.mrb[0].mxu0
    %v210 = vadd.f32 %v136, %v209
    %v211 = vpop.f32.mrb[0].mxu0
    %212 = vdwg.mxu0
    %v213 = vld [vmem:[%s2] sm:$0xff]
    %v214 = vld [vmem:[%s2 + $0x8] sm:$0xff]
    %v215 = vld [vmem:[%s2 + $0x10] sm:$0xff]
    %v216 = vld [vmem:[%s2 + $0x18] sm:$0xff]
    %v218 = vsel %vm43, 0.0, 0
    %220 = vmatprep.subr.mxu0 0.0
    %221 = vmatpush1.msra.mxu0 %v213
    %222 = vmatprep.subr.mxu0 0.0
    %223 = vmatpush1.msra.mxu0 %v214
    %224 = vmatprep.subr.mxu0 0.0
    %225 = vmatpush1.msra.mxu0 %v215
    %226 = vmatprep.subr.mxu0 0.0
    %227 = vmatpush1.msra.mxu0 %v216
    %228 = vmatprep.subr.mxu0 0.0
    %229 = vmatpush1.msra.mxu0 0.0
    %230 = vmatprep.subr.mxu0 0.0
    %231 = vmatpush1.msra.mxu0 0.0
    %232 = vmatprep.subr.mxu0 0.0
    %233 = vmatpush1.msra.mxu0 0.0
    %234 = vmatprep.subr.mxu0 0.0
    %235 = vmatpush1.msra.mxu0 0.0
    %236 = vmatprep.subr.mxu0 0.0
    %237 = vmatpush1.msra.mxu0 0.0
    %238 = vmatprep.subr.mxu0 0.0
    %239 = vmatpush1.msra.mxu0 0.0
    %240 = vmatprep.subr.mxu0 0.0
    %241 = vmatpush1.msra.mxu0 0.0
    %242 = vmatprep.subr.mxu0 0.0
    %243 = vmatpush1.msra.mxu0 0.0
    %244 = vmatprep.subr.mxu0 0.0
    %245 = vmatpush1.msra.mxu0 0.0
    %246 = vmatprep.subr.mxu0 0.0
    %247 = vmatpush1.msra.mxu0 0.0
    %248 = vmatprep.subr.mxu0 0.0
    %249 = vmatpush1.msra.mxu0 0.0
    %250 = vmatprep.subr.mxu0 0.0
    %251 = vmatpush1.msra.mxu0 0.0
    %252 = vmatprep.subr.mxu0 0.0
    %253 = vmatpush1.msra.mxu0 0.0
    %254 = vmatprep.subr.mxu0 0.0
    %255 = vmatpush1.msra.mxu0 0.0
    %256 = vmatprep.subr.mxu0 0.0
    %257 = vmatpush1.msra.mxu0 0.0
    %258 = vmatprep.subr.mxu0 0.0
    %259 = vmatpush1.msra.mxu0 0.0
    %260 = vmatprep.subr.mxu0 0.0
    %261 = vmatpush1.msra.mxu0 0.0
    %262 = vmatprep.subr.mxu0 0.0
    %263 = vmatpush1.msra.mxu0 0.0
    %264 = vmatprep.subr.mxu0 0.0
    %265 = vmatpush1.msra.mxu0 0.0
    %266 = vmatprep.subr.mxu0 0.0
    %267 = vmatpush1.msra.mxu0 0.0
    %268 = vmatprep.subr.mxu0 0.0
    %269 = vmatpush1.msra.mxu0 0.0
    %270 = vmatprep.subr.mxu0 0.0
    %271 = vmatpush1.msra.mxu0 0.0
    %272 = vmatprep.subr.mxu0 0.0
    %273 = vmatpush1.msra.mxu0 0.0
    %274 = vmatprep.subr.mxu0 0.0
    %275 = vmatpush1.msra.mxu0 0.0
    %276 = vmatprep.subr.mxu0 0.0
    %277 = vmatpush1.msra.mxu0 0.0
    %278 = vmatprep.subr.mxu0 0.0
    %279 = vmatpush1.msra.mxu0 0.0
    %280 = vmatprep.subr.mxu0 0.0
    %281 = vmatpush1.msra.mxu0 0.0
    %282 = vmatprep.subr.mxu0 0.0
    %283 = vmatpush1.msra.mxu0 0.0
    %284 = vmatprep.mubr.f32.mxu0 0.0
    %285 = vmatmul.mubr.f32.gmra.mrb[0].mxu0 %v218
    %v286 = vpop.f32.mrb[0].mxu0
    %v287 = vadd.f32 0.0, %v286
    %v288 = vpop.f32.mrb[0].mxu0
    %289 = vdwg.mxu0
    %v290 = vadd.f32 %v117, %v287
    %v291 = vxor.u32 %v290, 2147483648
    %v292 = vmul.f32 %v291, 1.442695
    %v293 = vpow.pop %v292
    %v294 = vadd.f32 %v293, 1.0
    %v295 = vrcp.pop %v294
    %v296 = vmul.f32 1.0, %v295
    %v297 = vtanh.pop %v290
    %v298 = vmul.f32 %v296, 0.0
    %300 = vrot.lane.b32.xlu0 %v297, 32
    %v301 = vpop.permute.xlu0 %300
    %v303 = vmul.f32 %v296, %v301
    %305 = vrot.lane.b32.xlu0 %v303, 32
    %v306 = vpop.permute.xlu0 %305
    %v308 = vadd.f32 %v298, %v306
    %v309 = vtanh.pop %v308
    %311 = vrot.lane.b32.xlu0 %v309, 32
    %v312 = vpop.permute.xlu0 %311
    %v314 = vmul.f32 %v296, %v312
    %316 = vrot.lane.b32.xlu0 %v314, 64
    %v317 = vpop.permute.xlu0 %316
    %vm319 = vcmask 254976
    %320 = vst.msk [vmem:[#allocation2] sm:$0x3] %vm319, %v317
    %v321 = vsel %vm43, %v317, 0
    %323 = vmatprep.subr.mxu0 0.0
    %324 = vmatpush1.msra.mxu0 %v213
    %325 = vmatprep.subr.mxu0 0.0
    %326 = vmatpush1.msra.mxu0 %v214
    %327 = vmatprep.subr.mxu0 0.0
    %328 = vmatpush1.msra.mxu0 %v215
    %329 = vmatprep.subr.mxu0 0.0
    %330 = vmatpush1.msra.mxu0 %v216
    %331 = vmatprep.subr.mxu0 0.0
    %332 = vmatpush1.msra.mxu0 0.0
    %333 = vmatprep.subr.mxu0 0.0
    %334 = vmatpush1.msra.mxu0 0.0
    %335 = vmatprep.subr.mxu0 0.0
    %336 = vmatpush1.msra.mxu0 0.0
    %337 = vmatprep.subr.mxu0 0.0
    %338 = vmatpush1.msra.mxu0 0.0
    %339 = vmatprep.subr.mxu0 0.0
    %340 = vmatpush1.msra.mxu0 0.0
    %341 = vmatprep.subr.mxu0 0.0
    %342 = vmatpush1.msra.mxu0 0.0
    %343 = vmatprep.subr.mxu0 0.0
    %344 = vmatpush1.msra.mxu0 0.0
    %345 = vmatprep.subr.mxu0 0.0
    %346 = vmatpush1.msra.mxu0 0.0
    %347 = vmatprep.subr.mxu0 0.0
    %348 = vmatpush1.msra.mxu0 0.0
    %349 = vmatprep.subr.mxu0 0.0
    %350 = vmatpush1.msra.mxu0 0.0
    %351 = vmatprep.subr.mxu0 0.0
    %352 = vmatpush1.msra.mxu0 0.0
    %353 = vmatprep.subr.mxu0 0.0
    %354 = vmatpush1.msra.mxu0 0.0
    %355 = vmatprep.subr.mxu0 0.0
    %356 = vmatpush1.msra.mxu0 0.0
    %357 = vmatprep.subr.mxu0 0.0
    %358 = vmatpush1.msra.mxu0 0.0
    %359 = vmatprep.subr.mxu0 0.0
    %360 = vmatpush1.msra.mxu0 0.0
    %361 = vmatprep.subr.mxu0 0.0
    %362 = vmatpush1.msra.mxu0 0.0
    %363 = vmatprep.subr.mxu0 0.0
    %364 = vmatpush1.msra.mxu0 0.0
    %365 = vmatprep.subr.mxu0 0.0
    %366 = vmatpush1.msra.mxu0 0.0
    %367 = vmatprep.subr.mxu0 0.0
    %368 = vmatpush1.msra.mxu0 0.0
    %369 = vmatprep.subr.mxu0 0.0
    %370 = vmatpush1.msra.mxu0 0.0
    %371 = vmatprep.subr.mxu0 0.0
    %372 = vmatpush1.msra.mxu0 0.0
    %373 = vmatprep.subr.mxu0 0.0
    %374 = vmatpush1.msra.mxu0 0.0
    %375 = vmatprep.subr.mxu0 0.0
    %376 = vmatpush1.msra.mxu0 0.0
    %377 = vmatprep.subr.mxu0 0.0
    %378 = vmatpush1.msra.mxu0 0.0
    %379 = vmatprep.subr.mxu0 0.0
    %380 = vmatpush1.msra.mxu0 0.0
    %381 = vmatprep.subr.mxu0 0.0
    %382 = vmatpush1.msra.mxu0 0.0
    %383 = vmatprep.subr.mxu0 0.0
    %384 = vmatpush1.msra.mxu0 0.0
    %385 = vmatprep.subr.mxu0 0.0
    %386 = vmatpush1.msra.mxu0 0.0
    %387 = vmatprep.mubr.f32.mxu0 0.0
    %388 = vmatmul.mubr.f32.gmra.mrb[0].mxu0 %v321
    %v389 = vpop.f32.mrb[0].mxu0
    %v390 = vadd.f32 0.0, %v389
    %v391 = vpop.f32.mrb[0].mxu0
    %392 = vdwg.mxu0
    %v394 = vrot.slane %v390, 6
    %v396 = vadd.f32 %v117, %v394
    %v397 = vxor.u32 %v396, 2147483648
    %v398 = vmul.f32 %v397, 1.442695
    %v399 = vpow.pop %v398
    %v400 = vadd.f32 %v399, 1.0
    %v401 = vrcp.pop %v400
    %v402 = vmul.f32 1.0, %v401
    %v403 = vtanh.pop %v396
    %v405 = vrot.slane %v308, 6
    %v407 = vmul.f32 %v402, %v405
    %409 = vrot.lane.b32.xlu0 %v403, 32
    %v410 = vpop.permute.xlu0 %409
    %v412 = vmul.f32 %v402, %v410
    %414 = vrot.lane.b32.xlu0 %v412, 32
    %v415 = vpop.permute.xlu0 %414
    %v417 = vadd.f32 %v407, %v415
    %v418 = vtanh.pop %v417
    %420 = vrot.lane.b32.xlu0 %v418, 32
    %v421 = vpop.permute.xlu0 %420
    %v423 = vmul.f32 %v402, %v421
    %425 = vrot.lane.b32.xlu0 %v423, 64
    %v426 = vpop.permute.xlu0 %425
    %vm428 = vcmask 257026
    %429 = vst.msk [vmem:[#allocation2] sm:$0xc] %vm428, %v426
    %v430 = vrot.slane %v423, 2
    %431 = vrot.lane.b32.xlu0 %v430, 64
    %v432 = vpop.permute.xlu0 %431
    %v433 = vsel %vm43, %v432, 0
    %435 = vmatprep.subr.mxu0 0.0
    %436 = vmatpush1.msra.mxu0 %v213
    %437 = vmatprep.subr.mxu0 0.0
    %438 = vmatpush1.msra.mxu0 %v214
    %439 = vmatprep.subr.mxu0 0.0
    %440 = vmatpush1.msra.mxu0 %v215
    %441 = vmatprep.subr.mxu0 0.0
    %442 = vmatpush1.msra.mxu0 %v216
    %443 = vmatprep.subr.mxu0 0.0
    %444 = vmatpush1.msra.mxu0 0.0
    %445 = vmatprep.subr.mxu0 0.0
    %446 = vmatpush1.msra.mxu0 0.0
    %447 = vmatprep.subr.mxu0 0.0
    %448 = vmatpush1.msra.mxu0 0.0
    %449 = vmatprep.subr.mxu0 0.0
    %450 = vmatpush1.msra.mxu0 0.0
    %451 = vmatprep.subr.mxu0 0.0
    %452 = vmatpush1.msra.mxu0 0.0
    %453 = vmatprep.subr.mxu0 0.0
    %454 = vmatpush1.msra.mxu0 0.0
    %455 = vmatprep.subr.mxu0 0.0
    %456 = vmatpush1.msra.mxu0 0.0
    %457 = vmatprep.subr.mxu0 0.0
    %458 = vmatpush1.msra.mxu0 0.0
    %459 = vmatprep.subr.mxu0 0.0
    %460 = vmatpush1.msra.mxu0 0.0
    %461 = vmatprep.subr.mxu0 0.0
    %462 = vmatpush1.msra.mxu0 0.0
    %463 = vmatprep.subr.mxu0 0.0
    %464 = vmatpush1.msra.mxu0 0.0
    %465 = vmatprep.subr.mxu0 0.0
    %466 = vmatpush1.msra.mxu0 0.0
    %467 = vmatprep.subr.mxu0 0.0
    %468 = vmatpush1.msra.mxu0 0.0
    %469 = vmatprep.subr.mxu0 0.0
    %470 = vmatpush1.msra.mxu0 0.0
    %471 = vmatprep.subr.mxu0 0.0
    %472 = vmatpush1.msra.mxu0 0.0
    %473 = vmatprep.subr.mxu0 0.0
    %474 = vmatpush1.msra.mxu0 0.0
    %475 = vmatprep.subr.mxu0 0.0
    %476 = vmatpush1.msra.mxu0 0.0
    %477 = vmatprep.subr.mxu0 0.0
    %478 = vmatpush1.msra.mxu0 0.0
    %479 = vmatprep.subr.mxu0 0.0
    %480 = vmatpush1.msra.mxu0 0.0
    %481 = vmatprep.subr.mxu0 0.0
    %482 = vmatpush1.msra.mxu0 0.0
    %483 = vmatprep.subr.mxu0 0.0
    %484 = vmatpush1.msra.mxu0 0.0
    %485 = vmatprep.subr.mxu0 0.0
    %486 = vmatpush1.msra.mxu0 0.0
    %487 = vmatprep.subr.mxu0 0.0
    %488 = vmatpush1.msra.mxu0 0.0
    %489 = vmatprep.subr.mxu0 0.0
    %490 = vmatpush1.msra.mxu0 0.0
    %491 = vmatprep.subr.mxu0 0.0
    %492 = vmatpush1.msra.mxu0 0.0
    %493 = vmatprep.subr.mxu0 0.0
    %494 = vmatpush1.msra.mxu0 0.0
    %495 = vmatprep.subr.mxu0 0.0
    %496 = vmatpush1.msra.mxu0 0.0
    %497 = vmatprep.subr.mxu0 0.0
    %498 = vmatpush1.msra.mxu0 0.0
    %499 = vmatprep.mubr.f32.mxu0 0.0
    %500 = vmatmul.mubr.f32.gmra.mrb[0].mxu0 %v433
    %v501 = vpop.f32.mrb[0].mxu0
    %v502 = vadd.f32 0.0, %v501
    %v503 = vpop.f32.mrb[0].mxu0
    %504 = vdwg.mxu0
    %v506 = vrot.slane %v502, 4
    %v508 = vadd.f32 %v117, %v506
    %v509 = vxor.u32 %v508, 2147483648
    %v510 = vmul.f32 %v509, 1.442695
    %v511 = vpow.pop %v510
    %v512 = vadd.f32 %v511, 1.0
    %v513 = vrcp.pop %v512
    %v514 = vmul.f32 1.0, %v513
    %v515 = vtanh.pop %v508
    %v517 = vrot.slane %v417, 6
    %v519 = vmul.f32 %v514, %v517
    %521 = vrot.lane.b32.xlu0 %v515, 32
    %v522 = vpop.permute.xlu0 %521
    %v524 = vmul.f32 %v514, %v522
    %526 = vrot.lane.b32.xlu0 %v524, 32
    %v527 = vpop.permute.xlu0 %526
    %v529 = vadd.f32 %v519, %v527
    %v530 = vtanh.pop %v529
    %532 = vrot.lane.b32.xlu0 %v530, 32
    %v533 = vpop.permute.xlu0 %532
    %v535 = vmul.f32 %v514, %v533
    %537 = vrot.lane.b32.xlu0 %v535, 64
    %v538 = vpop.permute.xlu0 %537
    %vm540 = vcmask 259076
    %541 = vst.msk [vmem:[#allocation2] sm:$0x30] %vm540, %v538
    %v542 = vrot.slane %v535, 4
    %543 = vrot.lane.b32.xlu0 %v542, 64
    %v544 = vpop.permute.xlu0 %543
    %v545 = vsel %vm43, %v544, 0
    %547 = vmatprep.subr.mxu0 0.0
    %548 = vmatpush1.msra.mxu0 %v213
    %549 = vmatprep.subr.mxu0 0.0
    %550 = vmatpush1.msra.mxu0 %v214
    %551 = vmatprep.subr.mxu0 0.0
    %552 = vmatpush1.msra.mxu0 %v215
    %553 = vmatprep.subr.mxu0 0.0
    %554 = vmatpush1.msra.mxu0 %v216
    %555 = vmatprep.subr.mxu0 0.0
    %556 = vmatpush1.msra.mxu0 0.0
    %557 = vmatprep.subr.mxu0 0.0
    %558 = vmatpush1.msra.mxu0 0.0
    %559 = vmatprep.subr.mxu0 0.0
    %560 = vmatpush1.msra.mxu0 0.0
    %561 = vmatprep.subr.mxu0 0.0
    %562 = vmatpush1.msra.mxu0 0.0
    %563 = vmatprep.subr.mxu0 0.0
    %564 = vmatpush1.msra.mxu0 0.0
    %565 = vmatprep.subr.mxu0 0.0
    %566 = vmatpush1.msra.mxu0 0.0
    %567 = vmatprep.subr.mxu0 0.0
    %568 = vmatpush1.msra.mxu0 0.0
    %569 = vmatprep.subr.mxu0 0.0
    %570 = vmatpush1.msra.mxu0 0.0
    %571 = vmatprep.subr.mxu0 0.0
    %572 = vmatpush1.msra.mxu0 0.0
    %573 = vmatprep.subr.mxu0 0.0
    %574 = vmatpush1.msra.mxu0 0.0
    %575 = vmatprep.subr.mxu0 0.0
    %576 = vmatpush1.msra.mxu0 0.0
    %577 = vmatprep.subr.mxu0 0.0
    %578 = vmatpush1.msra.mxu0 0.0
    %579 = vmatprep.subr.mxu0 0.0
    %580 = vmatpush1.msra.mxu0 0.0
    %581 = vmatprep.subr.mxu0 0.0
    %582 = vmatpush1.msra.mxu0 0.0
    %583 = vmatprep.subr.mxu0 0.0
    %584 = vmatpush1.msra.mxu0 0.0
    %585 = vmatprep.subr.mxu0 0.0
    %586 = vmatpush1.msra.mxu0 0.0
    %587 = vmatprep.subr.mxu0 0.0
    %588 = vmatpush1.msra.mxu0 0.0
    %589 = vmatprep.subr.mxu0 0.0
    %590 = vmatpush1.msra.mxu0 0.0
    %591 = vmatprep.subr.mxu0 0.0
    %592 = vmatpush1.msra.mxu0 0.0
    %593 = vmatprep.subr.mxu0 0.0
    %594 = vmatpush1.msra.mxu0 0.0
    %595 = vmatprep.subr.mxu0 0.0
    %596 = vmatpush1.msra.mxu0 0.0
    %597 = vmatprep.subr.mxu0 0.0
    %598 = vmatpush1.msra.mxu0 0.0
    %599 = vmatprep.subr.mxu0 0.0
    %600 = vmatpush1.msra.mxu0 0.0
    %601 = vmatprep.subr.mxu0 0.0
    %602 = vmatpush1.msra.mxu0 0.0
    %603 = vmatprep.subr.mxu0 0.0
    %604 = vmatpush1.msra.mxu0 0.0
    %605 = vmatprep.subr.mxu0 0.0
    %606 = vmatpush1.msra.mxu0 0.0
    %607 = vmatprep.subr.mxu0 0.0
    %608 = vmatpush1.msra.mxu0 0.0
    %609 = vmatprep.subr.mxu0 0.0
    %610 = vmatpush1.msra.mxu0 0.0
    %611 = vmatprep.mubr.f32.mxu0 0.0
    %612 = vmatmul.mubr.f32.gmra.mrb[0].mxu0 %v545
    %v613 = vpop.f32.mrb[0].mxu0
    %v614 = vadd.f32 0.0, %v613
    %v615 = vpop.f32.mrb[0].mxu0
    %616 = vdwg.mxu0
    %v618 = vrot.slane %v614, 2
    %v620 = vadd.f32 %v117, %v618
    %v621 = vxor.u32 %v620, 2147483648
    %v622 = vmul.f32 %v621, 1.442695
    %v623 = vpow.pop %v622
    %v624 = vadd.f32 %v623, 1.0
    %v625 = vrcp.pop %v624
    %v626 = vmul.f32 1.0, %v625
    %v627 = vtanh.pop %v620
    %v629 = vrot.slane %v529, 6
    %v631 = vmul.f32 %v626, %v629
    %633 = vrot.lane.b32.xlu0 %v627, 32
    %v634 = vpop.permute.xlu0 %633
    %v636 = vmul.f32 %v626, %v634
    %638 = vrot.lane.b32.xlu0 %v636, 32
    %v639 = vpop.permute.xlu0 %638
    %v641 = vadd.f32 %v631, %v639
    %v642 = vtanh.pop %v641
    %644 = vrot.lane.b32.xlu0 %v642, 32
    %v645 = vpop.permute.xlu0 %644
    %v647 = vmul.f32 %v626, %v645
    %649 = vrot.lane.b32.xlu0 %v647, 64
    %v650 = vpop.permute.xlu0 %649
    %vm652 = vcmask 261126
    %653 = vst.msk [vmem:[#allocation2] sm:$0xc0] %vm652, %v650
    %v654 = vrot.slane %v647, 6
    %655 = vrot.lane.b32.xlu0 %v654, 64
    %v656 = vpop.permute.xlu0 %655
    %v657 = vsel %vm43, %v656, 0
    %659 = vmatprep.subr.mxu0 0.0
    %660 = vmatpush1.msra.mxu0 %v213
    %661 = vmatprep.subr.mxu0 0.0
    %662 = vmatpush1.msra.mxu0 %v214
    %663 = vmatprep.subr.mxu0 0.0
    %664 = vmatpush1.msra.mxu0 %v215
    %665 = vmatprep.subr.mxu0 0.0
    %666 = vmatpush1.msra.mxu0 %v216
    %667 = vmatprep.subr.mxu0 0.0
    %668 = vmatpush1.msra.mxu0 0.0
    %669 = vmatprep.subr.mxu0 0.0
    %670 = vmatpush1.msra.mxu0 0.0
    %671 = vmatprep.subr.mxu0 0.0
    %672 = vmatpush1.msra.mxu0 0.0
    %673 = vmatprep.subr.mxu0 0.0
    %674 = vmatpush1.msra.mxu0 0.0
    %675 = vmatprep.subr.mxu0 0.0
    %676 = vmatpush1.msra.mxu0 0.0
    %677 = vmatprep.subr.mxu0 0.0
    %678 = vmatpush1.msra.mxu0 0.0
    %679 = vmatprep.subr.mxu0 0.0
    %680 = vmatpush1.msra.mxu0 0.0
    %681 = vmatprep.subr.mxu0 0.0
    %682 = vmatpush1.msra.mxu0 0.0
    %683 = vmatprep.subr.mxu0 0.0
    %684 = vmatpush1.msra.mxu0 0.0
    %685 = vmatprep.subr.mxu0 0.0
    %686 = vmatpush1.msra.mxu0 0.0
    %687 = vmatprep.subr.mxu0 0.0
    %688 = vmatpush1.msra.mxu0 0.0
    %689 = vmatprep.subr.mxu0 0.0
    %690 = vmatpush1.msra.mxu0 0.0
    %691 = vmatprep.subr.mxu0 0.0
    %692 = vmatpush1.msra.mxu0 0.0
    %693 = vmatprep.subr.mxu0 0.0
    %694 = vmatpush1.msra.mxu0 0.0
    %695 = vmatprep.subr.mxu0 0.0
    %696 = vmatpush1.msra.mxu0 0.0
    %697 = vmatprep.subr.mxu0 0.0
    %698 = vmatpush1.msra.mxu0 0.0
    %699 = vmatprep.subr.mxu0 0.0
    %700 = vmatpush1.msra.mxu0 0.0
    %701 = vmatprep.subr.mxu0 0.0
    %702 = vmatpush1.msra.mxu0 0.0
    %703 = vmatprep.subr.mxu0 0.0
    %704 = vmatpush1.msra.mxu0 0.0
    %705 = vmatprep.subr.mxu0 0.0
    %706 = vmatpush1.msra.mxu0 0.0
    %707 = vmatprep.subr.mxu0 0.0
    %708 = vmatpush1.msra.mxu0 0.0
    %709 = vmatprep.subr.mxu0 0.0
    %710 = vmatpush1.msra.mxu0 0.0
    %711 = vmatprep.subr.mxu0 0.0
    %712 = vmatpush1.msra.mxu0 0.0
    %713 = vmatprep.subr.mxu0 0.0
    %714 = vmatpush1.msra.mxu0 0.0
    %715 = vmatprep.subr.mxu0 0.0
    %716 = vmatpush1.msra.mxu0 0.0
    %717 = vmatprep.subr.mxu0 0.0
    %718 = vmatpush1.msra.mxu0 0.0
    %719 = vmatprep.subr.mxu0 0.0
    %720 = vmatpush1.msra.mxu0 0.0
    %721 = vmatprep.subr.mxu0 0.0
    %722 = vmatpush1.msra.mxu0 0.0
    %723 = vmatprep.mubr.f32.mxu0 0.0
    %724 = vmatmul.mubr.f32.gmra.mrb[0].mxu0 %v657
    %v725 = vpop.f32.mrb[0].mxu0
    %v726 = vadd.f32 0.0, %v725
    %v727 = vpop.f32.mrb[0].mxu0
    %728 = vdwg.mxu0
    %v729 = vadd.f32 %v122, %v726
    %v730 = vxor.u32 %v729, 2147483648
    %v731 = vmul.f32 %v730, 1.442695
    %v732 = vpow.pop %v731
    %v733 = vadd.f32 %v732, 1.0
    %v734 = vrcp.pop %v733
    %v735 = vmul.f32 1.0, %v734
    %v736 = vtanh.pop %v729
    %v738 = vrot.slane %v641, 6
    %v740 = vmul.f32 %v735, %v738
    %742 = vrot.lane.b32.xlu0 %v736, 32
    %v743 = vpop.permute.xlu0 %742
    %v745 = vmul.f32 %v735, %v743
    %747 = vrot.lane.b32.xlu0 %v745, 32
    %v748 = vpop.permute.xlu0 %747
    %v750 = vadd.f32 %v740, %v748
    %v751 = vtanh.pop %v750
    %753 = vrot.lane.b32.xlu0 %v751, 32
    %v754 = vpop.permute.xlu0 %753
    %v756 = vmul.f32 %v735, %v754
    %758 = vrot.lane.b32.xlu0 %v756, 64
    %v759 = vpop.permute.xlu0 %758
    %761 = vst.msk [vmem:[#allocation2 + $0x8] sm:$0x3] %vm319, %v759
    %v762 = vsel %vm43, %v759, 0
    %764 = vmatprep.subr.mxu0 0.0
    %765 = vmatpush1.msra.mxu0 %v213
    %766 = vmatprep.subr.mxu0 0.0
    %767 = vmatpush1.msra.mxu0 %v214
    %768 = vmatprep.subr.mxu0 0.0
    %769 = vmatpush1.msra.mxu0 %v215
    %770 = vmatprep.subr.mxu0 0.0
    %771 = vmatpush1.msra.mxu0 %v216
    %772 = vmatprep.subr.mxu0 0.0
    %773 = vmatpush1.msra.mxu0 0.0
    %774 = vmatprep.subr.mxu0 0.0
    %775 = vmatpush1.msra.mxu0 0.0
    %776 = vmatprep.subr.mxu0 0.0
    %777 = vmatpush1.msra.mxu0 0.0
    %778 = vmatprep.subr.mxu0 0.0
    %779 = vmatpush1.msra.mxu0 0.0
    %780 = vmatprep.subr.mxu0 0.0
    %781 = vmatpush1.msra.mxu0 0.0
    %782 = vmatprep.subr.mxu0 0.0
    %783 = vmatpush1.msra.mxu0 0.0
    %784 = vmatprep.subr.mxu0 0.0
    %785 = vmatpush1.msra.mxu0 0.0
    %786 = vmatprep.subr.mxu0 0.0
    %787 = vmatpush1.msra.mxu0 0.0
    %788 = vmatprep.subr.mxu0 0.0
    %789 = vmatpush1.msra.mxu0 0.0
    %790 = vmatprep.subr.mxu0 0.0
    %791 = vmatpush1.msra.mxu0 0.0
    %792 = vmatprep.subr.mxu0 0.0
    %793 = vmatpush1.msra.mxu0 0.0
    %794 = vmatprep.subr.mxu0 0.0
    %795 = vmatpush1.msra.mxu0 0.0
    %796 = vmatprep.subr.mxu0 0.0
    %797 = vmatpush1.msra.mxu0 0.0
    %798 = vmatprep.subr.mxu0 0.0
    %799 = vmatpush1.msra.mxu0 0.0
    %800 = vmatprep.subr.mxu0 0.0
    %801 = vmatpush1.msra.mxu0 0.0
    %802 = vmatprep.subr.mxu0 0.0
    %803 = vmatpush1.msra.mxu0 0.0
    %804 = vmatprep.subr.mxu0 0.0
    %805 = vmatpush1.msra.mxu0 0.0
    %806 = vmatprep.subr.mxu0 0.0
    %807 = vmatpush1.msra.mxu0 0.0
    %808 = vmatprep.subr.mxu0 0.0
    %809 = vmatpush1.msra.mxu0 0.0
    %810 = vmatprep.subr.mxu0 0.0
    %811 = vmatpush1.msra.mxu0 0.0
    %812 = vmatprep.subr.mxu0 0.0
    %813 = vmatpush1.msra.mxu0 0.0
    %814 = vmatprep.subr.mxu0 0.0
    %815 = vmatpush1.msra.mxu0 0.0
    %816 = vmatprep.subr.mxu0 0.0
    %817 = vmatpush1.msra.mxu0 0.0
    %818 = vmatprep.subr.mxu0 0.0
    %819 = vmatpush1.msra.mxu0 0.0
    %820 = vmatprep.subr.mxu0 0.0
    %821 = vmatpush1.msra.mxu0 0.0
    %822 = vmatprep.subr.mxu0 0.0
    %823 = vmatpush1.msra.mxu0 0.0
    %824 = vmatprep.subr.mxu0 0.0
    %825 = vmatpush1.msra.mxu0 0.0
    %826 = vmatprep.subr.mxu0 0.0
    %827 = vmatpush1.msra.mxu0 0.0
    %828 = vmatprep.mubr.f32.mxu0 0.0
    %829 = vmatmul.mubr.f32.gmra.mrb[0].mxu0 %v762
    %v830 = vpop.f32.mrb[0].mxu0
    %v831 = vadd.f32 0.0, %v830
    %v832 = vpop.f32.mrb[0].mxu0
    %833 = vdwg.mxu0
    %v835 = vrot.slane %v831, 6
    %v837 = vadd.f32 %v122, %v835
    %v838 = vxor.u32 %v837, 2147483648
    %v839 = vmul.f32 %v838, 1.442695
    %v840 = vpow.pop %v839
    %v841 = vadd.f32 %v840, 1.0
    %v842 = vrcp.pop %v841
    %v843 = vmul.f32 1.0, %v842
    %v844 = vtanh.pop %v837
    %v846 = vrot.slane %v750, 6
    %v848 = vmul.f32 %v843, %v846
    %850 = vrot.lane.b32.xlu0 %v844, 32
    %v851 = vpop.permute.xlu0 %850
    %v853 = vmul.f32 %v843, %v851
    %855 = vrot.lane.b32.xlu0 %v853, 32
    %v856 = vpop.permute.xlu0 %855
    %v858 = vadd.f32 %v848, %v856
    %v859 = vtanh.pop %v858
    %861 = vrot.lane.b32.xlu0 %v859, 32
    %v862 = vpop.permute.xlu0 %861
    %v864 = vmul.f32 %v843, %v862
    %866 = vrot.lane.b32.xlu0 %v864, 64
    %v867 = vpop.permute.xlu0 %866
    %869 = vst.msk [vmem:[#allocation2 + $0x8] sm:$0xc] %vm428, %v867
    %v870 = vrot.slane %v864, 2
    %871 = vrot.lane.b32.xlu0 %v870, 64
    %v872 = vpop.permute.xlu0 %871
    %v873 = vsel %vm43, %v872, 0
    %875 = vmatprep.subr.mxu0 0.0
    %876 = vmatpush1.msra.mxu0 %v213
    %877 = vmatprep.subr.mxu0 0.0
    %878 = vmatpush1.msra.mxu0 %v214
    %879 = vmatprep.subr.mxu0 0.0
    %880 = vmatpush1.msra.mxu0 %v215
    %881 = vmatprep.subr.mxu0 0.0
    %882 = vmatpush1.msra.mxu0 %v216
    %883 = vmatprep.subr.mxu0 0.0
    %884 = vmatpush1.msra.mxu0 0.0
    %885 = vmatprep.subr.mxu0 0.0
    %886 = vmatpush1.msra.mxu0 0.0
    %887 = vmatprep.subr.mxu0 0.0
    %888 = vmatpush1.msra.mxu0 0.0
    %889 = vmatprep.subr.mxu0 0.0
    %890 = vmatpush1.msra.mxu0 0.0
    %891 = vmatprep.subr.mxu0 0.0
    %892 = vmatpush1.msra.mxu0 0.0
    %893 = vmatprep.subr.mxu0 0.0
    %894 = vmatpush1.msra.mxu0 0.0
    %895 = vmatprep.subr.mxu0 0.0
    %896 = vmatpush1.msra.mxu0 0.0
    %897 = vmatprep.subr.mxu0 0.0
    %898 = vmatpush1.msra.mxu0 0.0
    %899 = vmatprep.subr.mxu0 0.0
    %900 = vmatpush1.msra.mxu0 0.0
    %901 = vmatprep.subr.mxu0 0.0
    %902 = vmatpush1.msra.mxu0 0.0
    %903 = vmatprep.subr.mxu0 0.0
    %904 = vmatpush1.msra.mxu0 0.0
    %905 = vmatprep.subr.mxu0 0.0
    %906 = vmatpush1.msra.mxu0 0.0
    %907 = vmatprep.subr.mxu0 0.0
    %908 = vmatpush1.msra.mxu0 0.0
    %909 = vmatprep.subr.mxu0 0.0
    %910 = vmatpush1.msra.mxu0 0.0
    %911 = vmatprep.subr.mxu0 0.0
    %912 = vmatpush1.msra.mxu0 0.0
    %913 = vmatprep.subr.mxu0 0.0
    %914 = vmatpush1.msra.mxu0 0.0
    %915 = vmatprep.subr.mxu0 0.0
    %916 = vmatpush1.msra.mxu0 0.0
    %917 = vmatprep.subr.mxu0 0.0
    %918 = vmatpush1.msra.mxu0 0.0
    %919 = vmatprep.subr.mxu0 0.0
    %920 = vmatpush1.msra.mxu0 0.0
    %921 = vmatprep.subr.mxu0 0.0
    %922 = vmatpush1.msra.mxu0 0.0
    %923 = vmatprep.subr.mxu0 0.0
    %924 = vmatpush1.msra.mxu0 0.0
    %925 = vmatprep.subr.mxu0 0.0
    %926 = vmatpush1.msra.mxu0 0.0
    %927 = vmatprep.subr.mxu0 0.0
    %928 = vmatpush1.msra.mxu0 0.0
    %929 = vmatprep.subr.mxu0 0.0
    %930 = vmatpush1.msra.mxu0 0.0
    %931 = vmatprep.subr.mxu0 0.0
    %932 = vmatpush1.msra.mxu0 0.0
    %933 = vmatprep.subr.mxu0 0.0
    %934 = vmatpush1.msra.mxu0 0.0
    %935 = vmatprep.subr.mxu0 0.0
    %936 = vmatpush1.msra.mxu0 0.0
    %937 = vmatprep.subr.mxu0 0.0
    %938 = vmatpush1.msra.mxu0 0.0
    %939 = vmatprep.mubr.f32.mxu0 0.0
    %940 = vmatmul.mubr.f32.gmra.mrb[0].mxu0 %v873
    %v941 = vpop.f32.mrb[0].mxu0
    %v942 = vadd.f32 0.0, %v941
    %v943 = vpop.f32.mrb[0].mxu0
    %944 = vdwg.mxu0
    %v946 = vrot.slane %v942, 4
    %v948 = vadd.f32 %v122, %v946
    %v949 = vxor.u32 %v948, 2147483648
    %v950 = vmul.f32 %v949, 1.442695
    %v951 = vpow.pop %v950
    %v952 = vadd.f32 %v951, 1.0
    %v953 = vrcp.pop %v952
    %v954 = vmul.f32 1.0, %v953
    %v955 = vtanh.pop %v948
    %v957 = vrot.slane %v858, 6
    %v959 = vmul.f32 %v954, %v957
    %961 = vrot.lane.b32.xlu0 %v955, 32
    %v962 = vpop.permute.xlu0 %961
    %v964 = vmul.f32 %v954, %v962
    %966 = vrot.lane.b32.xlu0 %v964, 32
    %v967 = vpop.permute.xlu0 %966
    %v969 = vadd.f32 %v959, %v967
    %v970 = vtanh.pop %v969
    %972 = vrot.lane.b32.xlu0 %v970, 32
    %v973 = vpop.permute.xlu0 %972
    %v975 = vmul.f32 %v954, %v973
    %977 = vrot.lane.b32.xlu0 %v975, 64
    %v978 = vpop.permute.xlu0 %977
    %980 = vst.msk [vmem:[#allocation2 + $0x8] sm:$0x30] %vm540, %v978
    %v981 = vrot.slane %v975, 4
    %982 = vrot.lane.b32.xlu0 %v981, 64
    %v983 = vpop.permute.xlu0 %982
    %v984 = vsel %vm43, %v983, 0
    %986 = vmatprep.subr.mxu0 0.0
    %987 = vmatpush1.msra.mxu0 %v213
    %988 = vmatprep.subr.mxu0 0.0
    %989 = vmatpush1.msra.mxu0 %v214
    %990 = vmatprep.subr.mxu0 0.0
    %991 = vmatpush1.msra.mxu0 %v215
    %992 = vmatprep.subr.mxu0 0.0
    %993 = vmatpush1.msra.mxu0 %v216
    %994 = vmatprep.subr.mxu0 0.0
    %995 = vmatpush1.msra.mxu0 0.0
    %996 = vmatprep.subr.mxu0 0.0
    %997 = vmatpush1.msra.mxu0 0.0
    %998 = vmatprep.subr.mxu0 0.0
    %999 = vmatpush1.msra.mxu0 0.0
    %1000 = vmatprep.subr.mxu0 0.0
    %1001 = vmatpush1.msra.mxu0 0.0
    %1002 = vmatprep.subr.mxu0 0.0
    %1003 = vmatpush1.msra.mxu0 0.0
    %1004 = vmatprep.subr.mxu0 0.0
    %1005 = vmatpush1.msra.mxu0 0.0
    %1006 = vmatprep.subr.mxu0 0.0
    %1007 = vmatpush1.msra.mxu0 0.0
    %1008 = vmatprep.subr.mxu0 0.0
    %1009 = vmatpush1.msra.mxu0 0.0
    %1010 = vmatprep.subr.mxu0 0.0
    %1011 = vmatpush1.msra.mxu0 0.0
    %1012 = vmatprep.subr.mxu0 0.0
    %1013 = vmatpush1.msra.mxu0 0.0
    %1014 = vmatprep.subr.mxu0 0.0
    %1015 = vmatpush1.msra.mxu0 0.0
    %1016 = vmatprep.subr.mxu0 0.0
    %1017 = vmatpush1.msra.mxu0 0.0
    %1018 = vmatprep.subr.mxu0 0.0
    %1019 = vmatpush1.msra.mxu0 0.0
    %1020 = vmatprep.subr.mxu0 0.0
    %1021 = vmatpush1.msra.mxu0 0.0
    %1022 = vmatprep.subr.mxu0 0.0
    %1023 = vmatpush1.msra.mxu0 0.0
    %1024 = vmatprep.subr.mxu0 0.0
    %1025 = vmatpush1.msra.mxu0 0.0
    %1026 = vmatprep.subr.mxu0 0.0
    %1027 = vmatpush1.msra.mxu0 0.0
    %1028 = vmatprep.subr.mxu0 0.0
    %1029 = vmatpush1.msra.mxu0 0.0
    %1030 = vmatprep.subr.mxu0 0.0
    %1031 = vmatpush1.msra.mxu0 0.0
    %1032 = vmatprep.subr.mxu0 0.0
    %1033 = vmatpush1.msra.mxu0 0.0
    %1034 = vmatprep.subr.mxu0 0.0
    %1035 = vmatpush1.msra.mxu0 0.0
    %1036 = vmatprep.subr.mxu0 0.0
    %1037 = vmatpush1.msra.mxu0 0.0
    %1038 = vmatprep.subr.mxu0 0.0
    %1039 = vmatpush1.msra.mxu0 0.0
    %1040 = vmatprep.subr.mxu0 0.0
    %1041 = vmatpush1.msra.mxu0 0.0
    %1042 = vmatprep.subr.mxu0 0.0
    %1043 = vmatpush1.msra.mxu0 0.0
    %1044 = vmatprep.subr.mxu0 0.0
    %1045 = vmatpush1.msra.mxu0 0.0
    %1046 = vmatprep.subr.mxu0 0.0
    %1047 = vmatpush1.msra.mxu0 0.0
    %1048 = vmatprep.subr.mxu0 0.0
    %1049 = vmatpush1.msra.mxu0 0.0
    %1050 = vmatprep.mubr.f32.mxu0 0.0
    %1051 = vmatmul.mubr.f32.gmra.mrb[0].mxu0 %v984
    %v1052 = vpop.f32.mrb[0].mxu0
    %v1053 = vadd.f32 0.0, %v1052
    %v1054 = vpop.f32.mrb[0].mxu0
    %1055 = vdwg.mxu0
    %v1057 = vrot.slane %v1053, 2
    %v1059 = vadd.f32 %v122, %v1057
    %v1060 = vxor.u32 %v1059, 2147483648
    %v1061 = vmul.f32 %v1060, 1.442695
    %v1062 = vpow.pop %v1061
    %v1063 = vadd.f32 %v1062, 1.0
    %v1064 = vrcp.pop %v1063
    %v1065 = vmul.f32 1.0, %v1064
    %v1066 = vtanh.pop %v1059
    %v1068 = vrot.slane %v969, 6
    %v1070 = vmul.f32 %v1065, %v1068
    %1072 = vrot.lane.b32.xlu0 %v1066, 32
    %v1073 = vpop.permute.xlu0 %1072
    %v1075 = vmul.f32 %v1065, %v1073
    %1077 = vrot.lane.b32.xlu0 %v1075, 32
    %v1078 = vpop.permute.xlu0 %1077
    %v1080 = vadd.f32 %v1070, %v1078
    %v1081 = vtanh.pop %v1080
    %1083 = vrot.lane.b32.xlu0 %v1081, 32
    %v1084 = vpop.permute.xlu0 %1083
    %v1086 = vmul.f32 %v1065, %v1084
    %1088 = vrot.lane.b32.xlu0 %v1086, 64
    %v1089 = vpop.permute.xlu0 %1088
    %1091 = vst.msk [vmem:[#allocation2 + $0x8] sm:$0xc0] %vm652, %v1089
    %s1092 = scalar_lea.vmem %s2, 32
    %v1093 = vld [vmem:[%s1092] sm:$0xff]
    %v1094 = vld [vmem:[%s1092 + $0x8] sm:$0xff]
    %v1095 = vld [vmem:[%s1092 + $0x10] sm:$0xff]
    %v1096 = vld [vmem:[%s1092 + $0x18] sm:$0xff]
    %1097 = vmatprep.subr.mxu0 0.0
    %1098 = vmatpush1.msra.mxu0 %v1093
    %1099 = vmatprep.subr.mxu0 0.0
    %1100 = vmatpush1.msra.mxu0 %v1094
    %1101 = vmatprep.subr.mxu0 0.0
    %1102 = vmatpush1.msra.mxu0 %v1095
    %1103 = vmatprep.subr.mxu0 0.0
    %1104 = vmatpush1.msra.mxu0 %v1096
    %1105 = vmatprep.subr.mxu0 0.0
    %1106 = vmatpush1.msra.mxu0 0.0
    %1107 = vmatprep.subr.mxu0 0.0
    %1108 = vmatpush1.msra.mxu0 0.0
    %1109 = vmatprep.subr.mxu0 0.0
    %1110 = vmatpush1.msra.mxu0 0.0
    %1111 = vmatprep.subr.mxu0 0.0
    %1112 = vmatpush1.msra.mxu0 0.0
    %1113 = vmatprep.subr.mxu0 0.0
    %1114 = vmatpush1.msra.mxu0 0.0
    %1115 = vmatprep.subr.mxu0 0.0
    %1116 = vmatpush1.msra.mxu0 0.0
    %1117 = vmatprep.subr.mxu0 0.0
    %1118 = vmatpush1.msra.mxu0 0.0
    %1119 = vmatprep.subr.mxu0 0.0
    %1120 = vmatpush1.msra.mxu0 0.0
    %1121 = vmatprep.subr.mxu0 0.0
    %1122 = vmatpush1.msra.mxu0 0.0
    %1123 = vmatprep.subr.mxu0 0.0
    %1124 = vmatpush1.msra.mxu0 0.0
    %1125 = vmatprep.subr.mxu0 0.0
    %1126 = vmatpush1.msra.mxu0 0.0
    %1127 = vmatprep.subr.mxu0 0.0
    %1128 = vmatpush1.msra.mxu0 0.0
    %1129 = vmatprep.subr.mxu0 0.0
    %1130 = vmatpush1.msra.mxu0 0.0
    %1131 = vmatprep.subr.mxu0 0.0
    %1132 = vmatpush1.msra.mxu0 0.0
    %1133 = vmatprep.subr.mxu0 0.0
    %1134 = vmatpush1.msra.mxu0 0.0
    %1135 = vmatprep.subr.mxu0 0.0
    %1136 = vmatpush1.msra.mxu0 0.0
    %1137 = vmatprep.subr.mxu0 0.0
    %1138 = vmatpush1.msra.mxu0 0.0
    %1139 = vmatprep.subr.mxu0 0.0
    %1140 = vmatpush1.msra.mxu0 0.0
    %1141 = vmatprep.subr.mxu0 0.0
    %1142 = vmatpush1.msra.mxu0 0.0
    %1143 = vmatprep.subr.mxu0 0.0
    %1144 = vmatpush1.msra.mxu0 0.0
    %1145 = vmatprep.subr.mxu0 0.0
    %1146 = vmatpush1.msra.mxu0 0.0
    %1147 = vmatprep.subr.mxu0 0.0
    %1148 = vmatpush1.msra.mxu0 0.0
    %1149 = vmatprep.subr.mxu0 0.0
    %1150 = vmatpush1.msra.mxu0 0.0
    %1151 = vmatprep.subr.mxu0 0.0
    %1152 = vmatpush1.msra.mxu0 0.0
    %1153 = vmatprep.subr.mxu0 0.0
    %1154 = vmatpush1.msra.mxu0 0.0
    %1155 = vmatprep.subr.mxu0 0.0
    %1156 = vmatpush1.msra.mxu0 0.0
    %1157 = vmatprep.subr.mxu0 0.0
    %1158 = vmatpush1.msra.mxu0 0.0
    %1159 = vmatprep.subr.mxu0 0.0
    %1160 = vmatpush1.msra.mxu0 0.0
    %1161 = vmatprep.mubr.f32.mxu0 0.0
    %1162 = vmatmul.mubr.f32.gmra.mrb[0].mxu0 %v218
    %v1163 = vpop.f32.mrb[0].mxu0
    %v1164 = vadd.f32 0.0, %v1163
    %v1165 = vpop.f32.mrb[0].mxu0
    %1166 = vdwg.mxu0
    %v1168 = vrot.slane %v1164, 2
    %v1170 = vadd.f32 %v210, %v1168
    %v1171 = vxor.u32 %v1170, 2147483648
    %v1172 = vmul.f32 %v1171, 1.442695
    %v1173 = vpow.pop %v1172
    %v1174 = vadd.f32 %v1173, 1.0
    %v1175 = vrcp.pop %v1174
    %v1176 = vmul.f32 1.0, %v1175
    %v1177 = vtanh.pop %v1170
    %v1178 = vmul.f32 %v1176, 0.0
    %1180 = vrot.lane.b32.xlu0 %v1177, 32
    %v1181 = vpop.permute.xlu0 %1180
    %v1183 = vmul.f32 %v1176, %v1181
    %1185 = vrot.lane.b32.xlu0 %v1183, 32
    %v1186 = vpop.permute.xlu0 %1185
    %v1188 = vadd.f32 %v1178, %v1186
    %v1189 = vtanh.pop %v1188
    %1191 = vrot.lane.b32.xlu0 %v1189, 32
    %v1192 = vpop.permute.xlu0 %1191
    %v1194 = vmul.f32 %v1176, %v1192
    %1196 = vrot.lane.b32.xlu0 %v1194, 64
    %v1197 = vpop.permute.xlu0 %1196
    %1199 = vst.msk [vmem:[#allocation3 + $0x8] sm:$0xc0] %vm652, %v1197
    %v1200 = vrot.slane %v1194, 6
    %1201 = vrot.lane.b32.xlu0 %v1200, 64
    %v1202 = vpop.permute.xlu0 %1201
    %v1203 = vsel %vm43, %v1202, 0
    %1205 = vmatprep.subr.mxu0 0.0
    %1206 = vmatpush1.msra.mxu0 %v1093
    %1207 = vmatprep.subr.mxu0 0.0
    %1208 = vmatpush1.msra.mxu0 %v1094
    %1209 = vmatprep.subr.mxu0 0.0
    %1210 = vmatpush1.msra.mxu0 %v1095
    %1211 = vmatprep.subr.mxu0 0.0
    %1212 = vmatpush1.msra.mxu0 %v1096
    %1213 = vmatprep.subr.mxu0 0.0
    %1214 = vmatpush1.msra.mxu0 0.0
    %1215 = vmatprep.subr.mxu0 0.0
    %1216 = vmatpush1.msra.mxu0 0.0
    %1217 = vmatprep.subr.mxu0 0.0
    %1218 = vmatpush1.msra.mxu0 0.0
    %1219 = vmatprep.subr.mxu0 0.0
    %1220 = vmatpush1.msra.mxu0 0.0
    %1221 = vmatprep.subr.mxu0 0.0
    %1222 = vmatpush1.msra.mxu0 0.0
    %1223 = vmatprep.subr.mxu0 0.0
    %1224 = vmatpush1.msra.mxu0 0.0
    %1225 = vmatprep.subr.mxu0 0.0
    %1226 = vmatpush1.msra.mxu0 0.0
    %1227 = vmatprep.subr.mxu0 0.0
    %1228 = vmatpush1.msra.mxu0 0.0
    %1229 = vmatprep.subr.mxu0 0.0
    %1230 = vmatpush1.msra.mxu0 0.0
    %1231 = vmatprep.subr.mxu0 0.0
    %1232 = vmatpush1.msra.mxu0 0.0
    %1233 = vmatprep.subr.mxu0 0.0
    %1234 = vmatpush1.msra.mxu0 0.0
    %1235 = vmatprep.subr.mxu0 0.0
    %1236 = vmatpush1.msra.mxu0 0.0
    %1237 = vmatprep.subr.mxu0 0.0
    %1238 = vmatpush1.msra.mxu0 0.0
    %1239 = vmatprep.subr.mxu0 0.0
    %1240 = vmatpush1.msra.mxu0 0.0
    %1241 = vmatprep.subr.mxu0 0.0
    %1242 = vmatpush1.msra.mxu0 0.0
    %1243 = vmatprep.subr.mxu0 0.0
    %1244 = vmatpush1.msra.mxu0 0.0
    %1245 = vmatprep.subr.mxu0 0.0
    %1246 = vmatpush1.msra.mxu0 0.0
    %1247 = vmatprep.subr.mxu0 0.0
    %1248 = vmatpush1.msra.mxu0 0.0
    %1249 = vmatprep.subr.mxu0 0.0
    %1250 = vmatpush1.msra.mxu0 0.0
    %1251 = vmatprep.subr.mxu0 0.0
    %1252 = vmatpush1.msra.mxu0 0.0
    %1253 = vmatprep.subr.mxu0 0.0
    %1254 = vmatpush1.msra.mxu0 0.0
    %1255 = vmatprep.subr.mxu0 0.0
    %1256 = vmatpush1.msra.mxu0 0.0
    %1257 = vmatprep.subr.mxu0 0.0
    %1258 = vmatpush1.msra.mxu0 0.0
    %1259 = vmatprep.subr.mxu0 0.0
    %1260 = vmatpush1.msra.mxu0 0.0
    %1261 = vmatprep.subr.mxu0 0.0
    %1262 = vmatpush1.msra.mxu0 0.0
    %1263 = vmatprep.subr.mxu0 0.0
    %1264 = vmatpush1.msra.mxu0 0.0
    %1265 = vmatprep.subr.mxu0 0.0
    %1266 = vmatpush1.msra.mxu0 0.0
    %1267 = vmatprep.subr.mxu0 0.0
    %1268 = vmatpush1.msra.mxu0 0.0
    %1269 = vmatprep.mubr.f32.mxu0 0.0
    %1270 = vmatmul.mubr.f32.gmra.mrb[0].mxu0 %v1203
    %v1271 = vpop.f32.mrb[0].mxu0
    %v1272 = vadd.f32 0.0, %v1271
    %v1273 = vpop.f32.mrb[0].mxu0
    %1274 = vdwg.mxu0
    %v1276 = vrot.slane %v1272, 4
    %v1278 = vadd.f32 %v210, %v1276
    %v1279 = vxor.u32 %v1278, 2147483648
    %v1280 = vmul.f32 %v1279, 1.442695
    %v1281 = vpow.pop %v1280
    %v1282 = vadd.f32 %v1281, 1.0
    %v1283 = vrcp.pop %v1282
    %v1284 = vmul.f32 1.0, %v1283
    %v1285 = vtanh.pop %v1278
    %v1287 = vrot.slane %v1188, 2
    %v1289 = vmul.f32 %v1284, %v1287
    %1291 = vrot.lane.b32.xlu0 %v1285, 32
    %v1292 = vpop.permute.xlu0 %1291
    %v1294 = vmul.f32 %v1284, %v1292
    %1296 = vrot.lane.b32.xlu0 %v1294, 32
    %v1297 = vpop.permute.xlu0 %1296
    %v1299 = vadd.f32 %v1289, %v1297
    %v1300 = vtanh.pop %v1299
    %1302 = vrot.lane.b32.xlu0 %v1300, 32
    %v1303 = vpop.permute.xlu0 %1302
    %v1305 = vmul.f32 %v1284, %v1303
    %1307 = vrot.lane.b32.xlu0 %v1305, 64
    %v1308 = vpop.permute.xlu0 %1307
    %1310 = vst.msk [vmem:[#allocation3 + $0x8] sm:$0x30] %vm540, %v1308
    %v1311 = vrot.slane %v1305, 4
    %1312 = vrot.lane.b32.xlu0 %v1311, 64
    %v1313 = vpop.permute.xlu0 %1312
    %v1314 = vsel %vm43, %v1313, 0
    %1316 = vmatprep.subr.mxu0 0.0
    %1317 = vmatpush1.msra.mxu0 %v1093
    %1318 = vmatprep.subr.mxu0 0.0
    %1319 = vmatpush1.msra.mxu0 %v1094
    %1320 = vmatprep.subr.mxu0 0.0
    %1321 = vmatpush1.msra.mxu0 %v1095
    %1322 = vmatprep.subr.mxu0 0.0
    %1323 = vmatpush1.msra.mxu0 %v1096
    %1324 = vmatprep.subr.mxu0 0.0
    %1325 = vmatpush1.msra.mxu0 0.0
    %1326 = vmatprep.subr.mxu0 0.0
    %1327 = vmatpush1.msra.mxu0 0.0
    %1328 = vmatprep.subr.mxu0 0.0
    %1329 = vmatpush1.msra.mxu0 0.0
    %1330 = vmatprep.subr.mxu0 0.0
    %1331 = vmatpush1.msra.mxu0 0.0
    %1332 = vmatprep.subr.mxu0 0.0
    %1333 = vmatpush1.msra.mxu0 0.0
    %1334 = vmatprep.subr.mxu0 0.0
    %1335 = vmatpush1.msra.mxu0 0.0
    %1336 = vmatprep.subr.mxu0 0.0
    %1337 = vmatpush1.msra.mxu0 0.0
    %1338 = vmatprep.subr.mxu0 0.0
    %1339 = vmatpush1.msra.mxu0 0.0
    %1340 = vmatprep.subr.mxu0 0.0
    %1341 = vmatpush1.msra.mxu0 0.0
    %1342 = vmatprep.subr.mxu0 0.0
    %1343 = vmatpush1.msra.mxu0 0.0
    %1344 = vmatprep.subr.mxu0 0.0
    %1345 = vmatpush1.msra.mxu0 0.0
    %1346 = vmatprep.subr.mxu0 0.0
    %1347 = vmatpush1.msra.mxu0 0.0
    %1348 = vmatprep.subr.mxu0 0.0
    %1349 = vmatpush1.msra.mxu0 0.0
    %1350 = vmatprep.subr.mxu0 0.0
    %1351 = vmatpush1.msra.mxu0 0.0
    %1352 = vmatprep.subr.mxu0 0.0
    %1353 = vmatpush1.msra.mxu0 0.0
    %1354 = vmatprep.subr.mxu0 0.0
    %1355 = vmatpush1.msra.mxu0 0.0
    %1356 = vmatprep.subr.mxu0 0.0
    %1357 = vmatpush1.msra.mxu0 0.0
    %1358 = vmatprep.subr.mxu0 0.0
    %1359 = vmatpush1.msra.mxu0 0.0
    %1360 = vmatprep.subr.mxu0 0.0
    %1361 = vmatpush1.msra.mxu0 0.0
    %1362 = vmatprep.subr.mxu0 0.0
    %1363 = vmatpush1.msra.mxu0 0.0
    %1364 = vmatprep.subr.mxu0 0.0
    %1365 = vmatpush1.msra.mxu0 0.0
    %1366 = vmatprep.subr.mxu0 0.0
    %1367 = vmatpush1.msra.mxu0 0.0
    %1368 = vmatprep.subr.mxu0 0.0
    %1369 = vmatpush1.msra.mxu0 0.0
    %1370 = vmatprep.subr.mxu0 0.0
    %1371 = vmatpush1.msra.mxu0 0.0
    %1372 = vmatprep.subr.mxu0 0.0
    %1373 = vmatpush1.msra.mxu0 0.0
    %1374 = vmatprep.subr.mxu0 0.0
    %1375 = vmatpush1.msra.mxu0 0.0
    %1376 = vmatprep.subr.mxu0 0.0
    %1377 = vmatpush1.msra.mxu0 0.0
    %1378 = vmatprep.subr.mxu0 0.0
    %1379 = vmatpush1.msra.mxu0 0.0
    %1380 = vmatprep.mubr.f32.mxu0 0.0
    %1381 = vmatmul.mubr.f32.gmra.mrb[0].mxu0 %v1314
    %v1382 = vpop.f32.mrb[0].mxu0
    %v1383 = vadd.f32 0.0, %v1382
    %v1384 = vpop.f32.mrb[0].mxu0
    %1385 = vdwg.mxu0
    %v1387 = vrot.slane %v1383, 6
    %v1389 = vadd.f32 %v210, %v1387
    %v1390 = vxor.u32 %v1389, 2147483648
    %v1391 = vmul.f32 %v1390, 1.442695
    %v1392 = vpow.pop %v1391
    %v1393 = vadd.f32 %v1392, 1.0
    %v1394 = vrcp.pop %v1393
    %v1395 = vmul.f32 1.0, %v1394
    %v1396 = vtanh.pop %v1389
    %v1398 = vrot.slane %v1299, 2
    %v1400 = vmul.f32 %v1395, %v1398
    %1402 = vrot.lane.b32.xlu0 %v1396, 32
    %v1403 = vpop.permute.xlu0 %1402
    %v1405 = vmul.f32 %v1395, %v1403
    %1407 = vrot.lane.b32.xlu0 %v1405, 32
    %v1408 = vpop.permute.xlu0 %1407
    %v1410 = vadd.f32 %v1400, %v1408
    %v1411 = vtanh.pop %v1410
    %1413 = vrot.lane.b32.xlu0 %v1411, 32
    %v1414 = vpop.permute.xlu0 %1413
    %v1416 = vmul.f32 %v1395, %v1414
    %1418 = vrot.lane.b32.xlu0 %v1416, 64
    %v1419 = vpop.permute.xlu0 %1418
    %1421 = vst.msk [vmem:[#allocation3 + $0x8] sm:$0xc] %vm428, %v1419
    %v1422 = vrot.slane %v1416, 2
    %1423 = vrot.lane.b32.xlu0 %v1422, 64
    %v1424 = vpop.permute.xlu0 %1423
    %v1425 = vsel %vm43, %v1424, 0
    %1427 = vmatprep.subr.mxu0 0.0
    %1428 = vmatpush1.msra.mxu0 %v1093
    %1429 = vmatprep.subr.mxu0 0.0
    %1430 = vmatpush1.msra.mxu0 %v1094
    %1431 = vmatprep.subr.mxu0 0.0
    %1432 = vmatpush1.msra.mxu0 %v1095
    %1433 = vmatprep.subr.mxu0 0.0
    %1434 = vmatpush1.msra.mxu0 %v1096
    %1435 = vmatprep.subr.mxu0 0.0
    %1436 = vmatpush1.msra.mxu0 0.0
    %1437 = vmatprep.subr.mxu0 0.0
    %1438 = vmatpush1.msra.mxu0 0.0
    %1439 = vmatprep.subr.mxu0 0.0
    %1440 = vmatpush1.msra.mxu0 0.0
    %1441 = vmatprep.subr.mxu0 0.0
    %1442 = vmatpush1.msra.mxu0 0.0
    %1443 = vmatprep.subr.mxu0 0.0
    %1444 = vmatpush1.msra.mxu0 0.0
    %1445 = vmatprep.subr.mxu0 0.0
    %1446 = vmatpush1.msra.mxu0 0.0
    %1447 = vmatprep.subr.mxu0 0.0
    %1448 = vmatpush1.msra.mxu0 0.0
    %1449 = vmatprep.subr.mxu0 0.0
    %1450 = vmatpush1.msra.mxu0 0.0
    %1451 = vmatprep.subr.mxu0 0.0
    %1452 = vmatpush1.msra.mxu0 0.0
    %1453 = vmatprep.subr.mxu0 0.0
    %1454 = vmatpush1.msra.mxu0 0.0
    %1455 = vmatprep.subr.mxu0 0.0
    %1456 = vmatpush1.msra.mxu0 0.0
    %1457 = vmatprep.subr.mxu0 0.0
    %1458 = vmatpush1.msra.mxu0 0.0
    %1459 = vmatprep.subr.mxu0 0.0
    %1460 = vmatpush1.msra.mxu0 0.0
    %1461 = vmatprep.subr.mxu0 0.0
    %1462 = vmatpush1.msra.mxu0 0.0
    %1463 = vmatprep.subr.mxu0 0.0
    %1464 = vmatpush1.msra.mxu0 0.0
    %1465 = vmatprep.subr.mxu0 0.0
    %1466 = vmatpush1.msra.mxu0 0.0
    %1467 = vmatprep.subr.mxu0 0.0
    %1468 = vmatpush1.msra.mxu0 0.0
    %1469 = vmatprep.subr.mxu0 0.0
    %1470 = vmatpush1.msra.mxu0 0.0
    %1471 = vmatprep.subr.mxu0 0.0
    %1472 = vmatpush1.msra.mxu0 0.0
    %1473 = vmatprep.subr.mxu0 0.0
    %1474 = vmatpush1.msra.mxu0 0.0
    %1475 = vmatprep.subr.mxu0 0.0
    %1476 = vmatpush1.msra.mxu0 0.0
    %1477 = vmatprep.subr.mxu0 0.0
    %1478 = vmatpush1.msra.mxu0 0.0
    %1479 = vmatprep.subr.mxu0 0.0
    %1480 = vmatpush1.msra.mxu0 0.0
    %1481 = vmatprep.subr.mxu0 0.0
    %1482 = vmatpush1.msra.mxu0 0.0
    %1483 = vmatprep.subr.mxu0 0.0
    %1484 = vmatpush1.msra.mxu0 0.0
    %1485 = vmatprep.subr.mxu0 0.0
    %1486 = vmatpush1.msra.mxu0 0.0
    %1487 = vmatprep.subr.mxu0 0.0
    %1488 = vmatpush1.msra.mxu0 0.0
    %1489 = vmatprep.subr.mxu0 0.0
    %1490 = vmatpush1.msra.mxu0 0.0
    %1491 = vmatprep.mubr.f32.mxu0 0.0
    %1492 = vmatmul.mubr.f32.gmra.mrb[0].mxu0 %v1425
    %v1493 = vpop.f32.mrb[0].mxu0
    %v1494 = vadd.f32 0.0, %v1493
    %v1495 = vpop.f32.mrb[0].mxu0
    %1496 = vdwg.mxu0
    %v1497 = vadd.f32 %v210, %v1494
    %v1498 = vxor.u32 %v1497, 2147483648
    %v1499 = vmul.f32 %v1498, 1.442695
    %v1500 = vpow.pop %v1499
    %v1501 = vadd.f32 %v1500, 1.0
    %v1502 = vrcp.pop %v1501
    %v1503 = vmul.f32 1.0, %v1502
    %v1504 = vtanh.pop %v1497
    %v1506 = vrot.slane %v1410, 2
    %v1508 = vmul.f32 %v1503, %v1506
    %1510 = vrot.lane.b32.xlu0 %v1504, 32
    %v1511 = vpop.permute.xlu0 %1510
    %v1513 = vmul.f32 %v1503, %v1511
    %1515 = vrot.lane.b32.xlu0 %v1513, 32
    %v1516 = vpop.permute.xlu0 %1515
    %v1518 = vadd.f32 %v1508, %v1516
    %v1519 = vtanh.pop %v1518
    %1521 = vrot.lane.b32.xlu0 %v1519, 32
    %v1522 = vpop.permute.xlu0 %1521
    %v1524 = vmul.f32 %v1503, %v1522
    %1526 = vrot.lane.b32.xlu0 %v1524, 64
    %v1527 = vpop.permute.xlu0 %1526
    %1529 = vst.msk [vmem:[#allocation3 + $0x8] sm:$0x3] %vm319, %v1527
    %v1530 = vsel %vm43, %v1527, 0
    %1532 = vmatprep.subr.mxu0 0.0
    %1533 = vmatpush1.msra.mxu0 %v1093
    %1534 = vmatprep.subr.mxu0 0.0
    %1535 = vmatpush1.msra.mxu0 %v1094
    %1536 = vmatprep.subr.mxu0 0.0
    %1537 = vmatpush1.msra.mxu0 %v1095
    %1538 = vmatprep.subr.mxu0 0.0
    %1539 = vmatpush1.msra.mxu0 %v1096
    %1540 = vmatprep.subr.mxu0 0.0
    %1541 = vmatpush1.msra.mxu0 0.0
    %1542 = vmatprep.subr.mxu0 0.0
    %1543 = vmatpush1.msra.mxu0 0.0
    %1544 = vmatprep.subr.mxu0 0.0
    %1545 = vmatpush1.msra.mxu0 0.0
    %1546 = vmatprep.subr.mxu0 0.0
    %1547 = vmatpush1.msra.mxu0 0.0
    %1548 = vmatprep.subr.mxu0 0.0
    %1549 = vmatpush1.msra.mxu0 0.0
    %1550 = vmatprep.subr.mxu0 0.0
    %1551 = vmatpush1.msra.mxu0 0.0
    %1552 = vmatprep.subr.mxu0 0.0
    %1553 = vmatpush1.msra.mxu0 0.0
    %1554 = vmatprep.subr.mxu0 0.0
    %1555 = vmatpush1.msra.mxu0 0.0
    %1556 = vmatprep.subr.mxu0 0.0
    %1557 = vmatpush1.msra.mxu0 0.0
    %1558 = vmatprep.subr.mxu0 0.0
    %1559 = vmatpush1.msra.mxu0 0.0
    %1560 = vmatprep.subr.mxu0 0.0
    %1561 = vmatpush1.msra.mxu0 0.0
    %1562 = vmatprep.subr.mxu0 0.0
    %1563 = vmatpush1.msra.mxu0 0.0
    %1564 = vmatprep.subr.mxu0 0.0
    %1565 = vmatpush1.msra.mxu0 0.0
    %1566 = vmatprep.subr.mxu0 0.0
    %1567 = vmatpush1.msra.mxu0 0.0
    %1568 = vmatprep.subr.mxu0 0.0
    %1569 = vmatpush1.msra.mxu0 0.0
    %1570 = vmatprep.subr.mxu0 0.0
    %1571 = vmatpush1.msra.mxu0 0.0
    %1572 = vmatprep.subr.mxu0 0.0
    %1573 = vmatpush1.msra.mxu0 0.0
    %1574 = vmatprep.subr.mxu0 0.0
    %1575 = vmatpush1.msra.mxu0 0.0
    %1576 = vmatprep.subr.mxu0 0.0
    %1577 = vmatpush1.msra.mxu0 0.0
    %1578 = vmatprep.subr.mxu0 0.0
    %1579 = vmatpush1.msra.mxu0 0.0
    %1580 = vmatprep.subr.mxu0 0.0
    %1581 = vmatpush1.msra.mxu0 0.0
    %1582 = vmatprep.subr.mxu0 0.0
    %1583 = vmatpush1.msra.mxu0 0.0
    %1584 = vmatprep.subr.mxu0 0.0
    %1585 = vmatpush1.msra.mxu0 0.0
    %1586 = vmatprep.subr.mxu0 0.0
    %1587 = vmatpush1.msra.mxu0 0.0
    %1588 = vmatprep.subr.mxu0 0.0
    %1589 = vmatpush1.msra.mxu0 0.0
    %1590 = vmatprep.subr.mxu0 0.0
    %1591 = vmatpush1.msra.mxu0 0.0
    %1592 = vmatprep.subr.mxu0 0.0
    %1593 = vmatpush1.msra.mxu0 0.0
    %1594 = vmatprep.subr.mxu0 0.0
    %1595 = vmatpush1.msra.mxu0 0.0
    %1596 = vmatprep.mubr.f32.mxu0 0.0
    %1597 = vmatmul.mubr.f32.gmra.mrb[0].mxu0 %v1530
    %v1598 = vpop.f32.mrb[0].mxu0
    %v1599 = vadd.f32 0.0, %v1598
    %v1600 = vpop.f32.mrb[0].mxu0
    %1601 = vdwg.mxu0
    %v1603 = vrot.slane %v1599, 2
    %v1605 = vadd.f32 %v205, %v1603
    %v1606 = vxor.u32 %v1605, 2147483648
    %v1607 = vmul.f32 %v1606, 1.442695
    %v1608 = vpow.pop %v1607
    %v1609 = vadd.f32 %v1608, 1.0
    %v1610 = vrcp.pop %v1609
    %v1611 = vmul.f32 1.0, %v1610
    %v1612 = vtanh.pop %v1605
    %v1614 = vrot.slane %v1518, 2
    %v1616 = vmul.f32 %v1611, %v1614
    %1618 = vrot.lane.b32.xlu0 %v1612, 32
    %v1619 = vpop.permute.xlu0 %1618
    %v1621 = vmul.f32 %v1611, %v1619
    %1623 = vrot.lane.b32.xlu0 %v1621, 32
    %v1624 = vpop.permute.xlu0 %1623
    %v1626 = vadd.f32 %v1616, %v1624
    %v1627 = vtanh.pop %v1626
    %1629 = vrot.lane.b32.xlu0 %v1627, 32
    %v1630 = vpop.permute.xlu0 %1629
    %v1632 = vmul.f32 %v1611, %v1630
    %1634 = vrot.lane.b32.xlu0 %v1632, 64
    %v1635 = vpop.permute.xlu0 %1634
    %1637 = vst.msk [vmem:[#allocation3] sm:$0xc0] %vm652, %v1635
    %v1638 = vrot.slane %v1632, 6
    %1639 = vrot.lane.b32.xlu0 %v1638, 64
    %v1640 = vpop.permute.xlu0 %1639
    %v1641 = vsel %vm43, %v1640, 0
    %1643 = vmatprep.subr.mxu0 0.0
    %1644 = vmatpush1.msra.mxu0 %v1093
    %1645 = vmatprep.subr.mxu0 0.0
    %1646 = vmatpush1.msra.mxu0 %v1094
    %1647 = vmatprep.subr.mxu0 0.0
    %1648 = vmatpush1.msra.mxu0 %v1095
    %1649 = vmatprep.subr.mxu0 0.0
    %1650 = vmatpush1.msra.mxu0 %v1096
    %1651 = vmatprep.subr.mxu0 0.0
    %1652 = vmatpush1.msra.mxu0 0.0
    %1653 = vmatprep.subr.mxu0 0.0
    %1654 = vmatpush1.msra.mxu0 0.0
    %1655 = vmatprep.subr.mxu0 0.0
    %1656 = vmatpush1.msra.mxu0 0.0
    %1657 = vmatprep.subr.mxu0 0.0
    %1658 = vmatpush1.msra.mxu0 0.0
    %1659 = vmatprep.subr.mxu0 0.0
    %1660 = vmatpush1.msra.mxu0 0.0
    %1661 = vmatprep.subr.mxu0 0.0
    %1662 = vmatpush1.msra.mxu0 0.0
    %1663 = vmatprep.subr.mxu0 0.0
    %1664 = vmatpush1.msra.mxu0 0.0
    %1665 = vmatprep.subr.mxu0 0.0
    %1666 = vmatpush1.msra.mxu0 0.0
    %1667 = vmatprep.subr.mxu0 0.0
    %1668 = vmatpush1.msra.mxu0 0.0
    %1669 = vmatprep.subr.mxu0 0.0
    %1670 = vmatpush1.msra.mxu0 0.0
    %1671 = vmatprep.subr.mxu0 0.0
    %1672 = vmatpush1.msra.mxu0 0.0
    %1673 = vmatprep.subr.mxu0 0.0
    %1674 = vmatpush1.msra.mxu0 0.0
    %1675 = vmatprep.subr.mxu0 0.0
    %1676 = vmatpush1.msra.mxu0 0.0
    %1677 = vmatprep.subr.mxu0 0.0
    %1678 = vmatpush1.msra.mxu0 0.0
    %1679 = vmatprep.subr.mxu0 0.0
    %1680 = vmatpush1.msra.mxu0 0.0
    %1681 = vmatprep.subr.mxu0 0.0
    %1682 = vmatpush1.msra.mxu0 0.0
    %1683 = vmatprep.subr.mxu0 0.0
    %1684 = vmatpush1.msra.mxu0 0.0
    %1685 = vmatprep.subr.mxu0 0.0
    %1686 = vmatpush1.msra.mxu0 0.0
    %1687 = vmatprep.subr.mxu0 0.0
    %1688 = vmatpush1.msra.mxu0 0.0
    %1689 = vmatprep.subr.mxu0 0.0
    %1690 = vmatpush1.msra.mxu0 0.0
    %1691 = vmatprep.subr.mxu0 0.0
    %1692 = vmatpush1.msra.mxu0 0.0
    %1693 = vmatprep.subr.mxu0 0.0
    %1694 = vmatpush1.msra.mxu0 0.0
    %1695 = vmatprep.subr.mxu0 0.0
    %1696 = vmatpush1.msra.mxu0 0.0
    %1697 = vmatprep.subr.mxu0 0.0
    %1698 = vmatpush1.msra.mxu0 0.0
    %1699 = vmatprep.subr.mxu0 0.0
    %1700 = vmatpush1.msra.mxu0 0.0
    %1701 = vmatprep.subr.mxu0 0.0
    %1702 = vmatpush1.msra.mxu0 0.0
    %1703 = vmatprep.subr.mxu0 0.0
    %1704 = vmatpush1.msra.mxu0 0.0
    %1705 = vmatprep.subr.mxu0 0.0
    %1706 = vmatpush1.msra.mxu0 0.0
    %1707 = vmatprep.mubr.f32.mxu0 0.0
    %1708 = vmatmul.mubr.f32.gmra.mrb[0].mxu0 %v1641
    %v1709 = vpop.f32.mrb[0].mxu0
    %v1710 = vadd.f32 0.0, %v1709
    %v1711 = vpop.f32.mrb[0].mxu0
    %1712 = vdwg.mxu0
    %v1714 = vrot.slane %v1710, 4
    %v1716 = vadd.f32 %v205, %v1714
    %v1717 = vxor.u32 %v1716, 2147483648
    %v1718 = vmul.f32 %v1717, 1.442695
    %v1719 = vpow.pop %v1718
    %v1720 = vadd.f32 %v1719, 1.0
    %v1721 = vrcp.pop %v1720
    %v1722 = vmul.f32 1.0, %v1721
    %v1723 = vtanh.pop %v1716
    %v1725 = vrot.slane %v1626, 2
    %v1727 = vmul.f32 %v1722, %v1725
    %1729 = vrot.lane.b32.xlu0 %v1723, 32
    %v1730 = vpop.permute.xlu0 %1729
    %v1732 = vmul.f32 %v1722, %v1730
    %1734 = vrot.lane.b32.xlu0 %v1732, 32
    %v1735 = vpop.permute.xlu0 %1734
    %v1737 = vadd.f32 %v1727, %v1735
    %v1738 = vtanh.pop %v1737
    %1740 = vrot.lane.b32.xlu0 %v1738, 32
    %v1741 = vpop.permute.xlu0 %1740
    %v1743 = vmul.f32 %v1722, %v1741
    %1745 = vrot.lane.b32.xlu0 %v1743, 64
    %v1746 = vpop.permute.xlu0 %1745
    %1748 = vst.msk [vmem:[#allocation3] sm:$0x30] %vm540, %v1746
    %v1749 = vrot.slane %v1743, 4
    %1750 = vrot.lane.b32.xlu0 %v1749, 64
    %v1751 = vpop.permute.xlu0 %1750
    %v1752 = vsel %vm43, %v1751, 0
    %1754 = vmatprep.subr.mxu0 0.0
    %1755 = vmatpush1.msra.mxu0 %v1093
    %1756 = vmatprep.subr.mxu0 0.0
    %1757 = vmatpush1.msra.mxu0 %v1094
    %1758 = vmatprep.subr.mxu0 0.0
    %1759 = vmatpush1.msra.mxu0 %v1095
    %1760 = vmatprep.subr.mxu0 0.0
    %1761 = vmatpush1.msra.mxu0 %v1096
    %1762 = vmatprep.subr.mxu0 0.0
    %1763 = vmatpush1.msra.mxu0 0.0
    %1764 = vmatprep.subr.mxu0 0.0
    %1765 = vmatpush1.msra.mxu0 0.0
    %1766 = vmatprep.subr.mxu0 0.0
    %1767 = vmatpush1.msra.mxu0 0.0
    %1768 = vmatprep.subr.mxu0 0.0
    %1769 = vmatpush1.msra.mxu0 0.0
    %1770 = vmatprep.subr.mxu0 0.0
    %1771 = vmatpush1.msra.mxu0 0.0
    %1772 = vmatprep.subr.mxu0 0.0
    %1773 = vmatpush1.msra.mxu0 0.0
    %1774 = vmatprep.subr.mxu0 0.0
    %1775 = vmatpush1.msra.mxu0 0.0
    %1776 = vmatprep.subr.mxu0 0.0
    %1777 = vmatpush1.msra.mxu0 0.0
    %1778 = vmatprep.subr.mxu0 0.0
    %1779 = vmatpush1.msra.mxu0 0.0
    %1780 = vmatprep.subr.mxu0 0.0
    %1781 = vmatpush1.msra.mxu0 0.0
    %1782 = vmatprep.subr.mxu0 0.0
    %1783 = vmatpush1.msra.mxu0 0.0
    %1784 = vmatprep.subr.mxu0 0.0
    %1785 = vmatpush1.msra.mxu0 0.0
    %1786 = vmatprep.subr.mxu0 0.0
    %1787 = vmatpush1.msra.mxu0 0.0
    %1788 = vmatprep.subr.mxu0 0.0
    %1789 = vmatpush1.msra.mxu0 0.0
    %1790 = vmatprep.subr.mxu0 0.0
    %1791 = vmatpush1.msra.mxu0 0.0
    %1792 = vmatprep.subr.mxu0 0.0
    %1793 = vmatpush1.msra.mxu0 0.0
    %1794 = vmatprep.subr.mxu0 0.0
    %1795 = vmatpush1.msra.mxu0 0.0
    %1796 = vmatprep.subr.mxu0 0.0
    %1797 = vmatpush1.msra.mxu0 0.0
    %1798 = vmatprep.subr.mxu0 0.0
    %1799 = vmatpush1.msra.mxu0 0.0
    %1800 = vmatprep.subr.mxu0 0.0
    %1801 = vmatpush1.msra.mxu0 0.0
    %1802 = vmatprep.subr.mxu0 0.0
    %1803 = vmatpush1.msra.mxu0 0.0
    %1804 = vmatprep.subr.mxu0 0.0
    %1805 = vmatpush1.msra.mxu0 0.0
    %1806 = vmatprep.subr.mxu0 0.0
    %1807 = vmatpush1.msra.mxu0 0.0
    %1808 = vmatprep.subr.mxu0 0.0
    %1809 = vmatpush1.msra.mxu0 0.0
    %1810 = vmatprep.subr.mxu0 0.0
    %1811 = vmatpush1.msra.mxu0 0.0
    %1812 = vmatprep.subr.mxu0 0.0
    %1813 = vmatpush1.msra.mxu0 0.0
    %1814 = vmatprep.subr.mxu0 0.0
    %1815 = vmatpush1.msra.mxu0 0.0
    %1816 = vmatprep.subr.mxu0 0.0
    %1817 = vmatpush1.msra.mxu0 0.0
    %1818 = vmatprep.mubr.f32.mxu0 0.0
    %1819 = vmatmul.mubr.f32.gmra.mrb[0].mxu0 %v1752
    %v1820 = vpop.f32.mrb[0].mxu0
    %v1821 = vadd.f32 0.0, %v1820
    %v1822 = vpop.f32.mrb[0].mxu0
    %1823 = vdwg.mxu0
    %v1825 = vrot.slane %v1821, 6
    %v1827 = vadd.f32 %v205, %v1825
    %v1828 = vxor.u32 %v1827, 2147483648
    %v1829 = vmul.f32 %v1828, 1.442695
    %v1830 = vpow.pop %v1829
    %v1831 = vadd.f32 %v1830, 1.0
    %v1832 = vrcp.pop %v1831
    %v1833 = vmul.f32 1.0, %v1832
    %v1834 = vtanh.pop %v1827
    %v1836 = vrot.slane %v1737, 2
    %v1838 = vmul.f32 %v1833, %v1836
    %1840 = vrot.lane.b32.xlu0 %v1834, 32
    %v1841 = vpop.permute.xlu0 %1840
    %v1843 = vmul.f32 %v1833, %v1841
    %1845 = vrot.lane.b32.xlu0 %v1843, 32
    %v1846 = vpop.permute.xlu0 %1845
    %v1848 = vadd.f32 %v1838, %v1846
    %v1849 = vtanh.pop %v1848
    %1851 = vrot.lane.b32.xlu0 %v1849, 32
    %v1852 = vpop.permute.xlu0 %1851
    %v1854 = vmul.f32 %v1833, %v1852
    %1856 = vrot.lane.b32.xlu0 %v1854, 64
    %v1857 = vpop.permute.xlu0 %1856
    %1859 = vst.msk [vmem:[#allocation3] sm:$0xc] %vm428, %v1857
    %v1860 = vrot.slane %v1854, 2
    %1861 = vrot.lane.b32.xlu0 %v1860, 64
    %v1862 = vpop.permute.xlu0 %1861
    %v1863 = vsel %vm43, %v1862, 0
    %1865 = vmatprep.subr.mxu0 0.0
    %1866 = vmatpush1.msra.mxu0 %v1093
    %1867 = vmatprep.subr.mxu0 0.0
    %1868 = vmatpush1.msra.mxu0 %v1094
    %1869 = vmatprep.subr.mxu0 0.0
    %1870 = vmatpush1.msra.mxu0 %v1095
    %1871 = vmatprep.subr.mxu0 0.0
    %1872 = vmatpush1.msra.mxu0 %v1096
    %1873 = vmatprep.subr.mxu0 0.0
    %1874 = vmatpush1.msra.mxu0 0.0
    %1875 = vmatprep.subr.mxu0 0.0
    %1876 = vmatpush1.msra.mxu0 0.0
    %1877 = vmatprep.subr.mxu0 0.0
    %1878 = vmatpush1.msra.mxu0 0.0
    %1879 = vmatprep.subr.mxu0 0.0
    %1880 = vmatpush1.msra.mxu0 0.0
    %1881 = vmatprep.subr.mxu0 0.0
    %1882 = vmatpush1.msra.mxu0 0.0
    %1883 = vmatprep.subr.mxu0 0.0
    %1884 = vmatpush1.msra.mxu0 0.0
    %1885 = vmatprep.subr.mxu0 0.0
    %1886 = vmatpush1.msra.mxu0 0.0
    %1887 = vmatprep.subr.mxu0 0.0
    %1888 = vmatpush1.msra.mxu0 0.0
    %1889 = vmatprep.subr.mxu0 0.0
    %1890 = vmatpush1.msra.mxu0 0.0
    %1891 = vmatprep.subr.mxu0 0.0
    %1892 = vmatpush1.msra.mxu0 0.0
    %1893 = vmatprep.subr.mxu0 0.0
    %1894 = vmatpush1.msra.mxu0 0.0
    %1895 = vmatprep.subr.mxu0 0.0
    %1896 = vmatpush1.msra.mxu0 0.0
    %1897 = vmatprep.subr.mxu0 0.0
    %1898 = vmatpush1.msra.mxu0 0.0
    %1899 = vmatprep.subr.mxu0 0.0
    %1900 = vmatpush1.msra.mxu0 0.0
    %1901 = vmatprep.subr.mxu0 0.0
    %1902 = vmatpush1.msra.mxu0 0.0
    %1903 = vmatprep.subr.mxu0 0.0
    %1904 = vmatpush1.msra.mxu0 0.0
    %1905 = vmatprep.subr.mxu0 0.0
    %1906 = vmatpush1.msra.mxu0 0.0
    %1907 = vmatprep.subr.mxu0 0.0
    %1908 = vmatpush1.msra.mxu0 0.0
    %1909 = vmatprep.subr.mxu0 0.0
    %1910 = vmatpush1.msra.mxu0 0.0
    %1911 = vmatprep.subr.mxu0 0.0
    %1912 = vmatpush1.msra.mxu0 0.0
    %1913 = vmatprep.subr.mxu0 0.0
    %1914 = vmatpush1.msra.mxu0 0.0
    %1915 = vmatprep.subr.mxu0 0.0
    %1916 = vmatpush1.msra.mxu0 0.0
    %1917 = vmatprep.subr.mxu0 0.0
    %1918 = vmatpush1.msra.mxu0 0.0
    %1919 = vmatprep.subr.mxu0 0.0
    %1920 = vmatpush1.msra.mxu0 0.0
    %1921 = vmatprep.subr.mxu0 0.0
    %1922 = vmatpush1.msra.mxu0 0.0
    %1923 = vmatprep.subr.mxu0 0.0
    %1924 = vmatpush1.msra.mxu0 0.0
    %1925 = vmatprep.subr.mxu0 0.0
    %1926 = vmatpush1.msra.mxu0 0.0
    %1927 = vmatprep.subr.mxu0 0.0
    %1928 = vmatpush1.msra.mxu0 0.0
    %1929 = vmatprep.mubr.f32.mxu0 0.0
    %1930 = vmatmul.mubr.f32.gmra.mrb[0].mxu0 %v1863
    %v1931 = vpop.f32.mrb[0].mxu0
    %v1932 = vadd.f32 0.0, %v1931
    %v1933 = vpop.f32.mrb[0].mxu0
    %1934 = vdwg.mxu0
    %v1935 = vadd.f32 %v205, %v1932
    %v1936 = vxor.u32 %v1935, 2147483648
    %v1937 = vmul.f32 %v1936, 1.442695
    %v1938 = vpow.pop %v1937
    %v1939 = vadd.f32 %v1938, 1.0
    %v1940 = vrcp.pop %v1939
    %v1941 = vmul.f32 1.0, %v1940
    %v1942 = vtanh.pop %v1935
    %v1944 = vrot.slane %v1848, 2
    %v1946 = vmul.f32 %v1941, %v1944
    %1948 = vrot.lane.b32.xlu0 %v1942, 32
    %v1949 = vpop.permute.xlu0 %1948
    %v1951 = vmul.f32 %v1941, %v1949
    %1953 = vrot.lane.b32.xlu0 %v1951, 32
    %v1954 = vpop.permute.xlu0 %1953
    %v1956 = vadd.f32 %v1946, %v1954
    %v1957 = vtanh.pop %v1956
    %1959 = vrot.lane.b32.xlu0 %v1957, 32
    %v1960 = vpop.permute.xlu0 %1959
    %v1962 = vmul.f32 %v1941, %v1960
    %1964 = vrot.lane.b32.xlu0 %v1962, 64
    %v1965 = vpop.permute.xlu0 %1964
    %1967 = vst.msk [vmem:[#allocation3] sm:$0x3] %vm319, %v1965
    %v1968 = vld [vmem:[#allocation2] sm:$0xff]
    %v1969 = vld [vmem:[#allocation2 + $0x8] sm:$0xff]
    %v1970 = vld [vmem:[#allocation3] sm:$0xff]
    %v1971 = vld [vmem:[#allocation3 + $0x8] sm:$0xff]
    %v1972 = vld [vmem:[%s4] sm:$0xff]
    %v1973 = vld [vmem:[%s4 + $0x8] sm:$0xff]
    %v1974 = vld [vmem:[%s4 + $0x10] sm:$0xff]
    %v1975 = vld [vmem:[%s4 + $0x18] sm:$0xff]
    %v1976 = vld [vmem:[%s5] sm:$0xff]
    %v1977 = vld [vmem:[%s5 + $0x8] sm:$0xff]
    %v1978 = vld [vmem:[%s5 + $0x10] sm:$0xff]
    %v1979 = vld [vmem:[%s5 + $0x18] sm:$0xff]
    %v1981 = vsel %vm43, %v1970, 0
    %v1984 = vsel %vm43, %v1971, 0
    %1986 = vmatprep.subr.mxu0 0.0
    %1987 = vmatpush1.msra.mxu0 %v1976
    %1988 = vmatprep.subr.mxu0 0.0
    %1989 = vmatpush1.msra.mxu0 %v1977
    %1990 = vmatprep.subr.mxu0 0.0
    %1991 = vmatpush1.msra.mxu0 %v1978
    %1992 = vmatprep.subr.mxu0 0.0
    %1993 = vmatpush1.msra.mxu0 %v1979
    %1994 = vmatprep.subr.mxu0 0.0
    %1995 = vmatpush1.msra.mxu0 0.0
    %1996 = vmatprep.subr.mxu0 0.0
    %1997 = vmatpush1.msra.mxu0 0.0
    %1998 = vmatprep.subr.mxu0 0.0
    %1999 = vmatpush1.msra.mxu0 0.0
    %2000 = vmatprep.subr.mxu0 0.0
    %2001 = vmatpush1.msra.mxu0 0.0
    %2002 = vmatprep.subr.mxu0 0.0
    %2003 = vmatpush1.msra.mxu0 0.0
    %2004 = vmatprep.subr.mxu0 0.0
    %2005 = vmatpush1.msra.mxu0 0.0
    %2006 = vmatprep.subr.mxu0 0.0
    %2007 = vmatpush1.msra.mxu0 0.0
    %2008 = vmatprep.subr.mxu0 0.0
    %2009 = vmatpush1.msra.mxu0 0.0
    %2010 = vmatprep.subr.mxu0 0.0
    %2011 = vmatpush1.msra.mxu0 0.0
    %2012 = vmatprep.subr.mxu0 0.0
    %2013 = vmatpush1.msra.mxu0 0.0
    %2014 = vmatprep.subr.mxu0 0.0
    %2015 = vmatpush1.msra.mxu0 0.0
    %2016 = vmatprep.subr.mxu0 0.0
    %2017 = vmatpush1.msra.mxu0 0.0
    %2018 = vmatprep.subr.mxu0 0.0
    %2019 = vmatpush1.msra.mxu0 0.0
    %2020 = vmatprep.subr.mxu0 0.0
    %2021 = vmatpush1.msra.mxu0 0.0
    %2022 = vmatprep.subr.mxu0 0.0
    %2023 = vmatpush1.msra.mxu0 0.0
    %2024 = vmatprep.subr.mxu0 0.0
    %2025 = vmatpush1.msra.mxu0 0.0
    %2026 = vmatprep.subr.mxu0 0.0
    %2027 = vmatpush1.msra.mxu0 0.0
    %2028 = vmatprep.subr.mxu0 0.0
    %2029 = vmatpush1.msra.mxu0 0.0
    %2030 = vmatprep.subr.mxu0 0.0
    %2031 = vmatpush1.msra.mxu0 0.0
    %2032 = vmatprep.subr.mxu0 0.0
    %2033 = vmatpush1.msra.mxu0 0.0
    %2034 = vmatprep.subr.mxu0 0.0
    %2035 = vmatpush1.msra.mxu0 0.0
    %2036 = vmatprep.subr.mxu0 0.0
    %2037 = vmatpush1.msra.mxu0 0.0
    %2038 = vmatprep.subr.mxu0 0.0
    %2039 = vmatpush1.msra.mxu0 0.0
    %2040 = vmatprep.subr.mxu0 0.0
    %2041 = vmatpush1.msra.mxu0 0.0
    %2042 = vmatprep.subr.mxu0 0.0
    %2043 = vmatpush1.msra.mxu0 0.0
    %2044 = vmatprep.subr.mxu0 0.0
    %2045 = vmatpush1.msra.mxu0 0.0
    %2046 = vmatprep.subr.mxu0 0.0
    %2047 = vmatpush1.msra.mxu0 0.0
    %2048 = vmatprep.subr.mxu0 0.0
    %2049 = vmatpush1.msra.mxu0 0.0
    %2050 = vmatprep.mubr.f32.mxu0 0.0
    %2051 = vmatmul.mubr.f32.gmra.mrb[0].mxu0 %v1981
    %v2052 = vpop.f32.mrb[0].mxu0
    %v2053 = vadd.f32 0.0, %v2052
    %v2054 = vpop.f32.mrb[0].mxu0
    %2055 = vmatprep.mubr.f32.mxu0 0.0
    %2056 = vmatmul.mubr.f32.gmra.mrb[0].mxu0 %v1984
    %v2057 = vpop.f32.mrb[0].mxu0
    %v2058 = vadd.f32 0.0, %v2057
    %v2059 = vpop.f32.mrb[0].mxu0
    %2060 = vdwg.mxu0
    %v2062 = vsel %vm43, %v1968, 0
    %v2065 = vsel %vm43, %v1969, 0
    %2067 = vmatprep.subr.mxu0 0.0
    %2068 = vmatpush1.msra.mxu0 %v1972
    %2069 = vmatprep.subr.mxu0 0.0
    %2070 = vmatpush1.msra.mxu0 %v1973
    %2071 = vmatprep.subr.mxu0 0.0
    %2072 = vmatpush1.msra.mxu0 %v1974
    %2073 = vmatprep.subr.mxu0 0.0
    %2074 = vmatpush1.msra.mxu0 %v1975
    %2075 = vmatprep.subr.mxu0 0.0
    %2076 = vmatpush1.msra.mxu0 0.0
    %2077 = vmatprep.subr.mxu0 0.0
    %2078 = vmatpush1.msra.mxu0 0.0
    %2079 = vmatprep.subr.mxu0 0.0
    %2080 = vmatpush1.msra.mxu0 0.0
    %2081 = vmatprep.subr.mxu0 0.0
    %2082 = vmatpush1.msra.mxu0 0.0
    %2083 = vmatprep.subr.mxu0 0.0
    %2084 = vmatpush1.msra.mxu0 0.0
    %2085 = vmatprep.subr.mxu0 0.0
    %2086 = vmatpush1.msra.mxu0 0.0
    %2087 = vmatprep.subr.mxu0 0.0
    %2088 = vmatpush1.msra.mxu0 0.0
    %2089 = vmatprep.subr.mxu0 0.0
    %2090 = vmatpush1.msra.mxu0 0.0
    %2091 = vmatprep.subr.mxu0 0.0
    %2092 = vmatpush1.msra.mxu0 0.0
    %2093 = vmatprep.subr.mxu0 0.0
    %2094 = vmatpush1.msra.mxu0 0.0
    %2095 = vmatprep.subr.mxu0 0.0
    %2096 = vmatpush1.msra.mxu0 0.0
    %2097 = vmatprep.subr.mxu0 0.0
    %2098 = vmatpush1.msra.mxu0 0.0
    %2099 = vmatprep.subr.mxu0 0.0
    %2100 = vmatpush1.msra.mxu0 0.0
    %2101 = vmatprep.subr.mxu0 0.0
    %2102 = vmatpush1.msra.mxu0 0.0
    %2103 = vmatprep.subr.mxu0 0.0
    %2104 = vmatpush1.msra.mxu0 0.0
    %2105 = vmatprep.subr.mxu0 0.0
    %2106 = vmatpush1.msra.mxu0 0.0
    %2107 = vmatprep.subr.mxu0 0.0
    %2108 = vmatpush1.msra.mxu0 0.0
    %2109 = vmatprep.subr.mxu0 0.0
    %2110 = vmatpush1.msra.mxu0 0.0
    %2111 = vmatprep.subr.mxu0 0.0
    %2112 = vmatpush1.msra.mxu0 0.0
    %2113 = vmatprep.subr.mxu0 0.0
    %2114 = vmatpush1.msra.mxu0 0.0
    %2115 = vmatprep.subr.mxu0 0.0
    %2116 = vmatpush1.msra.mxu0 0.0
    %2117 = vmatprep.subr.mxu0 0.0
    %2118 = vmatpush1.msra.mxu0 0.0
    %2119 = vmatprep.subr.mxu0 0.0
    %2120 = vmatpush1.msra.mxu0 0.0
    %2121 = vmatprep.subr.mxu0 0.0
    %2122 = vmatpush1.msra.mxu0 0.0
    %2123 = vmatprep.subr.mxu0 0.0
    %2124 = vmatpush1.msra.mxu0 0.0
    %2125 = vmatprep.subr.mxu0 0.0
    %2126 = vmatpush1.msra.mxu0 0.0
    %2127 = vmatprep.subr.mxu0 0.0
    %2128 = vmatpush1.msra.mxu0 0.0
    %2129 = vmatprep.subr.mxu0 0.0
    %2130 = vmatpush1.msra.mxu0 0.0
    %2131 = vmatprep.mubr.f32.mxu0 0.0
    %2132 = vmatmul.mubr.f32.gmra.mrb[0].mxu0 %v2062
    %v2133 = vpop.f32.mrb[0].mxu0
    %v2134 = vadd.f32 %v2053, %v2133
    %v2135 = vpop.f32.mrb[0].mxu0
    %2136 = vmatprep.mubr.f32.mxu0 0.0
    %2137 = vmatmul.mubr.f32.gmra.mrb[0].mxu0 %v2065
    %v2138 = vpop.f32.mrb[0].mxu0
    %v2139 = vadd.f32 %v2058, %v2138
    %v2140 = vpop.f32.mrb[0].mxu0
    %2141 = vdwg.mxu0
    %v2142 = vld [vmem:[%s7] sm:$0x1]
    %v2144 = vlaneseq
    %v2145 = vshrl.u32 %v2144, 7
    %v2146 = vsub.s32 0, %v2145
    %v2147 = vrot.slane %v2142, %v2146
    %v2149 = vadd.f32 %v2134, %v2147
    %v2150 = vadd.f32 %v2139, %v2147
    %s2151 = scalar_lea.vmem %s4, 32
    %v2152 = vld [vmem:[%s2151] sm:$0xff]
    %v2153 = vld [vmem:[%s2151 + $0x8] sm:$0xff]
    %v2154 = vld [vmem:[%s2151 + $0x10] sm:$0xff]
    %v2155 = vld [vmem:[%s2151 + $0x18] sm:$0xff]
    %s2156 = scalar_lea.vmem %s5, 32
    %v2157 = vld [vmem:[%s2156] sm:$0xff]
    %v2158 = vld [vmem:[%s2156 + $0x8] sm:$0xff]
    %v2159 = vld [vmem:[%s2156 + $0x10] sm:$0xff]
    %v2160 = vld [vmem:[%s2156 + $0x18] sm:$0xff]
    %2161 = vmatprep.subr.mxu0 0.0
    %2162 = vmatpush1.msra.mxu0 %v2157
    %2163 = vmatprep.subr.mxu0 0.0
    %2164 = vmatpush1.msra.mxu0 %v2158
    %2165 = vmatprep.subr.mxu0 0.0
    %2166 = vmatpush1.msra.mxu0 %v2159
    %2167 = vmatprep.subr.mxu0 0.0
    %2168 = vmatpush1.msra.mxu0 %v2160
    %2169 = vmatprep.subr.mxu0 0.0
    %2170 = vmatpush1.msra.mxu0 0.0
    %2171 = vmatprep.subr.mxu0 0.0
    %2172 = vmatpush1.msra.mxu0 0.0
    %2173 = vmatprep.subr.mxu0 0.0
    %2174 = vmatpush1.msra.mxu0 0.0
    %2175 = vmatprep.subr.mxu0 0.0
    %2176 = vmatpush1.msra.mxu0 0.0
    %2177 = vmatprep.subr.mxu0 0.0
    %2178 = vmatpush1.msra.mxu0 0.0
    %2179 = vmatprep.subr.mxu0 0.0
    %2180 = vmatpush1.msra.mxu0 0.0
    %2181 = vmatprep.subr.mxu0 0.0
    %2182 = vmatpush1.msra.mxu0 0.0
    %2183 = vmatprep.subr.mxu0 0.0
    %2184 = vmatpush1.msra.mxu0 0.0
    %2185 = vmatprep.subr.mxu0 0.0
    %2186 = vmatpush1.msra.mxu0 0.0
    %2187 = vmatprep.subr.mxu0 0.0
    %2188 = vmatpush1.msra.mxu0 0.0
    %2189 = vmatprep.subr.mxu0 0.0
    %2190 = vmatpush1.msra.mxu0 0.0
    %2191 = vmatprep.subr.mxu0 0.0
    %2192 = vmatpush1.msra.mxu0 0.0
    %2193 = vmatprep.subr.mxu0 0.0
    %2194 = vmatpush1.msra.mxu0 0.0
    %2195 = vmatprep.subr.mxu0 0.0
    %2196 = vmatpush1.msra.mxu0 0.0
    %2197 = vmatprep.subr.mxu0 0.0
    %2198 = vmatpush1.msra.mxu0 0.0
    %2199 = vmatprep.subr.mxu0 0.0
    %2200 = vmatpush1.msra.mxu0 0.0
    %2201 = vmatprep.subr.mxu0 0.0
    %2202 = vmatpush1.msra.mxu0 0.0
    %2203 = vmatprep.subr.mxu0 0.0
    %2204 = vmatpush1.msra.mxu0 0.0
    %2205 = vmatprep.subr.mxu0 0.0
    %2206 = vmatpush1.msra.mxu0 0.0
    %2207 = vmatprep.subr.mxu0 0.0
    %2208 = vmatpush1.msra.mxu0 0.0
    %2209 = vmatprep.subr.mxu0 0.0
    %2210 = vmatpush1.msra.mxu0 0.0
    %2211 = vmatprep.subr.mxu0 0.0
    %2212 = vmatpush1.msra.mxu0 0.0
    %2213 = vmatprep.subr.mxu0 0.0
    %2214 = vmatpush1.msra.mxu0 0.0
    %2215 = vmatprep.subr.mxu0 0.0
    %2216 = vmatpush1.msra.mxu0 0.0
    %2217 = vmatprep.subr.mxu0 0.0
    %2218 = vmatpush1.msra.mxu0 0.0
    %2219 = vmatprep.subr.mxu0 0.0
    %2220 = vmatpush1.msra.mxu0 0.0
    %2221 = vmatprep.subr.mxu0 0.0
    %2222 = vmatpush1.msra.mxu0 0.0
    %2223 = vmatprep.subr.mxu0 0.0
    %2224 = vmatpush1.msra.mxu0 0.0
    %2225 = vmatprep.mubr.f32.mxu0 0.0
    %2226 = vmatmul.mubr.f32.gmra.mrb[0].mxu0 %v1981
    %v2227 = vpop.f32.mrb[0].mxu0
    %v2228 = vadd.f32 0.0, %v2227
    %v2229 = vpop.f32.mrb[0].mxu0
    %2230 = vmatprep.mubr.f32.mxu0 0.0
    %2231 = vmatmul.mubr.f32.gmra.mrb[0].mxu0 %v1984
    %v2232 = vpop.f32.mrb[0].mxu0
    %v2233 = vadd.f32 0.0, %v2232
    %v2234 = vpop.f32.mrb[0].mxu0
    %2235 = vdwg.mxu0
    %2236 = vmatprep.subr.mxu0 0.0
    %2237 = vmatpush1.msra.mxu0 %v2152
    %2238 = vmatprep.subr.mxu0 0.0
    %2239 = vmatpush1.msra.mxu0 %v2153
    %2240 = vmatprep.subr.mxu0 0.0
    %2241 = vmatpush1.msra.mxu0 %v2154
    %2242 = vmatprep.subr.mxu0 0.0
    %2243 = vmatpush1.msra.mxu0 %v2155
    %2244 = vmatprep.subr.mxu0 0.0
    %2245 = vmatpush1.msra.mxu0 0.0
    %2246 = vmatprep.subr.mxu0 0.0
    %2247 = vmatpush1.msra.mxu0 0.0
    %2248 = vmatprep.subr.mxu0 0.0
    %2249 = vmatpush1.msra.mxu0 0.0
    %2250 = vmatprep.subr.mxu0 0.0
    %2251 = vmatpush1.msra.mxu0 0.0
    %2252 = vmatprep.subr.mxu0 0.0
    %2253 = vmatpush1.msra.mxu0 0.0
    %2254 = vmatprep.subr.mxu0 0.0
    %2255 = vmatpush1.msra.mxu0 0.0
    %2256 = vmatprep.subr.mxu0 0.0
    %2257 = vmatpush1.msra.mxu0 0.0
    %2258 = vmatprep.subr.mxu0 0.0
    %2259 = vmatpush1.msra.mxu0 0.0
    %2260 = vmatprep.subr.mxu0 0.0
    %2261 = vmatpush1.msra.mxu0 0.0
    %2262 = vmatprep.subr.mxu0 0.0
    %2263 = vmatpush1.msra.mxu0 0.0
    %2264 = vmatprep.subr.mxu0 0.0
    %2265 = vmatpush1.msra.mxu0 0.0
    %2266 = vmatprep.subr.mxu0 0.0
    %2267 = vmatpush1.msra.mxu0 0.0
    %2268 = vmatprep.subr.mxu0 0.0
    %2269 = vmatpush1.msra.mxu0 0.0
    %2270 = vmatprep.subr.mxu0 0.0
    %2271 = vmatpush1.msra.mxu0 0.0
    %2272 = vmatprep.subr.mxu0 0.0
    %2273 = vmatpush1.msra.mxu0 0.0
    %2274 = vmatprep.subr.mxu0 0.0
    %2275 = vmatpush1.msra.mxu0 0.0
    %2276 = vmatprep.subr.mxu0 0.0
    %2277 = vmatpush1.msra.mxu0 0.0
    %2278 = vmatprep.subr.mxu0 0.0
    %2279 = vmatpush1.msra.mxu0 0.0
    %2280 = vmatprep.subr.mxu0 0.0
    %2281 = vmatpush1.msra.mxu0 0.0
    %2282 = vmatprep.subr.mxu0 0.0
    %2283 = vmatpush1.msra.mxu0 0.0
    %2284 = vmatprep.subr.mxu0 0.0
    %2285 = vmatpush1.msra.mxu0 0.0
    %2286 = vmatprep.subr.mxu0 0.0
    %2287 = vmatpush1.msra.mxu0 0.0
    %2288 = vmatprep.subr.mxu0 0.0
    %2289 = vmatpush1.msra.mxu0 0.0
    %2290 = vmatprep.subr.mxu0 0.0
    %2291 = vmatpush1.msra.mxu0 0.0
    %2292 = vmatprep.subr.mxu0 0.0
    %2293 = vmatpush1.msra.mxu0 0.0
    %2294 = vmatprep.subr.mxu0 0.0
    %2295 = vmatpush1.msra.mxu0 0.0
    %2296 = vmatprep.subr.mxu0 0.0
    %2297 = vmatpush1.msra.mxu0 0.0
    %2298 = vmatprep.subr.mxu0 0.0
    %2299 = vmatpush1.msra.mxu0 0.0
    %2300 = vmatprep.mubr.f32.mxu0 0.0
    %2301 = vmatmul.mubr.f32.gmra.mrb[0].mxu0 %v2062
    %v2302 = vpop.f32.mrb[0].mxu0
    %v2303 = vadd.f32 %v2228, %v2302
    %v2304 = vpop.f32.mrb[0].mxu0
    %2305 = vmatprep.mubr.f32.mxu0 0.0
    %2306 = vmatmul.mubr.f32.gmra.mrb[0].mxu0 %v2065
    %v2307 = vpop.f32.mrb[0].mxu0
    %v2308 = vadd.f32 %v2233, %v2307
    %v2309 = vpop.f32.mrb[0].mxu0
    %2310 = vdwg.mxu0
    %s2311 = scalar_lea.vmem %s7, 1
    %v2312 = vld [vmem:[%s2311] sm:$0x1]
    %v2314 = vlaneseq
    %v2315 = vshrl.u32 %v2314, 7
    %v2316 = vsub.s32 0, %v2315
    %v2317 = vrot.slane %v2312, %v2316
    %v2319 = vadd.f32 %v2303, %v2317
    %v2320 = vadd.f32 %v2308, %v2317
    %v2321 = vld [vmem:[%s6] sm:$0xff]
    %v2322 = vld [vmem:[%s6 + $0x8] sm:$0xff]
    %v2323 = vld [vmem:[%s6 + $0x10] sm:$0xff]
    %v2324 = vld [vmem:[%s6 + $0x18] sm:$0xff]
    %2325 = vmatprep.subr.mxu0 0.0
    %2326 = vmatpush1.msra.mxu0 %v2321
    %2327 = vmatprep.subr.mxu0 0.0
    %2328 = vmatpush1.msra.mxu0 %v2322
    %2329 = vmatprep.subr.mxu0 0.0
    %2330 = vmatpush1.msra.mxu0 %v2323
    %2331 = vmatprep.subr.mxu0 0.0
    %2332 = vmatpush1.msra.mxu0 %v2324
    %2333 = vmatprep.subr.mxu0 0.0
    %2334 = vmatpush1.msra.mxu0 0.0
    %2335 = vmatprep.subr.mxu0 0.0
    %2336 = vmatpush1.msra.mxu0 0.0
    %2337 = vmatprep.subr.mxu0 0.0
    %2338 = vmatpush1.msra.mxu0 0.0
    %2339 = vmatprep.subr.mxu0 0.0
    %2340 = vmatpush1.msra.mxu0 0.0
    %2341 = vmatprep.subr.mxu0 0.0
    %2342 = vmatpush1.msra.mxu0 0.0
    %2343 = vmatprep.subr.mxu0 0.0
    %2344 = vmatpush1.msra.mxu0 0.0
    %2345 = vmatprep.subr.mxu0 0.0
    %2346 = vmatpush1.msra.mxu0 0.0
    %2347 = vmatprep.subr.mxu0 0.0
    %2348 = vmatpush1.msra.mxu0 0.0
    %2349 = vmatprep.subr.mxu0 0.0
    %2350 = vmatpush1.msra.mxu0 0.0
    %2351 = vmatprep.subr.mxu0 0.0
    %2352 = vmatpush1.msra.mxu0 0.0
    %2353 = vmatprep.subr.mxu0 0.0
    %2354 = vmatpush1.msra.mxu0 0.0
    %2355 = vmatprep.subr.mxu0 0.0
    %2356 = vmatpush1.msra.mxu0 0.0
    %2357 = vmatprep.subr.mxu0 0.0
    %2358 = vmatpush1.msra.mxu0 0.0
    %2359 = vmatprep.subr.mxu0 0.0
    %2360 = vmatpush1.msra.mxu0 0.0
    %2361 = vmatprep.subr.mxu0 0.0
    %2362 = vmatpush1.msra.mxu0 0.0
    %2363 = vmatprep.subr.mxu0 0.0
    %2364 = vmatpush1.msra.mxu0 0.0
    %2365 = vmatprep.subr.mxu0 0.0
    %2366 = vmatpush1.msra.mxu0 0.0
    %2367 = vmatprep.subr.mxu0 0.0
    %2368 = vmatpush1.msra.mxu0 0.0
    %2369 = vmatprep.subr.mxu0 0.0
    %2370 = vmatpush1.msra.mxu0 0.0
    %2371 = vmatprep.subr.mxu0 0.0
    %2372 = vmatpush1.msra.mxu0 0.0
    %2373 = vmatprep.subr.mxu0 0.0
    %2374 = vmatpush1.msra.mxu0 0.0
    %2375 = vmatprep.subr.mxu0 0.0
    %2376 = vmatpush1.msra.mxu0 0.0
    %2377 = vmatprep.subr.mxu0 0.0
    %2378 = vmatpush1.msra.mxu0 0.0
    %2379 = vmatprep.subr.mxu0 0.0
    %2380 = vmatpush1.msra.mxu0 0.0
    %2381 = vmatprep.subr.mxu0 0.0
    %2382 = vmatpush1.msra.mxu0 0.0
    %2383 = vmatprep.subr.mxu0 0.0
    %2384 = vmatpush1.msra.mxu0 0.0
    %2385 = vmatprep.subr.mxu0 0.0
    %2386 = vmatpush1.msra.mxu0 0.0
    %2387 = vmatprep.subr.mxu0 0.0
    %2388 = vmatpush1.msra.mxu0 0.0
    %2389 = vmatprep.mubr.f32.mxu0 0.0
    %2390 = vmatmul.mubr.f32.gmra.mrb[0].mxu0 %v218
    %v2391 = vpop.f32.mrb[0].mxu0
    %v2392 = vadd.f32 0.0, %v2391
    %v2393 = vpop.f32.mrb[0].mxu0
    %2394 = vdwg.mxu0
    %v2395 = vadd.f32 %v2149, %v2392
    %v2396 = vxor.u32 %v2395, 2147483648
    %v2397 = vmul.f32 %v2396, 1.442695
    %v2398 = vpow.pop %v2397
    %v2399 = vadd.f32 %v2398, 1.0
    %v2400 = vrcp.pop %v2399
    %v2401 = vmul.f32 1.0, %v2400
    %v2402 = vtanh.pop %v2395
    %v2403 = vmul.f32 %v2401, 0.0
    %2405 = vrot.lane.b32.xlu0 %v2402, 32
    %v2406 = vpop.permute.xlu0 %2405
    %v2408 = vmul.f32 %v2401, %v2406
    %2410 = vrot.lane.b32.xlu0 %v2408, 32
    %v2411 = vpop.permute.xlu0 %2410
    %v2413 = vadd.f32 %v2403, %v2411
    %v2414 = vtanh.pop %v2413
    %2416 = vrot.lane.b32.xlu0 %v2414, 32
    %v2417 = vpop.permute.xlu0 %2416
    %v2419 = vmul.f32 %v2401, %v2417
    %v2420 = vadd.f32 %v2419, 0.0
    %2422 = vrot.lane.b32.xlu0 %v2419, 64
    %v2423 = vpop.permute.xlu0 %2422
    %v2424 = vsel %vm43, %v2423, 0
    %2426 = vmatprep.subr.mxu0 0.0
    %2427 = vmatpush1.msra.mxu0 %v2321
    %2428 = vmatprep.subr.mxu0 0.0
    %2429 = vmatpush1.msra.mxu0 %v2322
    %2430 = vmatprep.subr.mxu0 0.0
    %2431 = vmatpush1.msra.mxu0 %v2323
    %2432 = vmatprep.subr.mxu0 0.0
    %2433 = vmatpush1.msra.mxu0 %v2324
    %2434 = vmatprep.subr.mxu0 0.0
    %2435 = vmatpush1.msra.mxu0 0.0
    %2436 = vmatprep.subr.mxu0 0.0
    %2437 = vmatpush1.msra.mxu0 0.0
    %2438 = vmatprep.subr.mxu0 0.0
    %2439 = vmatpush1.msra.mxu0 0.0
    %2440 = vmatprep.subr.mxu0 0.0
    %2441 = vmatpush1.msra.mxu0 0.0
    %2442 = vmatprep.subr.mxu0 0.0
    %2443 = vmatpush1.msra.mxu0 0.0
    %2444 = vmatprep.subr.mxu0 0.0
    %2445 = vmatpush1.msra.mxu0 0.0
    %2446 = vmatprep.subr.mxu0 0.0
    %2447 = vmatpush1.msra.mxu0 0.0
    %2448 = vmatprep.subr.mxu0 0.0
    %2449 = vmatpush1.msra.mxu0 0.0
    %2450 = vmatprep.subr.mxu0 0.0
    %2451 = vmatpush1.msra.mxu0 0.0
    %2452 = vmatprep.subr.mxu0 0.0
    %2453 = vmatpush1.msra.mxu0 0.0
    %2454 = vmatprep.subr.mxu0 0.0
    %2455 = vmatpush1.msra.mxu0 0.0
    %2456 = vmatprep.subr.mxu0 0.0
    %2457 = vmatpush1.msra.mxu0 0.0
    %2458 = vmatprep.subr.mxu0 0.0
    %2459 = vmatpush1.msra.mxu0 0.0
    %2460 = vmatprep.subr.mxu0 0.0
    %2461 = vmatpush1.msra.mxu0 0.0
    %2462 = vmatprep.subr.mxu0 0.0
    %2463 = vmatpush1.msra.mxu0 0.0
    %2464 = vmatprep.subr.mxu0 0.0
    %2465 = vmatpush1.msra.mxu0 0.0
    %2466 = vmatprep.subr.mxu0 0.0
    %2467 = vmatpush1.msra.mxu0 0.0
    %2468 = vmatprep.subr.mxu0 0.0
    %2469 = vmatpush1.msra.mxu0 0.0
    %2470 = vmatprep.subr.mxu0 0.0
    %2471 = vmatpush1.msra.mxu0 0.0
    %2472 = vmatprep.subr.mxu0 0.0
    %2473 = vmatpush1.msra.mxu0 0.0
    %2474 = vmatprep.subr.mxu0 0.0
    %2475 = vmatpush1.msra.mxu0 0.0
    %2476 = vmatprep.subr.mxu0 0.0
    %2477 = vmatpush1.msra.mxu0 0.0
    %2478 = vmatprep.subr.mxu0 0.0
    %2479 = vmatpush1.msra.mxu0 0.0
    %2480 = vmatprep.subr.mxu0 0.0
    %2481 = vmatpush1.msra.mxu0 0.0
    %2482 = vmatprep.subr.mxu0 0.0
    %2483 = vmatpush1.msra.mxu0 0.0
    %2484 = vmatprep.subr.mxu0 0.0
    %2485 = vmatpush1.msra.mxu0 0.0
    %2486 = vmatprep.subr.mxu0 0.0
    %2487 = vmatpush1.msra.mxu0 0.0
    %2488 = vmatprep.subr.mxu0 0.0
    %2489 = vmatpush1.msra.mxu0 0.0
    %2490 = vmatprep.mubr.f32.mxu0 0.0
    %2491 = vmatmul.mubr.f32.gmra.mrb[0].mxu0 %v2424
    %v2492 = vpop.f32.mrb[0].mxu0
    %v2493 = vadd.f32 0.0, %v2492
    %v2494 = vpop.f32.mrb[0].mxu0
    %2495 = vdwg.mxu0
    %v2497 = vrot.slane %v2493, 6
    %v2499 = vadd.f32 %v2149, %v2497
    %v2500 = vxor.u32 %v2499, 2147483648
    %v2501 = vmul.f32 %v2500, 1.442695
    %v2502 = vpow.pop %v2501
    %v2503 = vadd.f32 %v2502, 1.0
    %v2504 = vrcp.pop %v2503
    %v2505 = vmul.f32 1.0, %v2504
    %v2506 = vtanh.pop %v2499
    %v2508 = vrot.slane %v2413, 6
    %v2510 = vmul.f32 %v2505, %v2508
    %2512 = vrot.lane.b32.xlu0 %v2506, 32
    %v2513 = vpop.permute.xlu0 %2512
    %v2515 = vmul.f32 %v2505, %v2513
    %2517 = vrot.lane.b32.xlu0 %v2515, 32
    %v2518 = vpop.permute.xlu0 %2517
    %v2520 = vadd.f32 %v2510, %v2518
    %v2521 = vtanh.pop %v2520
    %2523 = vrot.lane.b32.xlu0 %v2521, 32
    %v2524 = vpop.permute.xlu0 %2523
    %v2526 = vmul.f32 %v2505, %v2524
    %v2528 = vrot.slane %v2526, 2
    %v2530 = vadd.f32 %v2420, %v2528
    %2531 = vrot.lane.b32.xlu0 %v2528, 64
    %v2532 = vpop.permute.xlu0 %2531
    %v2533 = vsel %vm43, %v2532, 0
    %2535 = vmatprep.subr.mxu0 0.0
    %2536 = vmatpush1.msra.mxu0 %v2321
    %2537 = vmatprep.subr.mxu0 0.0
    %2538 = vmatpush1.msra.mxu0 %v2322
    %2539 = vmatprep.subr.mxu0 0.0
    %2540 = vmatpush1.msra.mxu0 %v2323
    %2541 = vmatprep.subr.mxu0 0.0
    %2542 = vmatpush1.msra.mxu0 %v2324
    %2543 = vmatprep.subr.mxu0 0.0
    %2544 = vmatpush1.msra.mxu0 0.0
    %2545 = vmatprep.subr.mxu0 0.0
    %2546 = vmatpush1.msra.mxu0 0.0
    %2547 = vmatprep.subr.mxu0 0.0
    %2548 = vmatpush1.msra.mxu0 0.0
    %2549 = vmatprep.subr.mxu0 0.0
    %2550 = vmatpush1.msra.mxu0 0.0
    %2551 = vmatprep.subr.mxu0 0.0
    %2552 = vmatpush1.msra.mxu0 0.0
    %2553 = vmatprep.subr.mxu0 0.0
    %2554 = vmatpush1.msra.mxu0 0.0
    %2555 = vmatprep.subr.mxu0 0.0
    %2556 = vmatpush1.msra.mxu0 0.0
    %2557 = vmatprep.subr.mxu0 0.0
    %2558 = vmatpush1.msra.mxu0 0.0
    %2559 = vmatprep.subr.mxu0 0.0
    %2560 = vmatpush1.msra.mxu0 0.0
    %2561 = vmatprep.subr.mxu0 0.0
    %2562 = vmatpush1.msra.mxu0 0.0
    %2563 = vmatprep.subr.mxu0 0.0
    %2564 = vmatpush1.msra.mxu0 0.0
    %2565 = vmatprep.subr.mxu0 0.0
    %2566 = vmatpush1.msra.mxu0 0.0
    %2567 = vmatprep.subr.mxu0 0.0
    %2568 = vmatpush1.msra.mxu0 0.0
    %2569 = vmatprep.subr.mxu0 0.0
    %2570 = vmatpush1.msra.mxu0 0.0
    %2571 = vmatprep.subr.mxu0 0.0
    %2572 = vmatpush1.msra.mxu0 0.0
    %2573 = vmatprep.subr.mxu0 0.0
    %2574 = vmatpush1.msra.mxu0 0.0
    %2575 = vmatprep.subr.mxu0 0.0
    %2576 = vmatpush1.msra.mxu0 0.0
    %2577 = vmatprep.subr.mxu0 0.0
    %2578 = vmatpush1.msra.mxu0 0.0
    %2579 = vmatprep.subr.mxu0 0.0
    %2580 = vmatpush1.msra.mxu0 0.0
    %2581 = vmatprep.subr.mxu0 0.0
    %2582 = vmatpush1.msra.mxu0 0.0
    %2583 = vmatprep.subr.mxu0 0.0
    %2584 = vmatpush1.msra.mxu0 0.0
    %2585 = vmatprep.subr.mxu0 0.0
    %2586 = vmatpush1.msra.mxu0 0.0
    %2587 = vmatprep.subr.mxu0 0.0
    %2588 = vmatpush1.msra.mxu0 0.0
    %2589 = vmatprep.subr.mxu0 0.0
    %2590 = vmatpush1.msra.mxu0 0.0
    %2591 = vmatprep.subr.mxu0 0.0
    %2592 = vmatpush1.msra.mxu0 0.0
    %2593 = vmatprep.subr.mxu0 0.0
    %2594 = vmatpush1.msra.mxu0 0.0
    %2595 = vmatprep.subr.mxu0 0.0
    %2596 = vmatpush1.msra.mxu0 0.0
    %2597 = vmatprep.subr.mxu0 0.0
    %2598 = vmatpush1.msra.mxu0 0.0
    %2599 = vmatprep.mubr.f32.mxu0 0.0
    %2600 = vmatmul.mubr.f32.gmra.mrb[0].mxu0 %v2533
    %v2601 = vpop.f32.mrb[0].mxu0
    %v2602 = vadd.f32 0.0, %v2601
    %v2603 = vpop.f32.mrb[0].mxu0
    %2604 = vdwg.mxu0
    %v2606 = vrot.slane %v2602, 4
    %v2608 = vadd.f32 %v2149, %v2606
    %v2609 = vxor.u32 %v2608, 2147483648
    %v2610 = vmul.f32 %v2609, 1.442695
    %v2611 = vpow.pop %v2610
    %v2612 = vadd.f32 %v2611, 1.0
    %v2613 = vrcp.pop %v2612
    %v2614 = vmul.f32 1.0, %v2613
    %v2615 = vtanh.pop %v2608
    %v2617 = vrot.slane %v2520, 6
    %v2619 = vmul.f32 %v2614, %v2617
    %2621 = vrot.lane.b32.xlu0 %v2615, 32
    %v2622 = vpop.permute.xlu0 %2621
    %v2624 = vmul.f32 %v2614, %v2622
    %2626 = vrot.lane.b32.xlu0 %v2624, 32
    %v2627 = vpop.permute.xlu0 %2626
    %v2629 = vadd.f32 %v2619, %v2627
    %v2630 = vtanh.pop %v2629
    %2632 = vrot.lane.b32.xlu0 %v2630, 32
    %v2633 = vpop.permute.xlu0 %2632
    %v2635 = vmul.f32 %v2614, %v2633
    %v2637 = vrot.slane %v2635, 4
    %v2639 = vadd.f32 %v2530, %v2637
    %2640 = vrot.lane.b32.xlu0 %v2637, 64
    %v2641 = vpop.permute.xlu0 %2640
    %v2642 = vsel %vm43, %v2641, 0
    %2644 = vmatprep.subr.mxu0 0.0
    %2645 = vmatpush1.msra.mxu0 %v2321
    %2646 = vmatprep.subr.mxu0 0.0
    %2647 = vmatpush1.msra.mxu0 %v2322
    %2648 = vmatprep.subr.mxu0 0.0
    %2649 = vmatpush1.msra.mxu0 %v2323
    %2650 = vmatprep.subr.mxu0 0.0
    %2651 = vmatpush1.msra.mxu0 %v2324
    %2652 = vmatprep.subr.mxu0 0.0
    %2653 = vmatpush1.msra.mxu0 0.0
    %2654 = vmatprep.subr.mxu0 0.0
    %2655 = vmatpush1.msra.mxu0 0.0
    %2656 = vmatprep.subr.mxu0 0.0
    %2657 = vmatpush1.msra.mxu0 0.0
    %2658 = vmatprep.subr.mxu0 0.0
    %2659 = vmatpush1.msra.mxu0 0.0
    %2660 = vmatprep.subr.mxu0 0.0
    %2661 = vmatpush1.msra.mxu0 0.0
    %2662 = vmatprep.subr.mxu0 0.0
    %2663 = vmatpush1.msra.mxu0 0.0
    %2664 = vmatprep.subr.mxu0 0.0
    %2665 = vmatpush1.msra.mxu0 0.0
    %2666 = vmatprep.subr.mxu0 0.0
    %2667 = vmatpush1.msra.mxu0 0.0
    %2668 = vmatprep.subr.mxu0 0.0
    %2669 = vmatpush1.msra.mxu0 0.0
    %2670 = vmatprep.subr.mxu0 0.0
    %2671 = vmatpush1.msra.mxu0 0.0
    %2672 = vmatprep.subr.mxu0 0.0
    %2673 = vmatpush1.msra.mxu0 0.0
    %2674 = vmatprep.subr.mxu0 0.0
    %2675 = vmatpush1.msra.mxu0 0.0
    %2676 = vmatprep.subr.mxu0 0.0
    %2677 = vmatpush1.msra.mxu0 0.0
    %2678 = vmatprep.subr.mxu0 0.0
    %2679 = vmatpush1.msra.mxu0 0.0
    %2680 = vmatprep.subr.mxu0 0.0
    %2681 = vmatpush1.msra.mxu0 0.0
    %2682 = vmatprep.subr.mxu0 0.0
    %2683 = vmatpush1.msra.mxu0 0.0
    %2684 = vmatprep.subr.mxu0 0.0
    %2685 = vmatpush1.msra.mxu0 0.0
    %2686 = vmatprep.subr.mxu0 0.0
    %2687 = vmatpush1.msra.mxu0 0.0
    %2688 = vmatprep.subr.mxu0 0.0
    %2689 = vmatpush1.msra.mxu0 0.0
    %2690 = vmatprep.subr.mxu0 0.0
    %2691 = vmatpush1.msra.mxu0 0.0
    %2692 = vmatprep.subr.mxu0 0.0
    %2693 = vmatpush1.msra.mxu0 0.0
    %2694 = vmatprep.subr.mxu0 0.0
    %2695 = vmatpush1.msra.mxu0 0.0
    %2696 = vmatprep.subr.mxu0 0.0
    %2697 = vmatpush1.msra.mxu0 0.0
    %2698 = vmatprep.subr.mxu0 0.0
    %2699 = vmatpush1.msra.mxu0 0.0
    %2700 = vmatprep.subr.mxu0 0.0
    %2701 = vmatpush1.msra.mxu0 0.0
    %2702 = vmatprep.subr.mxu0 0.0
    %2703 = vmatpush1.msra.mxu0 0.0
    %2704 = vmatprep.subr.mxu0 0.0
    %2705 = vmatpush1.msra.mxu0 0.0
    %2706 = vmatprep.subr.mxu0 0.0
    %2707 = vmatpush1.msra.mxu0 0.0
    %2708 = vmatprep.mubr.f32.mxu0 0.0
    %2709 = vmatmul.mubr.f32.gmra.mrb[0].mxu0 %v2642
    %v2710 = vpop.f32.mrb[0].mxu0
    %v2711 = vadd.f32 0.0, %v2710
    %v2712 = vpop.f32.mrb[0].mxu0
    %2713 = vdwg.mxu0
    %v2715 = vrot.slane %v2711, 2
    %v2717 = vadd.f32 %v2149, %v2715
    %v2718 = vxor.u32 %v2717, 2147483648
    %v2719 = vmul.f32 %v2718, 1.442695
    %v2720 = vpow.pop %v2719
    %v2721 = vadd.f32 %v2720, 1.0
    %v2722 = vrcp.pop %v2721
    %v2723 = vmul.f32 1.0, %v2722
    %v2724 = vtanh.pop %v2717
    %v2726 = vrot.slane %v2629, 6
    %v2728 = vmul.f32 %v2723, %v2726
    %2730 = vrot.lane.b32.xlu0 %v2724, 32
    %v2731 = vpop.permute.xlu0 %2730
    %v2733 = vmul.f32 %v2723, %v2731
    %2735 = vrot.lane.b32.xlu0 %v2733, 32
    %v2736 = vpop.permute.xlu0 %2735
    %v2738 = vadd.f32 %v2728, %v2736
    %v2739 = vtanh.pop %v2738
    %2741 = vrot.lane.b32.xlu0 %v2739, 32
    %v2742 = vpop.permute.xlu0 %2741
    %v2744 = vmul.f32 %v2723, %v2742
    %v2746 = vrot.slane %v2744, 6
    %v2748 = vadd.f32 %v2639, %v2746
    %2749 = vrot.lane.b32.xlu0 %v2746, 64
    %v2750 = vpop.permute.xlu0 %2749
    %v2751 = vsel %vm43, %v2750, 0
    %2753 = vmatprep.subr.mxu0 0.0
    %2754 = vmatpush1.msra.mxu0 %v2321
    %2755 = vmatprep.subr.mxu0 0.0
    %2756 = vmatpush1.msra.mxu0 %v2322
    %2757 = vmatprep.subr.mxu0 0.0
    %2758 = vmatpush1.msra.mxu0 %v2323
    %2759 = vmatprep.subr.mxu0 0.0
    %2760 = vmatpush1.msra.mxu0 %v2324
    %2761 = vmatprep.subr.mxu0 0.0
    %2762 = vmatpush1.msra.mxu0 0.0
    %2763 = vmatprep.subr.mxu0 0.0
    %2764 = vmatpush1.msra.mxu0 0.0
    %2765 = vmatprep.subr.mxu0 0.0
    %2766 = vmatpush1.msra.mxu0 0.0
    %2767 = vmatprep.subr.mxu0 0.0
    %2768 = vmatpush1.msra.mxu0 0.0
    %2769 = vmatprep.subr.mxu0 0.0
    %2770 = vmatpush1.msra.mxu0 0.0
    %2771 = vmatprep.subr.mxu0 0.0
    %2772 = vmatpush1.msra.mxu0 0.0
    %2773 = vmatprep.subr.mxu0 0.0
    %2774 = vmatpush1.msra.mxu0 0.0
    %2775 = vmatprep.subr.mxu0 0.0
    %2776 = vmatpush1.msra.mxu0 0.0
    %2777 = vmatprep.subr.mxu0 0.0
    %2778 = vmatpush1.msra.mxu0 0.0
    %2779 = vmatprep.subr.mxu0 0.0
    %2780 = vmatpush1.msra.mxu0 0.0
    %2781 = vmatprep.subr.mxu0 0.0
    %2782 = vmatpush1.msra.mxu0 0.0
    %2783 = vmatprep.subr.mxu0 0.0
    %2784 = vmatpush1.msra.mxu0 0.0
    %2785 = vmatprep.subr.mxu0 0.0
    %2786 = vmatpush1.msra.mxu0 0.0
    %2787 = vmatprep.subr.mxu0 0.0
    %2788 = vmatpush1.msra.mxu0 0.0
    %2789 = vmatprep.subr.mxu0 0.0
    %2790 = vmatpush1.msra.mxu0 0.0
    %2791 = vmatprep.subr.mxu0 0.0
    %2792 = vmatpush1.msra.mxu0 0.0
    %2793 = vmatprep.subr.mxu0 0.0
    %2794 = vmatpush1.msra.mxu0 0.0
    %2795 = vmatprep.subr.mxu0 0.0
    %2796 = vmatpush1.msra.mxu0 0.0
    %2797 = vmatprep.subr.mxu0 0.0
    %2798 = vmatpush1.msra.mxu0 0.0
    %2799 = vmatprep.subr.mxu0 0.0
    %2800 = vmatpush1.msra.mxu0 0.0
    %2801 = vmatprep.subr.mxu0 0.0
    %2802 = vmatpush1.msra.mxu0 0.0
    %2803 = vmatprep.subr.mxu0 0.0
    %2804 = vmatpush1.msra.mxu0 0.0
    %2805 = vmatprep.subr.mxu0 0.0
    %2806 = vmatpush1.msra.mxu0 0.0
    %2807 = vmatprep.subr.mxu0 0.0
    %2808 = vmatpush1.msra.mxu0 0.0
    %2809 = vmatprep.subr.mxu0 0.0
    %2810 = vmatpush1.msra.mxu0 0.0
    %2811 = vmatprep.subr.mxu0 0.0
    %2812 = vmatpush1.msra.mxu0 0.0
    %2813 = vmatprep.subr.mxu0 0.0
    %2814 = vmatpush1.msra.mxu0 0.0
    %2815 = vmatprep.subr.mxu0 0.0
    %2816 = vmatpush1.msra.mxu0 0.0
    %2817 = vmatprep.mubr.f32.mxu0 0.0
    %2818 = vmatmul.mubr.f32.gmra.mrb[0].mxu0 %v2751
    %v2819 = vpop.f32.mrb[0].mxu0
    %v2820 = vadd.f32 0.0, %v2819
    %v2821 = vpop.f32.mrb[0].mxu0
    %2822 = vdwg.mxu0
    %v2823 = vadd.f32 %v2150, %v2820
    %v2824 = vxor.u32 %v2823, 2147483648
    %v2825 = vmul.f32 %v2824, 1.442695
    %v2826 = vpow.pop %v2825
    %v2827 = vadd.f32 %v2826, 1.0
    %v2828 = vrcp.pop %v2827
    %v2829 = vmul.f32 1.0, %v2828
    %v2830 = vtanh.pop %v2823
    %v2832 = vrot.slane %v2738, 6
    %v2834 = vmul.f32 %v2829, %v2832
    %2836 = vrot.lane.b32.xlu0 %v2830, 32
    %v2837 = vpop.permute.xlu0 %2836
    %v2839 = vmul.f32 %v2829, %v2837
    %2841 = vrot.lane.b32.xlu0 %v2839, 32
    %v2842 = vpop.permute.xlu0 %2841
    %v2844 = vadd.f32 %v2834, %v2842
    %v2845 = vtanh.pop %v2844
    %2847 = vrot.lane.b32.xlu0 %v2845, 32
    %v2848 = vpop.permute.xlu0 %2847
    %v2850 = vmul.f32 %v2829, %v2848
    %v2851 = vadd.f32 %v2748, %v2850
    %2853 = vrot.lane.b32.xlu0 %v2850, 64
    %v2854 = vpop.permute.xlu0 %2853
    %v2855 = vsel %vm43, %v2854, 0
    %2857 = vmatprep.subr.mxu0 0.0
    %2858 = vmatpush1.msra.mxu0 %v2321
    %2859 = vmatprep.subr.mxu0 0.0
    %2860 = vmatpush1.msra.mxu0 %v2322
    %2861 = vmatprep.subr.mxu0 0.0
    %2862 = vmatpush1.msra.mxu0 %v2323
    %2863 = vmatprep.subr.mxu0 0.0
    %2864 = vmatpush1.msra.mxu0 %v2324
    %2865 = vmatprep.subr.mxu0 0.0
    %2866 = vmatpush1.msra.mxu0 0.0
    %2867 = vmatprep.subr.mxu0 0.0
    %2868 = vmatpush1.msra.mxu0 0.0
    %2869 = vmatprep.subr.mxu0 0.0
    %2870 = vmatpush1.msra.mxu0 0.0
    %2871 = vmatprep.subr.mxu0 0.0
    %2872 = vmatpush1.msra.mxu0 0.0
    %2873 = vmatprep.subr.mxu0 0.0
    %2874 = vmatpush1.msra.mxu0 0.0
    %2875 = vmatprep.subr.mxu0 0.0
    %2876 = vmatpush1.msra.mxu0 0.0
    %2877 = vmatprep.subr.mxu0 0.0
    %2878 = vmatpush1.msra.mxu0 0.0
    %2879 = vmatprep.subr.mxu0 0.0
    %2880 = vmatpush1.msra.mxu0 0.0
    %2881 = vmatprep.subr.mxu0 0.0
    %2882 = vmatpush1.msra.mxu0 0.0
    %2883 = vmatprep.subr.mxu0 0.0
    %2884 = vmatpush1.msra.mxu0 0.0
    %2885 = vmatprep.subr.mxu0 0.0
    %2886 = vmatpush1.msra.mxu0 0.0
    %2887 = vmatprep.subr.mxu0 0.0
    %2888 = vmatpush1.msra.mxu0 0.0
    %2889 = vmatprep.subr.mxu0 0.0
    %2890 = vmatpush1.msra.mxu0 0.0
    %2891 = vmatprep.subr.mxu0 0.0
    %2892 = vmatpush1.msra.mxu0 0.0
    %2893 = vmatprep.subr.mxu0 0.0
    %2894 = vmatpush1.msra.mxu0 0.0
    %2895 = vmatprep.subr.mxu0 0.0
    %2896 = vmatpush1.msra.mxu0 0.0
    %2897 = vmatprep.subr.mxu0 0.0
    %2898 = vmatpush1.msra.mxu0 0.0
    %2899 = vmatprep.subr.mxu0 0.0
    %2900 = vmatpush1.msra.mxu0 0.0
    %2901 = vmatprep.subr.mxu0 0.0
    %2902 = vmatpush1.msra.mxu0 0.0
    %2903 = vmatprep.subr.mxu0 0.0
    %2904 = vmatpush1.msra.mxu0 0.0
    %2905 = vmatprep.subr.mxu0 0.0
    %2906 = vmatpush1.msra.mxu0 0.0
    %2907 = vmatprep.subr.mxu0 0.0
    %2908 = vmatpush1.msra.mxu0 0.0
    %2909 = vmatprep.subr.mxu0 0.0
    %2910 = vmatpush1.msra.mxu0 0.0
    %2911 = vmatprep.subr.mxu0 0.0
    %2912 = vmatpush1.msra.mxu0 0.0
    %2913 = vmatprep.subr.mxu0 0.0
    %2914 = vmatpush1.msra.mxu0 0.0
    %2915 = vmatprep.subr.mxu0 0.0
    %2916 = vmatpush1.msra.mxu0 0.0
    %2917 = vmatprep.subr.mxu0 0.0
    %2918 = vmatpush1.msra.mxu0 0.0
    %2919 = vmatprep.subr.mxu0 0.0
    %2920 = vmatpush1.msra.mxu0 0.0
    %2921 = vmatprep.mubr.f32.mxu0 0.0
    %2922 = vmatmul.mubr.f32.gmra.mrb[0].mxu0 %v2855
    %v2923 = vpop.f32.mrb[0].mxu0
    %v2924 = vadd.f32 0.0, %v2923
    %v2925 = vpop.f32.mrb[0].mxu0
    %2926 = vdwg.mxu0
    %v2928 = vrot.slane %v2924, 6
    %v2930 = vadd.f32 %v2150, %v2928
    %v2931 = vxor.u32 %v2930, 2147483648
    %v2932 = vmul.f32 %v2931, 1.442695
    %v2933 = vpow.pop %v2932
    %v2934 = vadd.f32 %v2933, 1.0
    %v2935 = vrcp.pop %v2934
    %v2936 = vmul.f32 1.0, %v2935
    %v2937 = vtanh.pop %v2930
    %v2939 = vrot.slane %v2844, 6
    %v2941 = vmul.f32 %v2936, %v2939
    %2943 = vrot.lane.b32.xlu0 %v2937, 32
    %v2944 = vpop.permute.xlu0 %2943
    %v2946 = vmul.f32 %v2936, %v2944
    %2948 = vrot.lane.b32.xlu0 %v2946, 32
    %v2949 = vpop.permute.xlu0 %2948
    %v2951 = vadd.f32 %v2941, %v2949
    %v2952 = vtanh.pop %v2951
    %2954 = vrot.lane.b32.xlu0 %v2952, 32
    %v2955 = vpop.permute.xlu0 %2954
    %v2957 = vmul.f32 %v2936, %v2955
    %v2959 = vrot.slane %v2957, 2
    %v2961 = vadd.f32 %v2851, %v2959
    %2962 = vrot.lane.b32.xlu0 %v2959, 64
    %v2963 = vpop.permute.xlu0 %2962
    %v2964 = vsel %vm43, %v2963, 0
    %2966 = vmatprep.subr.mxu0 0.0
    %2967 = vmatpush1.msra.mxu0 %v2321
    %2968 = vmatprep.subr.mxu0 0.0
    %2969 = vmatpush1.msra.mxu0 %v2322
    %2970 = vmatprep.subr.mxu0 0.0
    %2971 = vmatpush1.msra.mxu0 %v2323
    %2972 = vmatprep.subr.mxu0 0.0
    %2973 = vmatpush1.msra.mxu0 %v2324
    %2974 = vmatprep.subr.mxu0 0.0
    %2975 = vmatpush1.msra.mxu0 0.0
    %2976 = vmatprep.subr.mxu0 0.0
    %2977 = vmatpush1.msra.mxu0 0.0
    %2978 = vmatprep.subr.mxu0 0.0
    %2979 = vmatpush1.msra.mxu0 0.0
    %2980 = vmatprep.subr.mxu0 0.0
    %2981 = vmatpush1.msra.mxu0 0.0
    %2982 = vmatprep.subr.mxu0 0.0
    %2983 = vmatpush1.msra.mxu0 0.0
    %2984 = vmatprep.subr.mxu0 0.0
    %2985 = vmatpush1.msra.mxu0 0.0
    %2986 = vmatprep.subr.mxu0 0.0
    %2987 = vmatpush1.msra.mxu0 0.0
    %2988 = vmatprep.subr.mxu0 0.0
    %2989 = vmatpush1.msra.mxu0 0.0
    %2990 = vmatprep.subr.mxu0 0.0
    %2991 = vmatpush1.msra.mxu0 0.0
    %2992 = vmatprep.subr.mxu0 0.0
    %2993 = vmatpush1.msra.mxu0 0.0
    %2994 = vmatprep.subr.mxu0 0.0
    %2995 = vmatpush1.msra.mxu0 0.0
    %2996 = vmatprep.subr.mxu0 0.0
    %2997 = vmatpush1.msra.mxu0 0.0
    %2998 = vmatprep.subr.mxu0 0.0
    %2999 = vmatpush1.msra.mxu0 0.0
    %3000 = vmatprep.subr.mxu0 0.0
    %3001 = vmatpush1.msra.mxu0 0.0
    %3002 = vmatprep.subr.mxu0 0.0
    %3003 = vmatpush1.msra.mxu0 0.0
    %3004 = vmatprep.subr.mxu0 0.0
    %3005 = vmatpush1.msra.mxu0 0.0
    %3006 = vmatprep.subr.mxu0 0.0
    %3007 = vmatpush1.msra.mxu0 0.0
    %3008 = vmatprep.subr.mxu0 0.0
    %3009 = vmatpush1.msra.mxu0 0.0
    %3010 = vmatprep.subr.mxu0 0.0
    %3011 = vmatpush1.msra.mxu0 0.0
    %3012 = vmatprep.subr.mxu0 0.0
    %3013 = vmatpush1.msra.mxu0 0.0
    %3014 = vmatprep.subr.mxu0 0.0
    %3015 = vmatpush1.msra.mxu0 0.0
    %3016 = vmatprep.subr.mxu0 0.0
    %3017 = vmatpush1.msra.mxu0 0.0
    %3018 = vmatprep.subr.mxu0 0.0
    %3019 = vmatpush1.msra.mxu0 0.0
    %3020 = vmatprep.subr.mxu0 0.0
    %3021 = vmatpush1.msra.mxu0 0.0
    %3022 = vmatprep.subr.mxu0 0.0
    %3023 = vmatpush1.msra.mxu0 0.0
    %3024 = vmatprep.subr.mxu0 0.0
    %3025 = vmatpush1.msra.mxu0 0.0
    %3026 = vmatprep.subr.mxu0 0.0
    %3027 = vmatpush1.msra.mxu0 0.0
    %3028 = vmatprep.subr.mxu0 0.0
    %3029 = vmatpush1.msra.mxu0 0.0
    %3030 = vmatprep.mubr.f32.mxu0 0.0
    %3031 = vmatmul.mubr.f32.gmra.mrb[0].mxu0 %v2964
    %v3032 = vpop.f32.mrb[0].mxu0
    %v3033 = vadd.f32 0.0, %v3032
    %v3034 = vpop.f32.mrb[0].mxu0
    %3035 = vdwg.mxu0
    %v3037 = vrot.slane %v3033, 4
    %v3039 = vadd.f32 %v2150, %v3037
    %v3040 = vxor.u32 %v3039, 2147483648
    %v3041 = vmul.f32 %v3040, 1.442695
    %v3042 = vpow.pop %v3041
    %v3043 = vadd.f32 %v3042, 1.0
    %v3044 = vrcp.pop %v3043
    %v3045 = vmul.f32 1.0, %v3044
    %v3046 = vtanh.pop %v3039
    %v3048 = vrot.slane %v2951, 6
    %v3050 = vmul.f32 %v3045, %v3048
    %3052 = vrot.lane.b32.xlu0 %v3046, 32
    %v3053 = vpop.permute.xlu0 %3052
    %v3055 = vmul.f32 %v3045, %v3053
    %3057 = vrot.lane.b32.xlu0 %v3055, 32
    %v3058 = vpop.permute.xlu0 %3057
    %v3060 = vadd.f32 %v3050, %v3058
    %v3061 = vtanh.pop %v3060
    %3063 = vrot.lane.b32.xlu0 %v3061, 32
    %v3064 = vpop.permute.xlu0 %3063
    %v3066 = vmul.f32 %v3045, %v3064
    %v3068 = vrot.slane %v3066, 4
    %v3070 = vadd.f32 %v2961, %v3068
    %3071 = vrot.lane.b32.xlu0 %v3068, 64
    %v3072 = vpop.permute.xlu0 %3071
    %v3073 = vsel %vm43, %v3072, 0
    %3075 = vmatprep.subr.mxu0 0.0
    %3076 = vmatpush1.msra.mxu0 %v2321
    %3077 = vmatprep.subr.mxu0 0.0
    %3078 = vmatpush1.msra.mxu0 %v2322
    %3079 = vmatprep.subr.mxu0 0.0
    %3080 = vmatpush1.msra.mxu0 %v2323
    %3081 = vmatprep.subr.mxu0 0.0
    %3082 = vmatpush1.msra.mxu0 %v2324
    %3083 = vmatprep.subr.mxu0 0.0
    %3084 = vmatpush1.msra.mxu0 0.0
    %3085 = vmatprep.subr.mxu0 0.0
    %3086 = vmatpush1.msra.mxu0 0.0
    %3087 = vmatprep.subr.mxu0 0.0
    %3088 = vmatpush1.msra.mxu0 0.0
    %3089 = vmatprep.subr.mxu0 0.0
    %3090 = vmatpush1.msra.mxu0 0.0
    %3091 = vmatprep.subr.mxu0 0.0
    %3092 = vmatpush1.msra.mxu0 0.0
    %3093 = vmatprep.subr.mxu0 0.0
    %3094 = vmatpush1.msra.mxu0 0.0
    %3095 = vmatprep.subr.mxu0 0.0
    %3096 = vmatpush1.msra.mxu0 0.0
    %3097 = vmatprep.subr.mxu0 0.0
    %3098 = vmatpush1.msra.mxu0 0.0
    %3099 = vmatprep.subr.mxu0 0.0
    %3100 = vmatpush1.msra.mxu0 0.0
    %3101 = vmatprep.subr.mxu0 0.0
    %3102 = vmatpush1.msra.mxu0 0.0
    %3103 = vmatprep.subr.mxu0 0.0
    %3104 = vmatpush1.msra.mxu0 0.0
    %3105 = vmatprep.subr.mxu0 0.0
    %3106 = vmatpush1.msra.mxu0 0.0
    %3107 = vmatprep.subr.mxu0 0.0
    %3108 = vmatpush1.msra.mxu0 0.0
    %3109 = vmatprep.subr.mxu0 0.0
    %3110 = vmatpush1.msra.mxu0 0.0
    %3111 = vmatprep.subr.mxu0 0.0
    %3112 = vmatpush1.msra.mxu0 0.0
    %3113 = vmatprep.subr.mxu0 0.0
    %3114 = vmatpush1.msra.mxu0 0.0
    %3115 = vmatprep.subr.mxu0 0.0
    %3116 = vmatpush1.msra.mxu0 0.0
    %3117 = vmatprep.subr.mxu0 0.0
    %3118 = vmatpush1.msra.mxu0 0.0
    %3119 = vmatprep.subr.mxu0 0.0
    %3120 = vmatpush1.msra.mxu0 0.0
    %3121 = vmatprep.subr.mxu0 0.0
    %3122 = vmatpush1.msra.mxu0 0.0
    %3123 = vmatprep.subr.mxu0 0.0
    %3124 = vmatpush1.msra.mxu0 0.0
    %3125 = vmatprep.subr.mxu0 0.0
    %3126 = vmatpush1.msra.mxu0 0.0
    %3127 = vmatprep.subr.mxu0 0.0
    %3128 = vmatpush1.msra.mxu0 0.0
    %3129 = vmatprep.subr.mxu0 0.0
    %3130 = vmatpush1.msra.mxu0 0.0
    %3131 = vmatprep.subr.mxu0 0.0
    %3132 = vmatpush1.msra.mxu0 0.0
    %3133 = vmatprep.subr.mxu0 0.0
    %3134 = vmatpush1.msra.mxu0 0.0
    %3135 = vmatprep.subr.mxu0 0.0
    %3136 = vmatpush1.msra.mxu0 0.0
    %3137 = vmatprep.subr.mxu0 0.0
    %3138 = vmatpush1.msra.mxu0 0.0
    %3139 = vmatprep.mubr.f32.mxu0 0.0
    %3140 = vmatmul.mubr.f32.gmra.mrb[0].mxu0 %v3073
    %v3141 = vpop.f32.mrb[0].mxu0
    %v3142 = vadd.f32 0.0, %v3141
    %v3143 = vpop.f32.mrb[0].mxu0
    %3144 = vdwg.mxu0
    %v3146 = vrot.slane %v3142, 2
    %v3148 = vadd.f32 %v2150, %v3146
    %v3149 = vxor.u32 %v3148, 2147483648
    %v3150 = vmul.f32 %v3149, 1.442695
    %v3151 = vpow.pop %v3150
    %v3152 = vadd.f32 %v3151, 1.0
    %v3153 = vrcp.pop %v3152
    %v3154 = vmul.f32 1.0, %v3153
    %v3155 = vtanh.pop %v3148
    %v3157 = vrot.slane %v3060, 6
    %v3159 = vmul.f32 %v3154, %v3157
    %3161 = vrot.lane.b32.xlu0 %v3155, 32
    %v3162 = vpop.permute.xlu0 %3161
    %v3164 = vmul.f32 %v3154, %v3162
    %3166 = vrot.lane.b32.xlu0 %v3164, 32
    %v3167 = vpop.permute.xlu0 %3166
    %v3169 = vadd.f32 %v3159, %v3167
    %v3170 = vtanh.pop %v3169
    %3172 = vrot.lane.b32.xlu0 %v3170, 32
    %v3173 = vpop.permute.xlu0 %3172
    %v3175 = vmul.f32 %v3154, %v3173
    %v3177 = vrot.slane %v3175, 6
    %v3179 = vadd.f32 %v3070, %v3177
    %s3180 = scalar_lea.vmem %s6, 32
    %v3181 = vld [vmem:[%s3180] sm:$0xff]
    %v3182 = vld [vmem:[%s3180 + $0x8] sm:$0xff]
    %v3183 = vld [vmem:[%s3180 + $0x10] sm:$0xff]
    %v3184 = vld [vmem:[%s3180 + $0x18] sm:$0xff]
    %3185 = vmatprep.subr.mxu0 0.0
    %3186 = vmatpush1.msra.mxu0 %v3181
    %3187 = vmatprep.subr.mxu0 0.0
    %3188 = vmatpush1.msra.mxu0 %v3182
    %3189 = vmatprep.subr.mxu0 0.0
    %3190 = vmatpush1.msra.mxu0 %v3183
    %3191 = vmatprep.subr.mxu0 0.0
    %3192 = vmatpush1.msra.mxu0 %v3184
    %3193 = vmatprep.subr.mxu0 0.0
    %3194 = vmatpush1.msra.mxu0 0.0
    %3195 = vmatprep.subr.mxu0 0.0
    %3196 = vmatpush1.msra.mxu0 0.0
    %3197 = vmatprep.subr.mxu0 0.0
    %3198 = vmatpush1.msra.mxu0 0.0
    %3199 = vmatprep.subr.mxu0 0.0
    %3200 = vmatpush1.msra.mxu0 0.0
    %3201 = vmatprep.subr.mxu0 0.0
    %3202 = vmatpush1.msra.mxu0 0.0
    %3203 = vmatprep.subr.mxu0 0.0
    %3204 = vmatpush1.msra.mxu0 0.0
    %3205 = vmatprep.subr.mxu0 0.0
    %3206 = vmatpush1.msra.mxu0 0.0
    %3207 = vmatprep.subr.mxu0 0.0
    %3208 = vmatpush1.msra.mxu0 0.0
    %3209 = vmatprep.subr.mxu0 0.0
    %3210 = vmatpush1.msra.mxu0 0.0
    %3211 = vmatprep.subr.mxu0 0.0
    %3212 = vmatpush1.msra.mxu0 0.0
    %3213 = vmatprep.subr.mxu0 0.0
    %3214 = vmatpush1.msra.mxu0 0.0
    %3215 = vmatprep.subr.mxu0 0.0
    %3216 = vmatpush1.msra.mxu0 0.0
    %3217 = vmatprep.subr.mxu0 0.0
    %3218 = vmatpush1.msra.mxu0 0.0
    %3219 = vmatprep.subr.mxu0 0.0
    %3220 = vmatpush1.msra.mxu0 0.0
    %3221 = vmatprep.subr.mxu0 0.0
    %3222 = vmatpush1.msra.mxu0 0.0
    %3223 = vmatprep.subr.mxu0 0.0
    %3224 = vmatpush1.msra.mxu0 0.0
    %3225 = vmatprep.subr.mxu0 0.0
    %3226 = vmatpush1.msra.mxu0 0.0
    %3227 = vmatprep.subr.mxu0 0.0
    %3228 = vmatpush1.msra.mxu0 0.0
    %3229 = vmatprep.subr.mxu0 0.0
    %3230 = vmatpush1.msra.mxu0 0.0
    %3231 = vmatprep.subr.mxu0 0.0
    %3232 = vmatpush1.msra.mxu0 0.0
    %3233 = vmatprep.subr.mxu0 0.0
    %3234 = vmatpush1.msra.mxu0 0.0
    %3235 = vmatprep.subr.mxu0 0.0
    %3236 = vmatpush1.msra.mxu0 0.0
    %3237 = vmatprep.subr.mxu0 0.0
    %3238 = vmatpush1.msra.mxu0 0.0
    %3239 = vmatprep.subr.mxu0 0.0
    %3240 = vmatpush1.msra.mxu0 0.0
    %3241 = vmatprep.subr.mxu0 0.0
    %3242 = vmatpush1.msra.mxu0 0.0
    %3243 = vmatprep.subr.mxu0 0.0
    %3244 = vmatpush1.msra.mxu0 0.0
    %3245 = vmatprep.subr.mxu0 0.0
    %3246 = vmatpush1.msra.mxu0 0.0
    %3247 = vmatprep.subr.mxu0 0.0
    %3248 = vmatpush1.msra.mxu0 0.0
    %3249 = vmatprep.mubr.f32.mxu0 0.0
    %3250 = vmatmul.mubr.f32.gmra.mrb[0].mxu0 %v218
    %v3251 = vpop.f32.mrb[0].mxu0
    %v3252 = vadd.f32 0.0, %v3251
    %v3253 = vpop.f32.mrb[0].mxu0
    %3254 = vdwg.mxu0
    %v3256 = vrot.slane %v3252, 2
    %v3258 = vadd.f32 %v2320, %v3256
    %v3259 = vxor.u32 %v3258, 2147483648
    %v3260 = vmul.f32 %v3259, 1.442695
    %v3261 = vpow.pop %v3260
    %v3262 = vadd.f32 %v3261, 1.0
    %v3263 = vrcp.pop %v3262
    %v3264 = vmul.f32 1.0, %v3263
    %v3265 = vtanh.pop %v3258
    %v3266 = vmul.f32 %v3264, 0.0
    %3268 = vrot.lane.b32.xlu0 %v3265, 32
    %v3269 = vpop.permute.xlu0 %3268
    %v3271 = vmul.f32 %v3264, %v3269
    %3273 = vrot.lane.b32.xlu0 %v3271, 32
    %v3274 = vpop.permute.xlu0 %3273
    %v3276 = vadd.f32 %v3266, %v3274
    %v3277 = vtanh.pop %v3276
    %3279 = vrot.lane.b32.xlu0 %v3277, 32
    %v3280 = vpop.permute.xlu0 %3279
    %v3282 = vmul.f32 %v3264, %v3280
    %v3283 = vadd.f32 %v3282, 0.0
    %v3285 = vrot.slane %v3282, 6
    %3286 = vrot.lane.b32.xlu0 %v3285, 64
    %v3287 = vpop.permute.xlu0 %3286
    %v3288 = vsel %vm43, %v3287, 0
    %3290 = vmatprep.subr.mxu0 0.0
    %3291 = vmatpush1.msra.mxu0 %v3181
    %3292 = vmatprep.subr.mxu0 0.0
    %3293 = vmatpush1.msra.mxu0 %v3182
    %3294 = vmatprep.subr.mxu0 0.0
    %3295 = vmatpush1.msra.mxu0 %v3183
    %3296 = vmatprep.subr.mxu0 0.0
    %3297 = vmatpush1.msra.mxu0 %v3184
    %3298 = vmatprep.subr.mxu0 0.0
    %3299 = vmatpush1.msra.mxu0 0.0
    %3300 = vmatprep.subr.mxu0 0.0
    %3301 = vmatpush1.msra.mxu0 0.0
    %3302 = vmatprep.subr.mxu0 0.0
    %3303 = vmatpush1.msra.mxu0 0.0
    %3304 = vmatprep.subr.mxu0 0.0
    %3305 = vmatpush1.msra.mxu0 0.0
    %3306 = vmatprep.subr.mxu0 0.0
    %3307 = vmatpush1.msra.mxu0 0.0
    %3308 = vmatprep.subr.mxu0 0.0
    %3309 = vmatpush1.msra.mxu0 0.0
    %3310 = vmatprep.subr.mxu0 0.0
    %3311 = vmatpush1.msra.mxu0 0.0
    %3312 = vmatprep.subr.mxu0 0.0
    %3313 = vmatpush1.msra.mxu0 0.0
    %3314 = vmatprep.subr.mxu0 0.0
    %3315 = vmatpush1.msra.mxu0 0.0
    %3316 = vmatprep.subr.mxu0 0.0
    %3317 = vmatpush1.msra.mxu0 0.0
    %3318 = vmatprep.subr.mxu0 0.0
    %3319 = vmatpush1.msra.mxu0 0.0
    %3320 = vmatprep.subr.mxu0 0.0
    %3321 = vmatpush1.msra.mxu0 0.0
    %3322 = vmatprep.subr.mxu0 0.0
    %3323 = vmatpush1.msra.mxu0 0.0
    %3324 = vmatprep.subr.mxu0 0.0
    %3325 = vmatpush1.msra.mxu0 0.0
    %3326 = vmatprep.subr.mxu0 0.0
    %3327 = vmatpush1.msra.mxu0 0.0
    %3328 = vmatprep.subr.mxu0 0.0
    %3329 = vmatpush1.msra.mxu0 0.0
    %3330 = vmatprep.subr.mxu0 0.0
    %3331 = vmatpush1.msra.mxu0 0.0
    %3332 = vmatprep.subr.mxu0 0.0
    %3333 = vmatpush1.msra.mxu0 0.0
    %3334 = vmatprep.subr.mxu0 0.0
    %3335 = vmatpush1.msra.mxu0 0.0
    %3336 = vmatprep.subr.mxu0 0.0
    %3337 = vmatpush1.msra.mxu0 0.0
    %3338 = vmatprep.subr.mxu0 0.0
    %3339 = vmatpush1.msra.mxu0 0.0
    %3340 = vmatprep.subr.mxu0 0.0
    %3341 = vmatpush1.msra.mxu0 0.0
    %3342 = vmatprep.subr.mxu0 0.0
    %3343 = vmatpush1.msra.mxu0 0.0
    %3344 = vmatprep.subr.mxu0 0.0
    %3345 = vmatpush1.msra.mxu0 0.0
    %3346 = vmatprep.subr.mxu0 0.0
    %3347 = vmatpush1.msra.mxu0 0.0
    %3348 = vmatprep.subr.mxu0 0.0
    %3349 = vmatpush1.msra.mxu0 0.0
    %3350 = vmatprep.subr.mxu0 0.0
    %3351 = vmatpush1.msra.mxu0 0.0
    %3352 = vmatprep.subr.mxu0 0.0
    %3353 = vmatpush1.msra.mxu0 0.0
    %3354 = vmatprep.mubr.f32.mxu0 0.0
    %3355 = vmatmul.mubr.f32.gmra.mrb[0].mxu0 %v3288
    %v3356 = vpop.f32.mrb[0].mxu0
    %v3357 = vadd.f32 0.0, %v3356
    %v3358 = vpop.f32.mrb[0].mxu0
    %3359 = vdwg.mxu0
    %v3361 = vrot.slane %v3357, 4
    %v3363 = vadd.f32 %v2320, %v3361
    %v3364 = vxor.u32 %v3363, 2147483648
    %v3365 = vmul.f32 %v3364, 1.442695
    %v3366 = vpow.pop %v3365
    %v3367 = vadd.f32 %v3366, 1.0
    %v3368 = vrcp.pop %v3367
    %v3369 = vmul.f32 1.0, %v3368
    %v3370 = vtanh.pop %v3363
    %v3372 = vrot.slane %v3276, 2
    %v3374 = vmul.f32 %v3369, %v3372
    %3376 = vrot.lane.b32.xlu0 %v3370, 32
    %v3377 = vpop.permute.xlu0 %3376
    %v3379 = vmul.f32 %v3369, %v3377
    %3381 = vrot.lane.b32.xlu0 %v3379, 32
    %v3382 = vpop.permute.xlu0 %3381
    %v3384 = vadd.f32 %v3374, %v3382
    %v3385 = vtanh.pop %v3384
    %3387 = vrot.lane.b32.xlu0 %v3385, 32
    %v3388 = vpop.permute.xlu0 %3387
    %v3390 = vmul.f32 %v3369, %v3388
    %v3392 = vrot.slane %v3390, 6
    %v3394 = vadd.f32 %v3283, %v3392
    %v3395 = vrot.slane %v3390, 4
    %3396 = vrot.lane.b32.xlu0 %v3395, 64
    %v3397 = vpop.permute.xlu0 %3396
    %v3398 = vsel %vm43, %v3397, 0
    %3400 = vmatprep.subr.mxu0 0.0
    %3401 = vmatpush1.msra.mxu0 %v3181
    %3402 = vmatprep.subr.mxu0 0.0
    %3403 = vmatpush1.msra.mxu0 %v3182
    %3404 = vmatprep.subr.mxu0 0.0
    %3405 = vmatpush1.msra.mxu0 %v3183
    %3406 = vmatprep.subr.mxu0 0.0
    %3407 = vmatpush1.msra.mxu0 %v3184
    %3408 = vmatprep.subr.mxu0 0.0
    %3409 = vmatpush1.msra.mxu0 0.0
    %3410 = vmatprep.subr.mxu0 0.0
    %3411 = vmatpush1.msra.mxu0 0.0
    %3412 = vmatprep.subr.mxu0 0.0
    %3413 = vmatpush1.msra.mxu0 0.0
    %3414 = vmatprep.subr.mxu0 0.0
    %3415 = vmatpush1.msra.mxu0 0.0
    %3416 = vmatprep.subr.mxu0 0.0
    %3417 = vmatpush1.msra.mxu0 0.0
    %3418 = vmatprep.subr.mxu0 0.0
    %3419 = vmatpush1.msra.mxu0 0.0
    %3420 = vmatprep.subr.mxu0 0.0
    %3421 = vmatpush1.msra.mxu0 0.0
    %3422 = vmatprep.subr.mxu0 0.0
    %3423 = vmatpush1.msra.mxu0 0.0
    %3424 = vmatprep.subr.mxu0 0.0
    %3425 = vmatpush1.msra.mxu0 0.0
    %3426 = vmatprep.subr.mxu0 0.0
    %3427 = vmatpush1.msra.mxu0 0.0
    %3428 = vmatprep.subr.mxu0 0.0
    %3429 = vmatpush1.msra.mxu0 0.0
    %3430 = vmatprep.subr.mxu0 0.0
    %3431 = vmatpush1.msra.mxu0 0.0
    %3432 = vmatprep.subr.mxu0 0.0
    %3433 = vmatpush1.msra.mxu0 0.0
    %3434 = vmatprep.subr.mxu0 0.0
    %3435 = vmatpush1.msra.mxu0 0.0
    %3436 = vmatprep.subr.mxu0 0.0
    %3437 = vmatpush1.msra.mxu0 0.0
    %3438 = vmatprep.subr.mxu0 0.0
    %3439 = vmatpush1.msra.mxu0 0.0
    %3440 = vmatprep.subr.mxu0 0.0
    %3441 = vmatpush1.msra.mxu0 0.0
    %3442 = vmatprep.subr.mxu0 0.0
    %3443 = vmatpush1.msra.mxu0 0.0
    %3444 = vmatprep.subr.mxu0 0.0
    %3445 = vmatpush1.msra.mxu0 0.0
    %3446 = vmatprep.subr.mxu0 0.0
    %3447 = vmatpush1.msra.mxu0 0.0
    %3448 = vmatprep.subr.mxu0 0.0
    %3449 = vmatpush1.msra.mxu0 0.0
    %3450 = vmatprep.subr.mxu0 0.0
    %3451 = vmatpush1.msra.mxu0 0.0
    %3452 = vmatprep.subr.mxu0 0.0
    %3453 = vmatpush1.msra.mxu0 0.0
    %3454 = vmatprep.subr.mxu0 0.0
    %3455 = vmatpush1.msra.mxu0 0.0
    %3456 = vmatprep.subr.mxu0 0.0
    %3457 = vmatpush1.msra.mxu0 0.0
    %3458 = vmatprep.subr.mxu0 0.0
    %3459 = vmatpush1.msra.mxu0 0.0
    %3460 = vmatprep.subr.mxu0 0.0
    %3461 = vmatpush1.msra.mxu0 0.0
    %3462 = vmatprep.subr.mxu0 0.0
    %3463 = vmatpush1.msra.mxu0 0.0
    %3464 = vmatprep.mubr.f32.mxu0 0.0
    %3465 = vmatmul.mubr.f32.gmra.mrb[0].mxu0 %v3398
    %v3466 = vpop.f32.mrb[0].mxu0
    %v3467 = vadd.f32 0.0, %v3466
    %v3468 = vpop.f32.mrb[0].mxu0
    %3469 = vdwg.mxu0
    %v3471 = vrot.slane %v3467, 6
    %v3473 = vadd.f32 %v2320, %v3471
    %v3474 = vxor.u32 %v3473, 2147483648
    %v3475 = vmul.f32 %v3474, 1.442695
    %v3476 = vpow.pop %v3475
    %v3477 = vadd.f32 %v3476, 1.0
    %v3478 = vrcp.pop %v3477
    %v3479 = vmul.f32 1.0, %v3478
    %v3480 = vtanh.pop %v3473
    %v3482 = vrot.slane %v3384, 2
    %v3484 = vmul.f32 %v3479, %v3482
    %3486 = vrot.lane.b32.xlu0 %v3480, 32
    %v3487 = vpop.permute.xlu0 %3486
    %v3489 = vmul.f32 %v3479, %v3487
    %3491 = vrot.lane.b32.xlu0 %v3489, 32
    %v3492 = vpop.permute.xlu0 %3491
    %v3494 = vadd.f32 %v3484, %v3492
    %v3495 = vtanh.pop %v3494
    %3497 = vrot.lane.b32.xlu0 %v3495, 32
    %v3498 = vpop.permute.xlu0 %3497
    %v3500 = vmul.f32 %v3479, %v3498
    %v3502 = vrot.slane %v3500, 4
    %v3504 = vadd.f32 %v3394, %v3502
    %v3505 = vrot.slane %v3500, 2
    %3506 = vrot.lane.b32.xlu0 %v3505, 64
    %v3507 = vpop.permute.xlu0 %3506
    %v3508 = vsel %vm43, %v3507, 0
    %3510 = vmatprep.subr.mxu0 0.0
    %3511 = vmatpush1.msra.mxu0 %v3181
    %3512 = vmatprep.subr.mxu0 0.0
    %3513 = vmatpush1.msra.mxu0 %v3182
    %3514 = vmatprep.subr.mxu0 0.0
    %3515 = vmatpush1.msra.mxu0 %v3183
    %3516 = vmatprep.subr.mxu0 0.0
    %3517 = vmatpush1.msra.mxu0 %v3184
    %3518 = vmatprep.subr.mxu0 0.0
    %3519 = vmatpush1.msra.mxu0 0.0
    %3520 = vmatprep.subr.mxu0 0.0
    %3521 = vmatpush1.msra.mxu0 0.0
    %3522 = vmatprep.subr.mxu0 0.0
    %3523 = vmatpush1.msra.mxu0 0.0
    %3524 = vmatprep.subr.mxu0 0.0
    %3525 = vmatpush1.msra.mxu0 0.0
    %3526 = vmatprep.subr.mxu0 0.0
    %3527 = vmatpush1.msra.mxu0 0.0
    %3528 = vmatprep.subr.mxu0 0.0
    %3529 = vmatpush1.msra.mxu0 0.0
    %3530 = vmatprep.subr.mxu0 0.0
    %3531 = vmatpush1.msra.mxu0 0.0
    %3532 = vmatprep.subr.mxu0 0.0
    %3533 = vmatpush1.msra.mxu0 0.0
    %3534 = vmatprep.subr.mxu0 0.0
    %3535 = vmatpush1.msra.mxu0 0.0
    %3536 = vmatprep.subr.mxu0 0.0
    %3537 = vmatpush1.msra.mxu0 0.0
    %3538 = vmatprep.subr.mxu0 0.0
    %3539 = vmatpush1.msra.mxu0 0.0
    %3540 = vmatprep.subr.mxu0 0.0
    %3541 = vmatpush1.msra.mxu0 0.0
    %3542 = vmatprep.subr.mxu0 0.0
    %3543 = vmatpush1.msra.mxu0 0.0
    %3544 = vmatprep.subr.mxu0 0.0
    %3545 = vmatpush1.msra.mxu0 0.0
    %3546 = vmatprep.subr.mxu0 0.0
    %3547 = vmatpush1.msra.mxu0 0.0
    %3548 = vmatprep.subr.mxu0 0.0
    %3549 = vmatpush1.msra.mxu0 0.0
    %3550 = vmatprep.subr.mxu0 0.0
    %3551 = vmatpush1.msra.mxu0 0.0
    %3552 = vmatprep.subr.mxu0 0.0
    %3553 = vmatpush1.msra.mxu0 0.0
    %3554 = vmatprep.subr.mxu0 0.0
    %3555 = vmatpush1.msra.mxu0 0.0
    %3556 = vmatprep.subr.mxu0 0.0
    %3557 = vmatpush1.msra.mxu0 0.0
    %3558 = vmatprep.subr.mxu0 0.0
    %3559 = vmatpush1.msra.mxu0 0.0
    %3560 = vmatprep.subr.mxu0 0.0
    %3561 = vmatpush1.msra.mxu0 0.0
    %3562 = vmatprep.subr.mxu0 0.0
    %3563 = vmatpush1.msra.mxu0 0.0
    %3564 = vmatprep.subr.mxu0 0.0
    %3565 = vmatpush1.msra.mxu0 0.0
    %3566 = vmatprep.subr.mxu0 0.0
    %3567 = vmatpush1.msra.mxu0 0.0
    %3568 = vmatprep.subr.mxu0 0.0
    %3569 = vmatpush1.msra.mxu0 0.0
    %3570 = vmatprep.subr.mxu0 0.0
    %3571 = vmatpush1.msra.mxu0 0.0
    %3572 = vmatprep.subr.mxu0 0.0
    %3573 = vmatpush1.msra.mxu0 0.0
    %3574 = vmatprep.mubr.f32.mxu0 0.0
    %3575 = vmatmul.mubr.f32.gmra.mrb[0].mxu0 %v3508
    %v3576 = vpop.f32.mrb[0].mxu0
    %v3577 = vadd.f32 0.0, %v3576
    %v3578 = vpop.f32.mrb[0].mxu0
    %3579 = vdwg.mxu0
    %v3580 = vadd.f32 %v2320, %v3577
    %v3581 = vxor.u32 %v3580, 2147483648
    %v3582 = vmul.f32 %v3581, 1.442695
    %v3583 = vpow.pop %v3582
    %v3584 = vadd.f32 %v3583, 1.0
    %v3585 = vrcp.pop %v3584
    %v3586 = vmul.f32 1.0, %v3585
    %v3587 = vtanh.pop %v3580
    %v3589 = vrot.slane %v3494, 2
    %v3591 = vmul.f32 %v3586, %v3589
    %3593 = vrot.lane.b32.xlu0 %v3587, 32
    %v3594 = vpop.permute.xlu0 %3593
    %v3596 = vmul.f32 %v3586, %v3594
    %3598 = vrot.lane.b32.xlu0 %v3596, 32
    %v3599 = vpop.permute.xlu0 %3598
    %v3601 = vadd.f32 %v3591, %v3599
    %v3602 = vtanh.pop %v3601
    %3604 = vrot.lane.b32.xlu0 %v3602, 32
    %v3605 = vpop.permute.xlu0 %3604
    %v3607 = vmul.f32 %v3586, %v3605
    %v3609 = vrot.slane %v3607, 2
    %v3611 = vadd.f32 %v3504, %v3609
    %3612 = vrot.lane.b32.xlu0 %v3607, 64
    %v3613 = vpop.permute.xlu0 %3612
    %v3614 = vsel %vm43, %v3613, 0
    %3616 = vmatprep.subr.mxu0 0.0
    %3617 = vmatpush1.msra.mxu0 %v3181
    %3618 = vmatprep.subr.mxu0 0.0
    %3619 = vmatpush1.msra.mxu0 %v3182
    %3620 = vmatprep.subr.mxu0 0.0
    %3621 = vmatpush1.msra.mxu0 %v3183
    %3622 = vmatprep.subr.mxu0 0.0
    %3623 = vmatpush1.msra.mxu0 %v3184
    %3624 = vmatprep.subr.mxu0 0.0
    %3625 = vmatpush1.msra.mxu0 0.0
    %3626 = vmatprep.subr.mxu0 0.0
    %3627 = vmatpush1.msra.mxu0 0.0
    %3628 = vmatprep.subr.mxu0 0.0
    %3629 = vmatpush1.msra.mxu0 0.0
    %3630 = vmatprep.subr.mxu0 0.0
    %3631 = vmatpush1.msra.mxu0 0.0
    %3632 = vmatprep.subr.mxu0 0.0
    %3633 = vmatpush1.msra.mxu0 0.0
    %3634 = vmatprep.subr.mxu0 0.0
    %3635 = vmatpush1.msra.mxu0 0.0
    %3636 = vmatprep.subr.mxu0 0.0
    %3637 = vmatpush1.msra.mxu0 0.0
    %3638 = vmatprep.subr.mxu0 0.0
    %3639 = vmatpush1.msra.mxu0 0.0
    %3640 = vmatprep.subr.mxu0 0.0
    %3641 = vmatpush1.msra.mxu0 0.0
    %3642 = vmatprep.subr.mxu0 0.0
    %3643 = vmatpush1.msra.mxu0 0.0
    %3644 = vmatprep.subr.mxu0 0.0
    %3645 = vmatpush1.msra.mxu0 0.0
    %3646 = vmatprep.subr.mxu0 0.0
    %3647 = vmatpush1.msra.mxu0 0.0
    %3648 = vmatprep.subr.mxu0 0.0
    %3649 = vmatpush1.msra.mxu0 0.0
    %3650 = vmatprep.subr.mxu0 0.0
    %3651 = vmatpush1.msra.mxu0 0.0
    %3652 = vmatprep.subr.mxu0 0.0
    %3653 = vmatpush1.msra.mxu0 0.0
    %3654 = vmatprep.subr.mxu0 0.0
    %3655 = vmatpush1.msra.mxu0 0.0
    %3656 = vmatprep.subr.mxu0 0.0
    %3657 = vmatpush1.msra.mxu0 0.0
    %3658 = vmatprep.subr.mxu0 0.0
    %3659 = vmatpush1.msra.mxu0 0.0
    %3660 = vmatprep.subr.mxu0 0.0
    %3661 = vmatpush1.msra.mxu0 0.0
    %3662 = vmatprep.subr.mxu0 0.0
    %3663 = vmatpush1.msra.mxu0 0.0
    %3664 = vmatprep.subr.mxu0 0.0
    %3665 = vmatpush1.msra.mxu0 0.0
    %3666 = vmatprep.subr.mxu0 0.0
    %3667 = vmatpush1.msra.mxu0 0.0
    %3668 = vmatprep.subr.mxu0 0.0
    %3669 = vmatpush1.msra.mxu0 0.0
    %3670 = vmatprep.subr.mxu0 0.0
    %3671 = vmatpush1.msra.mxu0 0.0
    %3672 = vmatprep.subr.mxu0 0.0
    %3673 = vmatpush1.msra.mxu0 0.0
    %3674 = vmatprep.subr.mxu0 0.0
    %3675 = vmatpush1.msra.mxu0 0.0
    %3676 = vmatprep.subr.mxu0 0.0
    %3677 = vmatpush1.msra.mxu0 0.0
    %3678 = vmatprep.subr.mxu0 0.0
    %3679 = vmatpush1.msra.mxu0 0.0
    %3680 = vmatprep.mubr.f32.mxu0 0.0
    %3681 = vmatmul.mubr.f32.gmra.mrb[0].mxu0 %v3614
    %v3682 = vpop.f32.mrb[0].mxu0
    %v3683 = vadd.f32 0.0, %v3682
    %v3684 = vpop.f32.mrb[0].mxu0
    %3685 = vdwg.mxu0
    %v3687 = vrot.slane %v3683, 2
    %v3689 = vadd.f32 %v2319, %v3687
    %v3690 = vxor.u32 %v3689, 2147483648
    %v3691 = vmul.f32 %v3690, 1.442695
    %v3692 = vpow.pop %v3691
    %v3693 = vadd.f32 %v3692, 1.0
    %v3694 = vrcp.pop %v3693
    %v3695 = vmul.f32 1.0, %v3694
    %v3696 = vtanh.pop %v3689
    %v3698 = vrot.slane %v3601, 2
    %v3700 = vmul.f32 %v3695, %v3698
    %3702 = vrot.lane.b32.xlu0 %v3696, 32
    %v3703 = vpop.permute.xlu0 %3702
    %v3705 = vmul.f32 %v3695, %v3703
    %3707 = vrot.lane.b32.xlu0 %v3705, 32
    %v3708 = vpop.permute.xlu0 %3707
    %v3710 = vadd.f32 %v3700, %v3708
    %v3711 = vtanh.pop %v3710
    %3713 = vrot.lane.b32.xlu0 %v3711, 32
    %v3714 = vpop.permute.xlu0 %3713
    %v3716 = vmul.f32 %v3695, %v3714
    %v3717 = vadd.f32 %v3611, %v3716
    %v3719 = vrot.slane %v3716, 6
    %3720 = vrot.lane.b32.xlu0 %v3719, 64
    %v3721 = vpop.permute.xlu0 %3720
    %v3722 = vsel %vm43, %v3721, 0
    %3724 = vmatprep.subr.mxu0 0.0
    %3725 = vmatpush1.msra.mxu0 %v3181
    %3726 = vmatprep.subr.mxu0 0.0
    %3727 = vmatpush1.msra.mxu0 %v3182
    %3728 = vmatprep.subr.mxu0 0.0
    %3729 = vmatpush1.msra.mxu0 %v3183
    %3730 = vmatprep.subr.mxu0 0.0
    %3731 = vmatpush1.msra.mxu0 %v3184
    %3732 = vmatprep.subr.mxu0 0.0
    %3733 = vmatpush1.msra.mxu0 0.0
    %3734 = vmatprep.subr.mxu0 0.0
    %3735 = vmatpush1.msra.mxu0 0.0
    %3736 = vmatprep.subr.mxu0 0.0
    %3737 = vmatpush1.msra.mxu0 0.0
    %3738 = vmatprep.subr.mxu0 0.0
    %3739 = vmatpush1.msra.mxu0 0.0
    %3740 = vmatprep.subr.mxu0 0.0
    %3741 = vmatpush1.msra.mxu0 0.0
    %3742 = vmatprep.subr.mxu0 0.0
    %3743 = vmatpush1.msra.mxu0 0.0
    %3744 = vmatprep.subr.mxu0 0.0
    %3745 = vmatpush1.msra.mxu0 0.0
    %3746 = vmatprep.subr.mxu0 0.0
    %3747 = vmatpush1.msra.mxu0 0.0
    %3748 = vmatprep.subr.mxu0 0.0
    %3749 = vmatpush1.msra.mxu0 0.0
    %3750 = vmatprep.subr.mxu0 0.0
    %3751 = vmatpush1.msra.mxu0 0.0
    %3752 = vmatprep.subr.mxu0 0.0
    %3753 = vmatpush1.msra.mxu0 0.0
    %3754 = vmatprep.subr.mxu0 0.0
    %3755 = vmatpush1.msra.mxu0 0.0
    %3756 = vmatprep.subr.mxu0 0.0
    %3757 = vmatpush1.msra.mxu0 0.0
    %3758 = vmatprep.subr.mxu0 0.0
    %3759 = vmatpush1.msra.mxu0 0.0
    %3760 = vmatprep.subr.mxu0 0.0
    %3761 = vmatpush1.msra.mxu0 0.0
    %3762 = vmatprep.subr.mxu0 0.0
    %3763 = vmatpush1.msra.mxu0 0.0
    %3764 = vmatprep.subr.mxu0 0.0
    %3765 = vmatpush1.msra.mxu0 0.0
    %3766 = vmatprep.subr.mxu0 0.0
    %3767 = vmatpush1.msra.mxu0 0.0
    %3768 = vmatprep.subr.mxu0 0.0
    %3769 = vmatpush1.msra.mxu0 0.0
    %3770 = vmatprep.subr.mxu0 0.0
    %3771 = vmatpush1.msra.mxu0 0.0
    %3772 = vmatprep.subr.mxu0 0.0
    %3773 = vmatpush1.msra.mxu0 0.0
    %3774 = vmatprep.subr.mxu0 0.0
    %3775 = vmatpush1.msra.mxu0 0.0
    %3776 = vmatprep.subr.mxu0 0.0
    %3777 = vmatpush1.msra.mxu0 0.0
    %3778 = vmatprep.subr.mxu0 0.0
    %3779 = vmatpush1.msra.mxu0 0.0
    %3780 = vmatprep.subr.mxu0 0.0
    %3781 = vmatpush1.msra.mxu0 0.0
    %3782 = vmatprep.subr.mxu0 0.0
    %3783 = vmatpush1.msra.mxu0 0.0
    %3784 = vmatprep.subr.mxu0 0.0
    %3785 = vmatpush1.msra.mxu0 0.0
    %3786 = vmatprep.subr.mxu0 0.0
    %3787 = vmatpush1.msra.mxu0 0.0
    %3788 = vmatprep.mubr.f32.mxu0 0.0
    %3789 = vmatmul.mubr.f32.gmra.mrb[0].mxu0 %v3722
    %v3790 = vpop.f32.mrb[0].mxu0
    %v3791 = vadd.f32 0.0, %v3790
    %v3792 = vpop.f32.mrb[0].mxu0
    %3793 = vdwg.mxu0
    %v3795 = vrot.slane %v3791, 4
    %v3797 = vadd.f32 %v2319, %v3795
    %v3798 = vxor.u32 %v3797, 2147483648
    %v3799 = vmul.f32 %v3798, 1.442695
    %v3800 = vpow.pop %v3799
    %v3801 = vadd.f32 %v3800, 1.0
    %v3802 = vrcp.pop %v3801
    %v3803 = vmul.f32 1.0, %v3802
    %v3804 = vtanh.pop %v3797
    %v3806 = vrot.slane %v3710, 2
    %v3808 = vmul.f32 %v3803, %v3806
    %3810 = vrot.lane.b32.xlu0 %v3804, 32
    %v3811 = vpop.permute.xlu0 %3810
    %v3813 = vmul.f32 %v3803, %v3811
    %3815 = vrot.lane.b32.xlu0 %v3813, 32
    %v3816 = vpop.permute.xlu0 %3815
    %v3818 = vadd.f32 %v3808, %v3816
    %v3819 = vtanh.pop %v3818
    %3821 = vrot.lane.b32.xlu0 %v3819, 32
    %v3822 = vpop.permute.xlu0 %3821
    %v3824 = vmul.f32 %v3803, %v3822
    %v3826 = vrot.slane %v3824, 6
    %v3828 = vadd.f32 %v3717, %v3826
    %v3829 = vrot.slane %v3824, 4
    %3830 = vrot.lane.b32.xlu0 %v3829, 64
    %v3831 = vpop.permute.xlu0 %3830
    %v3832 = vsel %vm43, %v3831, 0
    %3834 = vmatprep.subr.mxu0 0.0
    %3835 = vmatpush1.msra.mxu0 %v3181
    %3836 = vmatprep.subr.mxu0 0.0
    %3837 = vmatpush1.msra.mxu0 %v3182
    %3838 = vmatprep.subr.mxu0 0.0
    %3839 = vmatpush1.msra.mxu0 %v3183
    %3840 = vmatprep.subr.mxu0 0.0
    %3841 = vmatpush1.msra.mxu0 %v3184
    %3842 = vmatprep.subr.mxu0 0.0
    %3843 = vmatpush1.msra.mxu0 0.0
    %3844 = vmatprep.subr.mxu0 0.0
    %3845 = vmatpush1.msra.mxu0 0.0
    %3846 = vmatprep.subr.mxu0 0.0
    %3847 = vmatpush1.msra.mxu0 0.0
    %3848 = vmatprep.subr.mxu0 0.0
    %3849 = vmatpush1.msra.mxu0 0.0
    %3850 = vmatprep.subr.mxu0 0.0
    %3851 = vmatpush1.msra.mxu0 0.0
    %3852 = vmatprep.subr.mxu0 0.0
    %3853 = vmatpush1.msra.mxu0 0.0
    %3854 = vmatprep.subr.mxu0 0.0
    %3855 = vmatpush1.msra.mxu0 0.0
    %3856 = vmatprep.subr.mxu0 0.0
    %3857 = vmatpush1.msra.mxu0 0.0
    %3858 = vmatprep.subr.mxu0 0.0
    %3859 = vmatpush1.msra.mxu0 0.0
    %3860 = vmatprep.subr.mxu0 0.0
    %3861 = vmatpush1.msra.mxu0 0.0
    %3862 = vmatprep.subr.mxu0 0.0
    %3863 = vmatpush1.msra.mxu0 0.0
    %3864 = vmatprep.subr.mxu0 0.0
    %3865 = vmatpush1.msra.mxu0 0.0
    %3866 = vmatprep.subr.mxu0 0.0
    %3867 = vmatpush1.msra.mxu0 0.0
    %3868 = vmatprep.subr.mxu0 0.0
    %3869 = vmatpush1.msra.mxu0 0.0
    %3870 = vmatprep.subr.mxu0 0.0
    %3871 = vmatpush1.msra.mxu0 0.0
    %3872 = vmatprep.subr.mxu0 0.0
    %3873 = vmatpush1.msra.mxu0 0.0
    %3874 = vmatprep.subr.mxu0 0.0
    %3875 = vmatpush1.msra.mxu0 0.0
    %3876 = vmatprep.subr.mxu0 0.0
    %3877 = vmatpush1.msra.mxu0 0.0
    %3878 = vmatprep.subr.mxu0 0.0
    %3879 = vmatpush1.msra.mxu0 0.0
    %3880 = vmatprep.subr.mxu0 0.0
    %3881 = vmatpush1.msra.mxu0 0.0
    %3882 = vmatprep.subr.mxu0 0.0
    %3883 = vmatpush1.msra.mxu0 0.0
    %3884 = vmatprep.subr.mxu0 0.0
    %3885 = vmatpush1.msra.mxu0 0.0
    %3886 = vmatprep.subr.mxu0 0.0
    %3887 = vmatpush1.msra.mxu0 0.0
    %3888 = vmatprep.subr.mxu0 0.0
    %3889 = vmatpush1.msra.mxu0 0.0
    %3890 = vmatprep.subr.mxu0 0.0
    %3891 = vmatpush1.msra.mxu0 0.0
    %3892 = vmatprep.subr.mxu0 0.0
    %3893 = vmatpush1.msra.mxu0 0.0
    %3894 = vmatprep.subr.mxu0 0.0
    %3895 = vmatpush1.msra.mxu0 0.0
    %3896 = vmatprep.subr.mxu0 0.0
    %3897 = vmatpush1.msra.mxu0 0.0
    %3898 = vmatprep.mubr.f32.mxu0 0.0
    %3899 = vmatmul.mubr.f32.gmra.mrb[0].mxu0 %v3832
    %v3900 = vpop.f32.mrb[0].mxu0
    %v3901 = vadd.f32 0.0, %v3900
    %v3902 = vpop.f32.mrb[0].mxu0
    %3903 = vdwg.mxu0
    %v3905 = vrot.slane %v3901, 6
    %v3907 = vadd.f32 %v2319, %v3905
    %v3908 = vxor.u32 %v3907, 2147483648
    %v3909 = vmul.f32 %v3908, 1.442695
    %v3910 = vpow.pop %v3909
    %v3911 = vadd.f32 %v3910, 1.0
    %v3912 = vrcp.pop %v3911
    %v3913 = vmul.f32 1.0, %v3912
    %v3914 = vtanh.pop %v3907
    %v3916 = vrot.slane %v3818, 2
    %v3918 = vmul.f32 %v3913, %v3916
    %3920 = vrot.lane.b32.xlu0 %v3914, 32
    %v3921 = vpop.permute.xlu0 %3920
    %v3923 = vmul.f32 %v3913, %v3921
    %3925 = vrot.lane.b32.xlu0 %v3923, 32
    %v3926 = vpop.permute.xlu0 %3925
    %v3928 = vadd.f32 %v3918, %v3926
    %v3929 = vtanh.pop %v3928
    %3931 = vrot.lane.b32.xlu0 %v3929, 32
    %v3932 = vpop.permute.xlu0 %3931
    %v3934 = vmul.f32 %v3913, %v3932
    %v3936 = vrot.slane %v3934, 4
    %v3938 = vadd.f32 %v3828, %v3936
    %v3939 = vrot.slane %v3934, 2
    %3940 = vrot.lane.b32.xlu0 %v3939, 64
    %v3941 = vpop.permute.xlu0 %3940
    %v3942 = vsel %vm43, %v3941, 0
    %3944 = vmatprep.subr.mxu0 0.0
    %3945 = vmatpush1.msra.mxu0 %v3181
    %3946 = vmatprep.subr.mxu0 0.0
    %3947 = vmatpush1.msra.mxu0 %v3182
    %3948 = vmatprep.subr.mxu0 0.0
    %3949 = vmatpush1.msra.mxu0 %v3183
    %3950 = vmatprep.subr.mxu0 0.0
    %3951 = vmatpush1.msra.mxu0 %v3184
    %3952 = vmatprep.subr.mxu0 0.0
    %3953 = vmatpush1.msra.mxu0 0.0
    %3954 = vmatprep.subr.mxu0 0.0
    %3955 = vmatpush1.msra.mxu0 0.0
    %3956 = vmatprep.subr.mxu0 0.0
    %3957 = vmatpush1.msra.mxu0 0.0
    %3958 = vmatprep.subr.mxu0 0.0
    %3959 = vmatpush1.msra.mxu0 0.0
    %3960 = vmatprep.subr.mxu0 0.0
    %3961 = vmatpush1.msra.mxu0 0.0
    %3962 = vmatprep.subr.mxu0 0.0
    %3963 = vmatpush1.msra.mxu0 0.0
    %3964 = vmatprep.subr.mxu0 0.0
    %3965 = vmatpush1.msra.mxu0 0.0
    %3966 = vmatprep.subr.mxu0 0.0
    %3967 = vmatpush1.msra.mxu0 0.0
    %3968 = vmatprep.subr.mxu0 0.0
    %3969 = vmatpush1.msra.mxu0 0.0
    %3970 = vmatprep.subr.mxu0 0.0
    %3971 = vmatpush1.msra.mxu0 0.0
    %3972 = vmatprep.subr.mxu0 0.0
    %3973 = vmatpush1.msra.mxu0 0.0
    %3974 = vmatprep.subr.mxu0 0.0
    %3975 = vmatpush1.msra.mxu0 0.0
    %3976 = vmatprep.subr.mxu0 0.0
    %3977 = vmatpush1.msra.mxu0 0.0
    %3978 = vmatprep.subr.mxu0 0.0
    %3979 = vmatpush1.msra.mxu0 0.0
    %3980 = vmatprep.subr.mxu0 0.0
    %3981 = vmatpush1.msra.mxu0 0.0
    %3982 = vmatprep.subr.mxu0 0.0
    %3983 = vmatpush1.msra.mxu0 0.0
    %3984 = vmatprep.subr.mxu0 0.0
    %3985 = vmatpush1.msra.mxu0 0.0
    %3986 = vmatprep.subr.mxu0 0.0
    %3987 = vmatpush1.msra.mxu0 0.0
    %3988 = vmatprep.subr.mxu0 0.0
    %3989 = vmatpush1.msra.mxu0 0.0
    %3990 = vmatprep.subr.mxu0 0.0
    %3991 = vmatpush1.msra.mxu0 0.0
    %3992 = vmatprep.subr.mxu0 0.0
    %3993 = vmatpush1.msra.mxu0 0.0
    %3994 = vmatprep.subr.mxu0 0.0
    %3995 = vmatpush1.msra.mxu0 0.0
    %3996 = vmatprep.subr.mxu0 0.0
    %3997 = vmatpush1.msra.mxu0 0.0
    %3998 = vmatprep.subr.mxu0 0.0
    %3999 = vmatpush1.msra.mxu0 0.0
    %4000 = vmatprep.subr.mxu0 0.0
    %4001 = vmatpush1.msra.mxu0 0.0
    %4002 = vmatprep.subr.mxu0 0.0
    %4003 = vmatpush1.msra.mxu0 0.0
    %4004 = vmatprep.subr.mxu0 0.0
    %4005 = vmatpush1.msra.mxu0 0.0
    %4006 = vmatprep.subr.mxu0 0.0
    %4007 = vmatpush1.msra.mxu0 0.0
    %4008 = vmatprep.mubr.f32.mxu0 0.0
    %4009 = vmatmul.mubr.f32.gmra.mrb[0].mxu0 %v3942
    %v4010 = vpop.f32.mrb[0].mxu0
    %v4011 = vadd.f32 0.0, %v4010
    %v4012 = vpop.f32.mrb[0].mxu0
    %4013 = vdwg.mxu0
    %v4014 = vadd.f32 %v2319, %v4011
    %v4015 = vxor.u32 %v4014, 2147483648
    %v4016 = vmul.f32 %v4015, 1.442695
    %v4017 = vpow.pop %v4016
    %v4018 = vadd.f32 %v4017, 1.0
    %v4019 = vrcp.pop %v4018
    %v4020 = vmul.f32 1.0, %v4019
    %v4021 = vtanh.pop %v4014
    %v4023 = vrot.slane %v3928, 2
    %v4025 = vmul.f32 %v4020, %v4023
    %4027 = vrot.lane.b32.xlu0 %v4021, 32
    %v4028 = vpop.permute.xlu0 %4027
    %v4030 = vmul.f32 %v4020, %v4028
    %4032 = vrot.lane.b32.xlu0 %v4030, 32
    %v4033 = vpop.permute.xlu0 %4032
    %v4035 = vadd.f32 %v4025, %v4033
    %v4036 = vtanh.pop %v4035
    %4038 = vrot.lane.b32.xlu0 %v4036, 32
    %v4039 = vpop.permute.xlu0 %4038
    %v4041 = vmul.f32 %v4020, %v4039
    %v4043 = vrot.slane %v4041, 2
    %v4045 = vadd.f32 %v3938, %v4043
    %v4046 = vmul.f32 %v3179, 0.125
    %v4047 = vmul.f32 %v4045, 0.125
    %4049 = vrot.lane.b32.xlu0 %v4046, 64
    %v4050 = vpop.permute.xlu0 %4049
    %4052 = vst.msk [vmem:[#allocation4] sm:$0x3] %vm319, %v4050
    %4054 = vrot.lane.b32.xlu0 %v4047, 96
    %v4055 = vpop.permute.xlu0 %4054
    %vm4057 = vcmask 523526
    %4058 = vst.msk [vmem:[#allocation4 - $0x6] sm:$0xc0] %vm4057, %v4055
    // Predicated region
    $region34: #{jennie_jisoo_forward.1} parent=1 // pred_check
      _
    $region35: #{jennie_jisoo_forward.1} parent=1 // pred_check_branch
      %4060 = sbr.rel (0) target = $region37
    $region36: #{jennie_jisoo_forward.1} parent=1 // pred_region
      %s4062 = ssub.s32 32, 32
      %4063 = vsyncadd [#allocation5], %s4062
      %s4065 = sshll.u32 [#allocation4], 4
      %s4066 = int_to_ptr.vmem [resolvable:$true] %s4065
      %4068 = dma.vmem_to_hbm [thread:$0]  %s4066, 32, %s8, [#allocation5]
    $region37: #{jennie_jisoo_forward.1} parent=1 // pred_fallthru
      _
    // Predicated region
    $region38: #{jennie_jisoo_forward.1} parent=1 // pred_check
      _
    $region39: #{jennie_jisoo_forward.1} parent=1 // pred_check_branch
      %4070 = sbr.rel (0) target = $region41
    $region40: #{jennie_jisoo_forward.1} parent=1 // pred_region
      %4071 = dma.done [#allocation5], 32
    $region41: #{jennie_jisoo_forward.1} parent=1 // pred_fallthru
      _
    %4072 = vsyncpa [#allocation5], 1

</llo_original>
